<compile_context>
chip_gen: v7x
topology: tpu7x:2x2x1
jax: 0.10.0
libtpu: 0.0.40
codegen_flags: <defaults>
</compile_context>

<pallas_src>
import functools

import jax
import jax.numpy as jnp
import numpy as np
from jax.experimental import pallas as pl
from jax.experimental.pallas import tpu as pltpu


def attention_classifier_kernel(
    x_ref,    # (Bb, tS, E)  input tile, native dtype (f32 or bf16)
    wc_ref,   # (1, 1, E)    bf16 conv1 weight
    bc_ref,   # (1,)         f32 conv1 bias (SMEM scalar)
    w1_ref,   # (tS, 512)    bf16 fc1 weight tile (pre-transposed to (in, out))
    b1_ref,   # (1, 512)     f32
    w2_ref,   # (512, HP)    bf16 fc2 weight, h_dim zero-padded to HP
    b2_ref,   # (1, HP)      f32
    w3_ref,   # (HP, OP)     bf16 fc3 weight, zero-padded
    b3_ref,   # (1, OP)      f32
    out_ref,  # (Bb, OP)     f32 output (padded; sliced outside)
    acc_ref,  # (Bb, 512)    f32 VMEM scratch: fc1 accumulator
    *,
    seq_len,      # true S (static)
    block_s,      # S tile size (static)
    conv_dtype,   # bf16 on v6e/v7x, f32 on v5e
):
    s = pl.program_id(1)  # reduction axis over S tiles (axis 0 = batch blocks)

    @pl.when(s == 0)
    def _init():
        acc_ref[...] = jnp.zeros_like(acc_ref)

    # conv1 (1x200 kernel over the embedding axis) + bias, per (b, s).
    # Multiply in bf16 (cheap VALU), accumulate the 200-term sum in f32.
    x = x_ref[...].astype(conv_dtype)                         # (Bb, tS, E)
    wc = wc_ref[...].astype(conv_dtype)                       # (1, 1, E)
    conv = jnp.sum(x * wc, axis=-1, dtype=jnp.float32) + bc_ref[0]   # (Bb, tS) f32

    # ReLU fused with the S-tail mask: rows >= seq_len of the last tile are
    # out-of-bounds garbage (x is NOT padded in HBM); select exact 0 so NaN/Inf
    # cannot leak, and w1's zero pad rows then contribute exactly nothing.
    row = s * block_s + jax.lax.broadcasted_iota(jnp.int32, (1, block_s), 1)
    h0 = jnp.where(row < seq_len, jnp.maximum(conv, 0.0), 0.0).astype(jnp.bfloat16)

    # Partial fc1 over this S-tile; f32 accumulation on the MXU.
    acc_ref[...] += jnp.dot(h0, w1_ref[...], preferred_element_type=jnp.float32)

    # Finalize: fc1 bias + ReLU -> fc2 + ReLU -> fc3  (dropout p=0.0 = identity).
    @pl.when(s == pl.num_programs(1) - 1)
    def _finalize():
        h1 = jnp.maximum(acc_ref[...] + b1_ref[...], 0.0).astype(jnp.bfloat16)
        h2 = jnp.dot(h1, w2_ref[...], preferred_element_type=jnp.float32) + b2_ref[...]
        h2 = jnp.maximum(h2, 0.0).astype(jnp.bfloat16)
        out_ref[...] = (
            jnp.dot(h2, w3_ref[...], preferred_element_type=jnp.float32) + b3_ref[...]
        )


def _pad_to(a, axis, size):
    pad = size - a.shape[axis]
    if pad == 0:
        return a
    widths = [(0, 0)] * a.ndim
    widths[axis] = (0, pad)
    return jnp.pad(a, widths)


def prepare_params(torch_params, *, block_s=1024):
    """ONE-TIME preprocessing of PyTorch-layout weights into kernel-ready arrays.

    Call once at model load, never per forward (the w1 pad+cast alone is ~17 MB
    of HBM traffic at the production in_features=16907).

    block_s: S-tile size.  Default 1024; sweep 1024-2048 at production S=16907
    (v5e benefits most from 2048 thanks to its 128 MiB VMEM and lowest HBM BW).
    Must be a multiple of 8.
    """
    assert block_s % 8 == 0

    wc = torch_params["conv1.weight"]          # (1, 1, 1, E)
    bc = torch_params["conv1.bias"]            # (1,)
    w1 = torch_params["fc1.weight"]            # (512, S)   torch (out, in)
    b1 = torch_params["fc1.bias"]              # (512,)
    w2 = torch_params["fc2.weight"]            # (h, 512)
    b2 = torch_params["fc2.bias"]              # (h,)
    w3 = torch_params["fc3.weight"]            # (o, h)
    b3 = torch_params["fc3.bias"]              # (o,)

    E = wc.shape[-1]
    H1, S = w1.shape
    h_dim = w2.shape[0]
    out_dim = w3.shape[0]

    Sp = pl.cdiv(S, block_s) * block_s         # zero rows past S cancel the tail
    HP = ((h_dim + 127) // 128) * 128          # lane-dense fc2/fc3 tiles & store
    OP = ((out_dim + 127) // 128) * 128

    return {
        "wc": jnp.asarray(wc, jnp.bfloat16).reshape(1, 1, E),
        "bc": jnp.asarray(bc, jnp.float32).reshape(1),
        "w1": _pad_to(jnp.asarray(w1, jnp.bfloat16).T, 0, Sp),                    # (Sp, 512)
        "b1": jnp.asarray(b1, jnp.float32).reshape(1, H1),
        "w2": _pad_to(jnp.asarray(w2, jnp.bfloat16).T, 1, HP),                    # (512, HP)
        "b2": _pad_to(jnp.asarray(b2, jnp.float32).reshape(1, h_dim), 1, HP),
        "w3": _pad_to(_pad_to(jnp.asarray(w3, jnp.bfloat16).T, 0, HP), 1, OP),    # (HP, OP)
        "b3": _pad_to(jnp.asarray(b3, jnp.float32).reshape(1, out_dim), 1, OP),
        "meta": dict(S=S, E=E, H1=H1, h_dim=h_dim, out_dim=out_dim,
                     HP=HP, OP=OP, block_s=block_s),
    }


def attention_classifier(x, prepped, *, batch_blocks=1,
                         conv_compute_dtype=jnp.bfloat16):
    """Fused forward pass.

    x:  (B, S, E) in its native dtype (f32 works; pass bf16 from the producer to
        halve the dominant HBM stream - it is cast per tile inside the kernel).
    prepped: output of prepare_params() (one-time weight prep).
    batch_blocks: v7x megacore knob - split B over a leading "parallel" grid
        axis so both TensorCores run (needs B % batch_blocks == 0 and
        B/batch_blocks % 8 == 0; otherwise silently falls back to 1).
    conv_compute_dtype: bf16 on v6e/v7x (bf16 VALU); use f32 on v5e.
    """
    meta = prepped["meta"]
    B, S, E = x.shape
    assert S == meta["S"] and E == meta["E"], "x shape does not match prepared params"
    block_s = meta["block_s"]
    H1, HP, OP = meta["H1"], meta["HP"], meta["OP"]
    num_s = pl.cdiv(S, block_s)

    if batch_blocks > 1 and (B % batch_blocks != 0 or (B // batch_blocks) % 8 != 0):
        batch_blocks = 1
    block_b = B // batch_blocks

    kernel = functools.partial(
        attention_classifier_kernel,
        seq_len=S, block_s=block_s, conv_dtype=conv_compute_dtype)

    # VMEM budget from the *lane-padded* tile sizes (E=200 pads to 256 lanes in
    # VMEM, ~28% bigger than the HBM bytes); double-buffered x and w1 streams,
    # resident small weights, plus margin for compiler-internal scratch.
    e_lanes = ((E + 127) // 128) * 128
    vmem_bytes = (
        2 * (block_b * block_s * e_lanes * x.dtype.itemsize    # x tile x2
             + block_s * H1 * 2)                               # w1 tile x2
        + H1 * HP * 2 + HP * OP * 2                            # resident w2/w3
        + 8 * (H1 + HP + OP) * 4                               # biases (padded)
        + 8 * (H1 + OP) * 4                                    # acc scratch + out
        + (4 << 20)                                            # margin
    )
    vmem_limit = int(min(max(vmem_bytes, 16 << 20), 60 << 20))

    grid_spec = pltpu.PrefetchScalarGridSpec(
        num_scalar_prefetch=0,
        grid=(batch_blocks, num_s),
        in_specs=[
            pl.BlockSpec((block_b, block_s, E), lambda b, s: (b, s, 0)),   # x tile
            pl.BlockSpec((1, 1, E), lambda b, s: (0, 0, 0)),               # wc (resident)
            pl.BlockSpec(memory_space=pltpu.MemorySpace.SMEM),             # bc scalar
            pl.BlockSpec((block_s, H1), lambda b, s: (s, 0)),              # w1 tile
            pl.BlockSpec((1, H1), lambda b, s: (0, 0)),                    # b1 (resident)
            pl.BlockSpec((H1, HP), lambda b, s: (0, 0)),                   # w2 (resident)
            pl.BlockSpec((1, HP), lambda b, s: (0, 0)),                    # b2 (resident)
            pl.BlockSpec((HP, OP), lambda b, s: (0, 0)),                   # w3 (resident)
            pl.BlockSpec((1, OP), lambda b, s: (0, 0)),                    # b3 (resident)
        ],
        out_specs=pl.BlockSpec((block_b, OP), lambda b, s: (b, 0)),        # accumulator out
        scratch_shapes=[pltpu.VMEM((block_b, H1), jnp.float32)],
    )

    out_padded = pl.pallas_call(
        kernel,
        out_shape=jax.ShapeDtypeStruct((B, OP), jnp.float32),
        grid_spec=grid_spec,
        compiler_params=pltpu.CompilerParams(
            dimension_semantics=("parallel", "arbitrary"),   # B blocks || , S reduction
            vmem_limit_bytes=vmem_limit,
        ),
    )(x, prepped["wc"], prepped["bc"], prepped["w1"], prepped["b1"],
      prepped["w2"], prepped["b2"], prepped["w3"], prepped["b3"])

    return out_padded[:, :meta["out_dim"]]


def attention_classifier_ref(x, torch_params):
    """Pure-JAX reference: f32 math on bf16-rounded x / weights.  NOTE: the kernel
    additionally rounds h0/h1/h2 to bf16 before each MXU dot and its conv products
    are bf16; the 5e-2 tolerance absorbs those extra roundings."""
    r = lambda a: jnp.asarray(a, jnp.bfloat16).astype(jnp.float32)
    E = torch_params["conv1.weight"].shape[-1]
    conv = jnp.einsum("bse,e->bs", r(x), r(torch_params["conv1.weight"]).reshape(E))
    conv = conv + jnp.asarray(torch_params["conv1.bias"], jnp.float32)[0]
    h0 = jnp.maximum(conv, 0.0)
    h1 = jnp.maximum(h0 @ r(torch_params["fc1.weight"]).T
                     + jnp.asarray(torch_params["fc1.bias"], jnp.float32), 0.0)
    h2 = jnp.maximum(h1 @ r(torch_params["fc2.weight"]).T
                     + jnp.asarray(torch_params["fc2.bias"], jnp.float32), 0.0)
    return (h2 @ r(torch_params["fc3.weight"]).T
            + jnp.asarray(torch_params["fc3.bias"], jnp.float32))


def init_params(key, in_features, conv_k, hidden1, h_dim, out_dim):
    """PyTorch-layout parameters (Linear weights are (out, in), like nn.Linear)."""
    ks = jax.random.split(key, 8)
    scale = lambda fan_in: 1.0 / np.sqrt(fan_in)
    return {
        "conv1.weight": jax.random.normal(ks[0], (1, 1, 1, conv_k), jnp.float32) * scale(conv_k),
        "conv1.bias":   jax.random.normal(ks[1], (1,), jnp.float32) * scale(conv_k),
        "fc1.weight":   jax.random.normal(ks[2], (hidden1, in_features), jnp.float32) * scale(in_features),
        "fc1.bias":     jax.random.normal(ks[3], (hidden1,), jnp.float32) * scale(in_features),
        "fc2.weight":   jax.random.normal(ks[4], (h_dim, hidden1), jnp.float32) * scale(hidden1),
        "fc2.bias":     jax.random.normal(ks[5], (h_dim,), jnp.float32) * scale(hidden1),
        "fc3.weight":   jax.random.normal(ks[6], (out_dim, h_dim), jnp.float32) * scale(h_dim),
        "fc3.bias":     jax.random.normal(ks[7], (out_dim,), jnp.float32) * scale(h_dim),
    }


if __name__ == "__main__":
    # Shapes consistent with the module: conv kernel width 200 -> E = 200
    # (conv output spatial width 1); in_features (= S) shrunk from 16907 to 900.
    # S = 900 is deliberately NOT a multiple of block_s so the in-kernel tail
    # mask (no jnp.pad of x) is exercised.
    B, S, E = 4, 900, 200
    HIDDEN1, H_DIM, OUT_DIM = 512, 100, 10
    BLOCK_S = 256   # small for the demo; production default is 1024 (sweep 1024-2048)

    key = jax.random.PRNGKey(0)
    k_x, k_p = jax.random.split(key)
    x = jax.random.normal(k_x, (B, S, E), jnp.float32)
    torch_params = init_params(k_p, in_features=S, conv_k=E,
                               hidden1=HIDDEN1, h_dim=H_DIM, out_dim=OUT_DIM)

    # One-time weight prep (pad / cast / transpose happen here, not per call).
    prepped = prepare_params(torch_params, block_s=BLOCK_S)

    out = jax.block_until_ready(attention_classifier(x, prepped))
    ref = jax.block_until_ready(attention_classifier_ref(x, torch_params))

    np.testing.assert_allclose(np.asarray(out), np.asarray(ref), rtol=5e-2, atol=5e-2)

    print("KERNEL_OK")
</pallas_src>

<mosaic_0001>
module attributes {stable_mosaic.version = 11 : i64} {
  func.func @attention_classifier_kernel(%arg0: i32, %arg1: i32, %arg2: memref<4x256x200xf32, #tpu.memory_space<vmem>>, %arg3: memref<1x1x200xbf16, #tpu.memory_space<vmem>>, %arg4: memref<1xf32, #tpu.memory_space<smem>>, %arg5: memref<256x512xbf16, #tpu.memory_space<vmem>>, %arg6: memref<1x512xf32, #tpu.memory_space<vmem>>, %arg7: memref<512x128xbf16, #tpu.memory_space<vmem>>, %arg8: memref<1x128xf32, #tpu.memory_space<vmem>>, %arg9: memref<128x128xbf16, #tpu.memory_space<vmem>>, %arg10: memref<1x128xf32, #tpu.memory_space<vmem>>, %arg11: memref<4x128xf32, #tpu.memory_space<vmem>>, %arg12: memref<4x512xf32, #tpu.memory_space<vmem>>) attributes {dimension_semantics = [#tpu.dimension_semantics<parallel>, #tpu.dimension_semantics<arbitrary>], iteration_bounds = array<i64: 1, 4>, scalar_prefetch = 0 : i64, scratch_operands = 1 : i64, tpu.core_type = #tpu.core_type<tc>, window_params = [{transform_indices = @transform_0, window_bounds = array<i64: 4, 256, 200>}, {pipeline_mode = #tpu.pipeline_mode<synchronous>, transform_indices = @transform_1, window_bounds = array<i64: 1, 1, 200>}, {transform_indices = @transform_2, window_bounds = array<i64: 1>}, {transform_indices = @transform_3, window_bounds = array<i64: 256, 512>}, {pipeline_mode = #tpu.pipeline_mode<synchronous>, transform_indices = @transform_4, window_bounds = array<i64: 1, 512>}, {pipeline_mode = #tpu.pipeline_mode<synchronous>, transform_indices = @transform_5, window_bounds = array<i64: 512, 128>}, {pipeline_mode = #tpu.pipeline_mode<synchronous>, transform_indices = @transform_6, window_bounds = array<i64: 1, 128>}, {pipeline_mode = #tpu.pipeline_mode<synchronous>, transform_indices = @transform_7, window_bounds = array<i64: 128, 128>}, {pipeline_mode = #tpu.pipeline_mode<synchronous>, transform_indices = @transform_8, window_bounds = array<i64: 1, 128>}, {transform_indices = @transform_9, window_bounds = array<i64: 4, 128>}]} {
    %c0_i32 = arith.constant 0 : i32
    %0 = arith.cmpi eq, %arg1, %c0_i32 : i32
    %1 = arith.extui %0 : i1 to i32
    %c0_i32_0 = arith.constant 0 : i32
    %2 = arith.cmpi ne, %1, %c0_i32_0 : i32
    scf.if %2 {
      %cst_17 = arith.constant 0.000000e+00 : f32
      %34 = vector.broadcast %cst_17 : f32 to vector<4x512xf32>
      %c0_18 = arith.constant 0 : index
      %c0_19 = arith.constant 0 : index
      %35 = vector.load %arg12[%c0_18, %c0_19] : memref<4x512xf32, #tpu.memory_space<vmem>>, vector<4x512xf32>
      tpu.vector_store %arg12[%c0_18, %c0_19], %34 {strides = array<i32>} : memref<4x512xf32, #tpu.memory_space<vmem>>, vector<4x512xf32>,
    } else {
    }
    %c0 = arith.constant 0 : index
    %c0_1 = arith.constant 0 : index
    %c0_2 = arith.constant 0 : index
    %3 = vector.load %arg2[%c0, %c0_1, %c0_2] : memref<4x256x200xf32, #tpu.memory_space<vmem>>, vector<4x256x200xf32>
    %4 = arith.truncf %3 : vector<4x256x200xf32> to vector<4x256x200xbf16>
    %c0_3 = arith.constant 0 : index
    %c0_4 = arith.constant 0 : index
    %c0_5 = arith.constant 0 : index
    %5 = vector.load %arg3[%c0_3, %c0_4, %c0_5] : memref<1x1x200xbf16, #tpu.memory_space<vmem>>, vector<1x1x200xbf16>
    %6 = vector.broadcast %5 : vector<1x1x200xbf16> to vector<4x256x200xbf16>
    %7 = arith.mulf %4, %6 : vector<4x256x200xbf16>
    %8 = arith.extf %7 : vector<4x256x200xbf16> to vector<4x256x200xf32>
    %cst = arith.constant dense<0.000000e+00> : vector<4x256xf32>
    %9 = vector.multi_reduction <add>, %8, %cst [2] : vector<4x256x200xf32> to vector<4x256xf32>
    %c0_6 = arith.constant 0 : index
    %10 = memref.load %arg4[%c0_6] : memref<1xf32, #tpu.memory_space<smem>>
    %11 = vector.broadcast %10 : f32 to vector<4x256xf32>
    %12 = arith.addf %9, %11 : vector<4x256xf32>
    %c256_i32 = arith.constant 256 : i32
    %13 = arith.muli %arg1, %c256_i32 : i32
    %14 = tpu.iota {dimensions = array<i32: 1>} : vector<1x256xi32>
    %15 = vector.broadcast %13 : i32 to vector<1x256xi32>
    %16 = arith.addi %15, %14 : vector<1x256xi32>
    %c900_i32 = arith.constant 900 : i32
    %17 = vector.broadcast %c900_i32 : i32 to vector<1x256xi32>
    %18 = arith.cmpi slt, %16, %17 : vector<1x256xi32>
    %cst_7 = arith.constant 0.000000e+00 : f32
    %19 = vector.broadcast %cst_7 : f32 to vector<4x256xf32>
    %20 = arith.maximumf %12, %19 : vector<4x256xf32>
    %cst_8 = arith.constant 0.000000e+00 : f32
    %21 = vector.shape_cast %18 : vector<1x256xi1> to vector<1x256xi1>
    %22 = vector.broadcast %21 : vector<1x256xi1> to vector<4x256xi1>
    %23 = vector.broadcast %cst_8 : f32 to vector<4x256xf32>
    %24 = arith.select %22, %20, %23 : vector<4x256xi1>, vector<4x256xf32>
    %25 = arith.truncf %24 : vector<4x256xf32> to vector<4x256xbf16>
    %c0_9 = arith.constant 0 : index
    %c0_10 = arith.constant 0 : index
    %26 = vector.load %arg12[%c0_9, %c0_10] : memref<4x512xf32, #tpu.memory_space<vmem>>, vector<4x512xf32>
    %c0_11 = arith.constant 0 : index
    %c0_12 = arith.constant 0 : index
    %27 = vector.load %arg5[%c0_11, %c0_12] : memref<256x512xbf16, #tpu.memory_space<vmem>>, vector<256x512xbf16>
    %cst_13 = arith.constant dense<0.000000e+00> : vector<4x512xf32>
    %28 = tpu.matmul %25, %27, %cst_13 {dimension_numbers = #tpu.dot_dimension_numbers<[1], [0], [0], [1], [0, 0, 1, 1], [], []>} : vector<4x256xbf16>, vector<256x512xbf16>, vector<4x512xf32> -> vector<4x512xf32>
    %29 = arith.addf %26, %28 : vector<4x512xf32>
    %c0_14 = arith.constant 0 : index
    %c0_15 = arith.constant 0 : index
    %30 = vector.load %arg12[%c0_14, %c0_15] : memref<4x512xf32, #tpu.memory_space<vmem>>, vector<4x512xf32>
    tpu.vector_store %arg12[%c0_14, %c0_15], %29 {strides = array<i32>} : memref<4x512xf32, #tpu.memory_space<vmem>>, vector<4x512xf32>,
    %c3_i32 = arith.constant 3 : i32
    %31 = arith.cmpi eq, %arg1, %c3_i32 : i32
    %32 = arith.extui %31 : i1 to i32
    %c0_i32_16 = arith.constant 0 : i32
    %33 = arith.cmpi ne, %32, %c0_i32_16 : i32
    scf.if %33 {
      %c0_17 = arith.constant 0 : index
      %c0_18 = arith.constant 0 : index
      %34 = vector.load %arg12[%c0_17, %c0_18] : memref<4x512xf32, #tpu.memory_space<vmem>>, vector<4x512xf32>
      %c0_19 = arith.constant 0 : index
      %c0_20 = arith.constant 0 : index
      %35 = vector.load %arg6[%c0_19, %c0_20] : memref<1x512xf32, #tpu.memory_space<vmem>>, vector<1x512xf32>
      %36 = vector.broadcast %35 : vector<1x512xf32> to vector<4x512xf32>
      %37 = arith.addf %34, %36 : vector<4x512xf32>
      %cst_21 = arith.constant 0.000000e+00 : f32
      %38 = vector.broadcast %cst_21 : f32 to vector<4x512xf32>
      %39 = arith.maximumf %37, %38 : vector<4x512xf32>
      %40 = arith.truncf %39 : vector<4x512xf32> to vector<4x512xbf16>
      %c0_22 = arith.constant 0 : index
      %c0_23 = arith.constant 0 : index
      %41 = vector.load %arg7[%c0_22, %c0_23] : memref<512x128xbf16, #tpu.memory_space<vmem>>, vector<512x128xbf16>
      %cst_24 = arith.constant dense<0.000000e+00> : vector<4x128xf32>
      %42 = tpu.matmul %40, %41, %cst_24 {dimension_numbers = #tpu.dot_dimension_numbers<[1], [0], [0], [1], [0, 0, 1, 1], [], []>} : vector<4x512xbf16>, vector<512x128xbf16>, vector<4x128xf32> -> vector<4x128xf32>
      %c0_25 = arith.constant 0 : index
      %c0_26 = arith.constant 0 : index
      %43 = vector.load %arg8[%c0_25, %c0_26] : memref<1x128xf32, #tpu.memory_space<vmem>>, vector<1x128xf32>
      %44 = vector.broadcast %43 : vector<1x128xf32> to vector<4x128xf32>
      %45 = arith.addf %42, %44 : vector<4x128xf32>
      %cst_27 = arith.constant 0.000000e+00 : f32
      %46 = vector.broadcast %cst_27 : f32 to vector<4x128xf32>
      %47 = arith.maximumf %45, %46 : vector<4x128xf32>
      %48 = arith.truncf %47 : vector<4x128xf32> to vector<4x128xbf16>
      %c0_28 = arith.constant 0 : index
      %c0_29 = arith.constant 0 : index
      %49 = vector.load %arg9[%c0_28, %c0_29] : memref<128x128xbf16, #tpu.memory_space<vmem>>, vector<128x128xbf16>
      %cst_30 = arith.constant dense<0.000000e+00> : vector<4x128xf32>
      %50 = tpu.matmul %48, %49, %cst_30 {dimension_numbers = #tpu.dot_dimension_numbers<[1], [0], [0], [1], [0, 0, 1, 1], [], []>} : vector<4x128xbf16>, vector<128x128xbf16>, vector<4x128xf32> -> vector<4x128xf32>
      %c0_31 = arith.constant 0 : index
      %c0_32 = arith.constant 0 : index
      %51 = vector.load %arg10[%c0_31, %c0_32] : memref<1x128xf32, #tpu.memory_space<vmem>>, vector<1x128xf32>
      %52 = vector.broadcast %51 : vector<1x128xf32> to vector<4x128xf32>
      %53 = arith.addf %50, %52 : vector<4x128xf32>
      %c0_33 = arith.constant 0 : index
      %c0_34 = arith.constant 0 : index
      %54 = vector.load %arg11[%c0_33, %c0_34] : memref<4x128xf32, #tpu.memory_space<vmem>>, vector<4x128xf32>
      tpu.vector_store %arg11[%c0_33, %c0_34], %53 {strides = array<i32>} : memref<4x128xf32, #tpu.memory_space<vmem>>, vector<4x128xf32>,
    } else {
    }
    return
  }
  func.func @transform_0(%arg0: i32, %arg1: i32) -> (i32, i32, i32) {
    %c0_i32 = arith.constant 0 : i32
    %c0_i32_0 = arith.constant 0 : i32
    return %arg0, %arg1, %c0_i32 : i32, i32, i32
  }
  func.func @transform_1(%arg0: i32, %arg1: i32) -> (i32, i32, i32) {
    %c0_i32 = arith.constant 0 : i32
    %c0_i32_0 = arith.constant 0 : i32
    %c0_i32_1 = arith.constant 0 : i32
    %c0_i32_2 = arith.constant 0 : i32
    return %c0_i32, %c0_i32_0, %c0_i32_1 : i32, i32, i32
  }
  func.func @transform_2(%arg0: i32, %arg1: i32) -> i32 {
    %c0_i32 = arith.constant 0 : i32
    %c0_i32_0 = arith.constant 0 : i32
    return %c0_i32 : i32
  }
  func.func @transform_3(%arg0: i32, %arg1: i32) -> (i32, i32) {
    %c0_i32 = arith.constant 0 : i32
    %c0_i32_0 = arith.constant 0 : i32
    return %arg1, %c0_i32 : i32, i32
  }
  func.func @transform_4(%arg0: i32, %arg1: i32) -> (i32, i32) {
    %c0_i32 = arith.constant 0 : i32
    %c0_i32_0 = arith.constant 0 : i32
    %c0_i32_1 = arith.constant 0 : i32
    return %c0_i32, %c0_i32_0 : i32, i32
  }
  func.func @transform_5(%arg0: i32, %arg1: i32) -> (i32, i32) {
    %c0_i32 = arith.constant 0 : i32
    %c0_i32_0 = arith.constant 0 : i32
    %c0_i32_1 = arith.constant 0 : i32
    return %c0_i32, %c0_i32_0 : i32, i32
  }
  func.func @transform_6(%arg0: i32, %arg1: i32) -> (i32, i32) {
    %c0_i32 = arith.constant 0 : i32
    %c0_i32_0 = arith.constant 0 : i32
    %c0_i32_1 = arith.constant 0 : i32
    return %c0_i32, %c0_i32_0 : i32, i32
  }
  func.func @transform_7(%arg0: i32, %arg1: i32) -> (i32, i32) {
    %c0_i32 = arith.constant 0 : i32
    %c0_i32_0 = arith.constant 0 : i32
    %c0_i32_1 = arith.constant 0 : i32
    return %c0_i32, %c0_i32_0 : i32, i32
  }
  func.func @transform_8(%arg0: i32, %arg1: i32) -> (i32, i32) {
    %c0_i32 = arith.constant 0 : i32
    %c0_i32_0 = arith.constant 0 : i32
    %c0_i32_1 = arith.constant 0 : i32
    return %c0_i32, %c0_i32_0 : i32, i32
  }
  func.func @transform_9(%arg0: i32, %arg1: i32) -> (i32, i32) {
    %c0_i32 = arith.constant 0 : i32
    %c0_i32_0 = arith.constant 0 : i32
    return %arg0, %c0_i32 : i32, i32
  }
}

</mosaic_0001>

<llo_original>
// kernel: tpu_custom_call.1
$region0: #{tpu_custom_call.1}
  #allocation0 [shape = 'u32[]', space=smem, size = 0x4, offset = 0x4, fixed_abs, tag = 'smem constant byte address 0x4 - core index']
  #allocation1 [shape = 'u32[144,128]{1,0:T(1,128)}', space=vmem, size = 0x12000, scoped, tag = 'internal scratch']
  #allocation2 [shape = 'f32[4,512]{1,0:T(4,128)}', space=vmem, size = 0x2000, scoped, tag = 'scratch operand']
  #allocation3 [shape = 'f32[1]{0:T(128)S(6)}', space=smem, size = 0x200, scoped, tag = 'scoped memory for tpu_custom_call.1']
  %s0 = inlined_call_operand.vmem [shape: f32[4,900,200], index: 0, kind: input, shape index: {}]
  %s1 = inlined_call_operand.vmem [shape: bf16[1,1,200], index: 1, kind: input, shape index: {}]
  %s2 = inlined_call_operand.<no memory space> [shape: f32[1], index: 2, kind: input, shape index: {}]
  %s3 = inlined_call_operand.vmem [shape: bf16[1024,512], index: 3, kind: input, shape index: {}]
  %s4 = inlined_call_operand.vmem [shape: f32[1,512], index: 4, kind: input, shape index: {}]
  %s5 = inlined_call_operand.vmem [shape: bf16[512,128], index: 5, kind: input, shape index: {}]
  %s6 = inlined_call_operand.vmem [shape: f32[1,128], index: 6, kind: input, shape index: {}]
  %s7 = inlined_call_operand.vmem [shape: bf16[128,128], index: 7, kind: input, shape index: {}]
  %s8 = inlined_call_operand.vmem [shape: f32[1,128], index: 8, kind: input, shape index: {}]
  %s9 = inlined_call_operand.hbm [shape: f32[4,128], index: 9, kind: output, shape index: {}]
  %s10 = sld [smem:[#allocation0]]
  $region107: #{tpu_custom_call.1} parent=0
    _
  %s12 = ssub.s32 1, %s10
  %s13 = scalar_select 0, %s12, %s10
  %14 = sst [smem:[#allocation3]] %s2
  $region1: #{tpu_custom_call.1} parent=0
    #allocation4 [shape = 'u8[2097152]{0}', space=vmem, size = 0x200000, scoped, tag = 'input window, operand 0']
    #allocation5 [shape = 'u8[2048]{0}', space=vmem, size = 0x800, scoped, tag = 'output window, operand 0, single buffered']
    #allocation6 [shape = 's32[2]{0}', space=sflag, size = 0x8, scoped, tag = 'scoped memory for tpu_custom_call.1']
    %15 = vsyncpa [#allocation6], 0
    loop: start=0, step=1, limit=6
    $region2: #{tpu_custom_call.1} parent=1 // loop_pre_header
      _
    $region3: #{tpu_custom_call.1} parent=1 // loop_header
      %s17 = sphi 0, %s21
      %p18 = scmp.ge.s32.totalorder %s17, 6
      %s24 = sphi 0, %s36
      %s25 = sphi 0, %s32
      %s26 = sphi 0, %s24
      %s27 = sphi 0, %s25
      %s28 = sphi 0, %s26
      %s29 = sphi 0, %s27
      %s41 = sphi 0, %s43
      %s44 = sphi 0, %s41
      %s45 = sphi 0, %s44
      %s61 = sphi 0, %s45
      %s65 = sphi 0, %s65
      %s67 = sphi 0, %s65
      %s68 = sphi 0, %s67
      %s82 = sphi 0, %s68
      %s86 = sphi 0, %s86
      %s88 = sphi 0, %s86
      %s89 = sphi 0, %s88
      %s103 = sphi 0, %s89
      %s109 = sphi 0, %s111
      %s112 = sphi 0, %s109
      %s113 = sphi 0, %s112
      %s129 = sphi 0, %s113
      %s133 = sphi 0, %s133
      %s135 = sphi 0, %s133
      %s136 = sphi 0, %s135
      %s150 = sphi 0, %s136
      %s154 = sphi 0, %s154
      %s156 = sphi 0, %s154
      %s157 = sphi 0, %s156
      %s171 = sphi 0, %s157
      %s175 = sphi 0, %s175
      %s177 = sphi 0, %s175
      %s178 = sphi 0, %s177
      %s192 = sphi 0, %s178
      %s196 = sphi 0, %s196
      %s198 = sphi 0, %s196
      %s199 = sphi 0, %s198
      %s213 = sphi 0, %s199
      %s217 = sphi 0, %s217
      %s219 = sphi 0, %s217
      %s220 = sphi 0, %s219
      %s234 = sphi 0, %s220
      %s240 = sphi 0, %s242
      %s243 = sphi 0, %s240
      %s244 = sphi 0, %s243
      %s260 = sphi 0, %s244
    $region4: #{tpu_custom_call.1} parent=1 // loop_header_branch
      %20 = sbr.rel (%p18) target = $region8
    $region5: #{tpu_custom_call.1} parent=1 // loop_body
      %s22 = ssub.s32 %s17, 1
      %s23 = ssub.s32 %s17, 2
      %s30 = sadd.s32 1, %s25
      %p31 = scmp.ge.s32.totalorder %s30, 4
      %s32 = scalar_select %p31, 0, %s30
      %s33 = sadd.s32 1, %s24
      %s34 = scalar_select %p31, %s33, %s24
      %p35 = scmp.ge.s32.totalorder %s34, 1
      %s36 = scalar_select %p35, 0, %s34
      %s37 = ssub.s32 %s24, %s36
      %s38 = ssub.s32 %s25, %s32
      %s39 = sor.u32 %s37, %s38
      %p40 = scmp.eq.s32.totalorder %s39, 0
      %s42 = sadd.s32 %s41, 1
      %s43 = scalar_select %p40, %s41, %s42
      %p46 = pneg %p40
      %p47 = scmp.eq.s32.totalorder %s17, 3
      %p48 = por %p46, %p47
      %p49 = scmp.ne.s32.totalorder %s41, %s44
      %p50 = scmp.eq.s32.totalorder %s17, 0
      %p51 = por %p49, %p50
      %p52 = scmp.ne.s32.totalorder %s41, %s44
      %p53 = scmp.eq.s32.totalorder %s22, 3
      %p54 = por %p52, %p53
      %p55 = scmp.ne.s32.totalorder %s44, %s45
      %p56 = scmp.eq.s32.totalorder %s22, 0
      %p57 = por %p55, %p56
      %p58 = scmp.ne.s32.totalorder %s44, %s45
      %p59 = scmp.eq.s32.totalorder %s23, 3
      %p60 = por %p58, %p59
      %p62 = scmp.ne.s32.totalorder %s45, %s61
      %p63 = scmp.eq.s32.totalorder %s23, 0
      %p64 = por %p62, %p63
      %s66 = sadd.s32 %s65, 1
      %p69 = scmp.eq.s32.totalorder %s17, 3
      %p70 = scmp.ne.s32.totalorder %s65, %s67
      %p71 = scmp.eq.s32.totalorder %s17, 0
      %p72 = por %p70, %p71
      %p73 = scmp.ne.s32.totalorder %s65, %s67
      %p74 = scmp.eq.s32.totalorder %s22, 3
      %p75 = por %p73, %p74
      %p76 = scmp.ne.s32.totalorder %s67, %s68
      %p77 = scmp.eq.s32.totalorder %s22, 0
      %p78 = por %p76, %p77
      %p79 = scmp.ne.s32.totalorder %s67, %s68
      %p80 = scmp.eq.s32.totalorder %s23, 3
      %p81 = por %p79, %p80
      %p83 = scmp.ne.s32.totalorder %s68, %s82
      %p84 = scmp.eq.s32.totalorder %s23, 0
      %p85 = por %p83, %p84
      %s87 = sadd.s32 %s86, 1
      %p90 = scmp.eq.s32.totalorder %s17, 3
      %p91 = scmp.ne.s32.totalorder %s86, %s88
      %p92 = scmp.eq.s32.totalorder %s17, 0
      %p93 = por %p91, %p92
      %p94 = scmp.ne.s32.totalorder %s86, %s88
      %p95 = scmp.eq.s32.totalorder %s22, 3
      %p96 = por %p94, %p95
      %p97 = scmp.ne.s32.totalorder %s88, %s89
      %p98 = scmp.eq.s32.totalorder %s22, 0
      %p99 = por %p97, %p98
      %p100 = scmp.ne.s32.totalorder %s88, %s89
      %p101 = scmp.eq.s32.totalorder %s23, 3
      %p102 = por %p100, %p101
      %p104 = scmp.ne.s32.totalorder %s89, %s103
      %p105 = scmp.eq.s32.totalorder %s23, 0
      %p106 = por %p104, %p105
      %s107 = ssub.s32 %s25, %s32
      %p108 = scmp.eq.s32.totalorder %s107, 0
      %s110 = sadd.s32 %s109, 1
      %s111 = scalar_select %p108, %s109, %s110
      %p114 = pneg %p108
      %p115 = scmp.eq.s32.totalorder %s17, 3
      %p116 = por %p114, %p115
      %p117 = scmp.ne.s32.totalorder %s109, %s112
      %p118 = scmp.eq.s32.totalorder %s17, 0
      %p119 = por %p117, %p118
      %p120 = scmp.ne.s32.totalorder %s109, %s112
      %p121 = scmp.eq.s32.totalorder %s22, 3
      %p122 = por %p120, %p121
      %p123 = scmp.ne.s32.totalorder %s112, %s113
      %p124 = scmp.eq.s32.totalorder %s22, 0
      %p125 = por %p123, %p124
      %p126 = scmp.ne.s32.totalorder %s112, %s113
      %p127 = scmp.eq.s32.totalorder %s23, 3
      %p128 = por %p126, %p127
      %p130 = scmp.ne.s32.totalorder %s113, %s129
      %p131 = scmp.eq.s32.totalorder %s23, 0
      %p132 = por %p130, %p131
      %s134 = sadd.s32 %s133, 1
      %p137 = scmp.eq.s32.totalorder %s17, 3
      %p138 = scmp.ne.s32.totalorder %s133, %s135
      %p139 = scmp.eq.s32.totalorder %s17, 0
      %p140 = por %p138, %p139
      %p141 = scmp.ne.s32.totalorder %s133, %s135
      %p142 = scmp.eq.s32.totalorder %s22, 3
      %p143 = por %p141, %p142
      %p144 = scmp.ne.s32.totalorder %s135, %s136
      %p145 = scmp.eq.s32.totalorder %s22, 0
      %p146 = por %p144, %p145
      %p147 = scmp.ne.s32.totalorder %s135, %s136
      %p148 = scmp.eq.s32.totalorder %s23, 3
      %p149 = por %p147, %p148
      %p151 = scmp.ne.s32.totalorder %s136, %s150
      %p152 = scmp.eq.s32.totalorder %s23, 0
      %p153 = por %p151, %p152
      %s155 = sadd.s32 %s154, 1
      %p158 = scmp.eq.s32.totalorder %s17, 3
      %p159 = scmp.ne.s32.totalorder %s154, %s156
      %p160 = scmp.eq.s32.totalorder %s17, 0
      %p161 = por %p159, %p160
      %p162 = scmp.ne.s32.totalorder %s154, %s156
      %p163 = scmp.eq.s32.totalorder %s22, 3
      %p164 = por %p162, %p163
      %p165 = scmp.ne.s32.totalorder %s156, %s157
      %p166 = scmp.eq.s32.totalorder %s22, 0
      %p167 = por %p165, %p166
      %p168 = scmp.ne.s32.totalorder %s156, %s157
      %p169 = scmp.eq.s32.totalorder %s23, 3
      %p170 = por %p168, %p169
      %p172 = scmp.ne.s32.totalorder %s157, %s171
      %p173 = scmp.eq.s32.totalorder %s23, 0
      %p174 = por %p172, %p173
      %s176 = sadd.s32 %s175, 1
      %p179 = scmp.eq.s32.totalorder %s17, 3
      %p180 = scmp.ne.s32.totalorder %s175, %s177
      %p181 = scmp.eq.s32.totalorder %s17, 0
      %p182 = por %p180, %p181
      %p183 = scmp.ne.s32.totalorder %s175, %s177
      %p184 = scmp.eq.s32.totalorder %s22, 3
      %p185 = por %p183, %p184
      %p186 = scmp.ne.s32.totalorder %s177, %s178
      %p187 = scmp.eq.s32.totalorder %s22, 0
      %p188 = por %p186, %p187
      %p189 = scmp.ne.s32.totalorder %s177, %s178
      %p190 = scmp.eq.s32.totalorder %s23, 3
      %p191 = por %p189, %p190
      %p193 = scmp.ne.s32.totalorder %s178, %s192
      %p194 = scmp.eq.s32.totalorder %s23, 0
      %p195 = por %p193, %p194
      %s197 = sadd.s32 %s196, 1
      %p200 = scmp.eq.s32.totalorder %s17, 3
      %p201 = scmp.ne.s32.totalorder %s196, %s198
      %p202 = scmp.eq.s32.totalorder %s17, 0
      %p203 = por %p201, %p202
      %p204 = scmp.ne.s32.totalorder %s196, %s198
      %p205 = scmp.eq.s32.totalorder %s22, 3
      %p206 = por %p204, %p205
      %p207 = scmp.ne.s32.totalorder %s198, %s199
      %p208 = scmp.eq.s32.totalorder %s22, 0
      %p209 = por %p207, %p208
      %p210 = scmp.ne.s32.totalorder %s198, %s199
      %p211 = scmp.eq.s32.totalorder %s23, 3
      %p212 = por %p210, %p211
      %p214 = scmp.ne.s32.totalorder %s199, %s213
      %p215 = scmp.eq.s32.totalorder %s23, 0
      %p216 = por %p214, %p215
      %s218 = sadd.s32 %s217, 1
      %p221 = scmp.eq.s32.totalorder %s17, 3
      %p222 = scmp.ne.s32.totalorder %s217, %s219
      %p223 = scmp.eq.s32.totalorder %s17, 0
      %p224 = por %p222, %p223
      %p225 = scmp.ne.s32.totalorder %s217, %s219
      %p226 = scmp.eq.s32.totalorder %s22, 3
      %p227 = por %p225, %p226
      %p228 = scmp.ne.s32.totalorder %s219, %s220
      %p229 = scmp.eq.s32.totalorder %s22, 0
      %p230 = por %p228, %p229
      %p231 = scmp.ne.s32.totalorder %s219, %s220
      %p232 = scmp.eq.s32.totalorder %s23, 3
      %p233 = por %p231, %p232
      %p235 = scmp.ne.s32.totalorder %s220, %s234
      %p236 = scmp.eq.s32.totalorder %s23, 0
      %p237 = por %p235, %p236
      %s238 = ssub.s32 %s24, %s36
      %p239 = scmp.eq.s32.totalorder %s238, 0
      %s241 = sadd.s32 %s240, 1
      %s242 = scalar_select %p239, %s240, %s241
      %p245 = pneg %p239
      %p246 = scmp.eq.s32.totalorder %s17, 3
      %p247 = por %p245, %p246
      %p248 = scmp.ne.s32.totalorder %s240, %s243
      %p249 = scmp.eq.s32.totalorder %s17, 0
      %p250 = por %p248, %p249
      %p251 = scmp.ne.s32.totalorder %s240, %s243
      %p252 = scmp.eq.s32.totalorder %s22, 3
      %p253 = por %p251, %p252
      %p254 = scmp.ne.s32.totalorder %s243, %s244
      %p255 = scmp.eq.s32.totalorder %s22, 0
      %p256 = por %p254, %p255
      %p257 = scmp.ne.s32.totalorder %s243, %s244
      %p258 = scmp.eq.s32.totalorder %s23, 3
      %p259 = por %p257, %p258
      %p261 = scmp.ne.s32.totalorder %s244, %s260
      %p262 = scmp.eq.s32.totalorder %s23, 0
      %p263 = por %p261, %p262
      %p264 = scmp.le.s32.totalorder 1, %s17
      %p265 = scmp.lt.s32.totalorder %s17, 5
      %p266 = pnand %p264, %p265
      %p267 = pneg %p266
      // Predicated region
      $region9: #{tpu_custom_call.1} parent=5 // pred_check
        _
      $region10: #{tpu_custom_call.1} parent=5 // pred_check_branch
        %269 = sbr.rel (%p266) target = $region12
      $region11: #{tpu_custom_call.1} parent=5 // pred_region
        %s270 = ssub.s32 %s17, 1
        // Predicated region
        $region13: #{tpu_custom_call.1} parent=11 // pred_check
          %p271 = pneg %p78
        $region14: #{tpu_custom_call.1} parent=11 // pred_check_branch
          %273 = sbr.rel (%p271) target = $region16
        $region15: #{tpu_custom_call.1} parent=11 // pred_region
          _
        $region16: #{tpu_custom_call.1} parent=11 // pred_fallthru
          _
        // Predicated region
        $region17: #{tpu_custom_call.1} parent=11 // pred_check
          %p274 = pneg %p99
        $region18: #{tpu_custom_call.1} parent=11 // pred_check_branch
          %276 = sbr.rel (%p274) target = $region20
        $region19: #{tpu_custom_call.1} parent=11 // pred_region
          _
        $region20: #{tpu_custom_call.1} parent=11 // pred_fallthru
          _
        // Predicated region
        $region21: #{tpu_custom_call.1} parent=11 // pred_check
          %p277 = pneg %p146
        $region22: #{tpu_custom_call.1} parent=11 // pred_check_branch
          %279 = sbr.rel (%p277) target = $region24
        $region23: #{tpu_custom_call.1} parent=11 // pred_region
          _
        $region24: #{tpu_custom_call.1} parent=11 // pred_fallthru
          _
        // Predicated region
        $region25: #{tpu_custom_call.1} parent=11 // pred_check
          %p280 = pneg %p167
        $region26: #{tpu_custom_call.1} parent=11 // pred_check_branch
          %282 = sbr.rel (%p280) target = $region28
        $region27: #{tpu_custom_call.1} parent=11 // pred_region
          _
        $region28: #{tpu_custom_call.1} parent=11 // pred_fallthru
          _
        // Predicated region
        $region29: #{tpu_custom_call.1} parent=11 // pred_check
          %p283 = pneg %p188
        $region30: #{tpu_custom_call.1} parent=11 // pred_check_branch
          %285 = sbr.rel (%p283) target = $region32
        $region31: #{tpu_custom_call.1} parent=11 // pred_region
          _
        $region32: #{tpu_custom_call.1} parent=11 // pred_fallthru
          _
        // Predicated region
        $region33: #{tpu_custom_call.1} parent=11 // pred_check
          %p286 = pneg %p209
        $region34: #{tpu_custom_call.1} parent=11 // pred_check_branch
          %288 = sbr.rel (%p286) target = $region36
        $region35: #{tpu_custom_call.1} parent=11 // pred_region
          _
        $region36: #{tpu_custom_call.1} parent=11 // pred_fallthru
          _
        // Predicated region
        $region37: #{tpu_custom_call.1} parent=11 // pred_check
          %p289 = pneg %p230
        $region38: #{tpu_custom_call.1} parent=11 // pred_check_branch
          %291 = sbr.rel (%p289) target = $region40
        $region39: #{tpu_custom_call.1} parent=11 // pred_region
          _
        $region40: #{tpu_custom_call.1} parent=11 // pred_fallthru
          _
      $region12: #{tpu_custom_call.1} parent=5 // pred_fallthru
        _
      %p292 = scmp.lt.s32.totalorder %s17, 4
      // Predicated region
      $region41: #{tpu_custom_call.1} parent=5 // pred_check
        %p293 = pneg %p292
      $region42: #{tpu_custom_call.1} parent=5 // pred_check_branch
        %295 = sbr.rel (%p293) target = $region44
      $region43: #{tpu_custom_call.1} parent=5 // pred_region
        // Predicated region
        $region45: #{tpu_custom_call.1} parent=43 // pred_check
          %p296 = pneg %p51
        $region46: #{tpu_custom_call.1} parent=43 // pred_check_branch
          %298 = sbr.rel (%p296) target = $region48
        $region47: #{tpu_custom_call.1} parent=43 // pred_region
          %s299 = sand.u32 %s41, 1
          %s300 = sand.u32 %s41, 1
          %s301 = smul.addr %s300, 2048
          %s302 = scalar_lea.vmem [#allocation4], %s301
          %s303 = smul.u32 4, %s24
          %s304 = smul.u32 32, %s25
          %s305 = ssub.s32 113, %s304
          %p306 = scmp.lt.s32.totalorder %s305, 32
          %s307 = scalar_select %p306, %s305, 32
          %s308 = smul.u32 512, %s307
          %s309 = smul.u32 %s308, 2
          %p310 = scmp.ne.s32.totalorder 0, %s309
          %s311 = smul.addr %s304, 2
          %s312 = smul.addr %s303, 226
          %s313 = sadd.s32 %s311, %s312
          %s314 = smul.addr %s313, 8
          %s315 = scalar_lea.vmem %s0, %s314
          // Predicated region
          $region49: #{tpu_custom_call.1} parent=47 // pred_check
            %p316 = pneg %p310
          $region50: #{tpu_custom_call.1} parent=47 // pred_check_branch
            %318 = sbr.rel (%p316) target = $region52
          $region51: #{tpu_custom_call.1} parent=47 // pred_region
            // Predicated region
            $region53: #{tpu_custom_call.1} parent=51 // pred_check
              _
            $region54: #{tpu_custom_call.1} parent=51 // pred_check_branch
              %320 = sbr.rel (0) target = $region56
            $region55: #{tpu_custom_call.1} parent=51 // pred_region
              %s321 = sshrl.u32 %s307, 3
              // While loop
              $region57: #{tpu_custom_call.1} parent=55 // loop_pre_header
                _
              $region58: #{tpu_custom_call.1} parent=55 // loop_header
                %s323 = sphi 0, %s325
                %p324 = scmp.ge.s32.totalorder %s323, %s321
                %s328 = sphi 0, %s461
                %s329 = sphi %s315, %s464
                %s330 = sphi %s302, %s465
              $region59: #{tpu_custom_call.1} parent=55 // loop_header_branch
                %327 = sbr.rel (%p324) target = $region63
              $region60: #{tpu_custom_call.1} parent=55 // loop_body
                %v331 = vld [vmem:[%s329] sm:$0xff]
                %332 = vst [vmem:[%s330] sm:$0xff] %v331
                %v333 = vld [vmem:[%s329 + $0x10] sm:$0xff]
                %334 = vst [vmem:[%s330 + $0x10] sm:$0xff] %v333
                %v335 = vld [vmem:[%s329 + $0x20] sm:$0xff]
                %336 = vst [vmem:[%s330 + $0x20] sm:$0xff] %v335
                %v337 = vld [vmem:[%s329 + $0x30] sm:$0xff]
                %338 = vst [vmem:[%s330 + $0x30] sm:$0xff] %v337
                %v339 = vld [vmem:[%s329 + $0x40] sm:$0xff]
                %340 = vst [vmem:[%s330 + $0x40] sm:$0xff] %v339
                %v341 = vld [vmem:[%s329 + $0x50] sm:$0xff]
                %342 = vst [vmem:[%s330 + $0x50] sm:$0xff] %v341
                %v343 = vld [vmem:[%s329 + $0x60] sm:$0xff]
                %344 = vst [vmem:[%s330 + $0x60] sm:$0xff] %v343
                %v345 = vld [vmem:[%s329 + $0x70] sm:$0xff]
                %346 = vst [vmem:[%s330 + $0x70] sm:$0xff] %v345
                %v347 = vld [vmem:[%s329 + $0x8] sm:$0xff]
                %348 = vst [vmem:[%s330 + $0x8] sm:$0xff] %v347
                %v349 = vld [vmem:[%s329 + $0x18] sm:$0xff]
                %350 = vst [vmem:[%s330 + $0x18] sm:$0xff] %v349
                %v351 = vld [vmem:[%s329 + $0x28] sm:$0xff]
                %352 = vst [vmem:[%s330 + $0x28] sm:$0xff] %v351
                %v353 = vld [vmem:[%s329 + $0x38] sm:$0xff]
                %354 = vst [vmem:[%s330 + $0x38] sm:$0xff] %v353
                %v355 = vld [vmem:[%s329 + $0x48] sm:$0xff]
                %356 = vst [vmem:[%s330 + $0x48] sm:$0xff] %v355
                %v357 = vld [vmem:[%s329 + $0x58] sm:$0xff]
                %358 = vst [vmem:[%s330 + $0x58] sm:$0xff] %v357
                %v359 = vld [vmem:[%s329 + $0x68] sm:$0xff]
                %360 = vst [vmem:[%s330 + $0x68] sm:$0xff] %v359
                %v361 = vld [vmem:[%s329 + $0x78] sm:$0xff]
                %362 = vst [vmem:[%s330 + $0x78] sm:$0xff] %v361
                %v363 = vld [vmem:[%s329 + $0x710] sm:$0xff]
                %364 = vst [vmem:[%s330 + $0x200] sm:$0xff] %v363
                %v365 = vld [vmem:[%s329 + $0x720] sm:$0xff]
                %366 = vst [vmem:[%s330 + $0x210] sm:$0xff] %v365
                %v367 = vld [vmem:[%s329 + $0x730] sm:$0xff]
                %368 = vst [vmem:[%s330 + $0x220] sm:$0xff] %v367
                %v369 = vld [vmem:[%s329 + $0x740] sm:$0xff]
                %370 = vst [vmem:[%s330 + $0x230] sm:$0xff] %v369
                %v371 = vld [vmem:[%s329 + $0x750] sm:$0xff]
                %372 = vst [vmem:[%s330 + $0x240] sm:$0xff] %v371
                %v373 = vld [vmem:[%s329 + $0x760] sm:$0xff]
                %374 = vst [vmem:[%s330 + $0x250] sm:$0xff] %v373
                %v375 = vld [vmem:[%s329 + $0x770] sm:$0xff]
                %376 = vst [vmem:[%s330 + $0x260] sm:$0xff] %v375
                %v377 = vld [vmem:[%s329 + $0x780] sm:$0xff]
                %378 = vst [vmem:[%s330 + $0x270] sm:$0xff] %v377
                %v379 = vld [vmem:[%s329 + $0x718] sm:$0xff]
                %380 = vst [vmem:[%s330 + $0x208] sm:$0xff] %v379
                %v381 = vld [vmem:[%s329 + $0x728] sm:$0xff]
                %382 = vst [vmem:[%s330 + $0x218] sm:$0xff] %v381
                %v383 = vld [vmem:[%s329 + $0x738] sm:$0xff]
                %384 = vst [vmem:[%s330 + $0x228] sm:$0xff] %v383
                %v385 = vld [vmem:[%s329 + $0x748] sm:$0xff]
                %386 = vst [vmem:[%s330 + $0x238] sm:$0xff] %v385
                %v387 = vld [vmem:[%s329 + $0x758] sm:$0xff]
                %388 = vst [vmem:[%s330 + $0x248] sm:$0xff] %v387
                %v389 = vld [vmem:[%s329 + $0x768] sm:$0xff]
                %390 = vst [vmem:[%s330 + $0x258] sm:$0xff] %v389
                %v391 = vld [vmem:[%s329 + $0x778] sm:$0xff]
                %392 = vst [vmem:[%s330 + $0x268] sm:$0xff] %v391
                %v393 = vld [vmem:[%s329 + $0x788] sm:$0xff]
                %394 = vst [vmem:[%s330 + $0x278] sm:$0xff] %v393
                %v395 = vld [vmem:[%s329 + $0xe20] sm:$0xff]
                %396 = vst [vmem:[%s330 + $0x400] sm:$0xff] %v395
                %v397 = vld [vmem:[%s329 + $0xe30] sm:$0xff]
                %398 = vst [vmem:[%s330 + $0x410] sm:$0xff] %v397
                %v399 = vld [vmem:[%s329 + $0xe40] sm:$0xff]
                %400 = vst [vmem:[%s330 + $0x420] sm:$0xff] %v399
                %v401 = vld [vmem:[%s329 + $0xe50] sm:$0xff]
                %402 = vst [vmem:[%s330 + $0x430] sm:$0xff] %v401
                %v403 = vld [vmem:[%s329 + $0xe60] sm:$0xff]
                %404 = vst [vmem:[%s330 + $0x440] sm:$0xff] %v403
                %v405 = vld [vmem:[%s329 + $0xe70] sm:$0xff]
                %406 = vst [vmem:[%s330 + $0x450] sm:$0xff] %v405
                %v407 = vld [vmem:[%s329 + $0xe80] sm:$0xff]
                %408 = vst [vmem:[%s330 + $0x460] sm:$0xff] %v407
                %v409 = vld [vmem:[%s329 + $0xe90] sm:$0xff]
                %410 = vst [vmem:[%s330 + $0x470] sm:$0xff] %v409
                %v411 = vld [vmem:[%s329 + $0xe28] sm:$0xff]
                %412 = vst [vmem:[%s330 + $0x408] sm:$0xff] %v411
                %v413 = vld [vmem:[%s329 + $0xe38] sm:$0xff]
                %414 = vst [vmem:[%s330 + $0x418] sm:$0xff] %v413
                %v415 = vld [vmem:[%s329 + $0xe48] sm:$0xff]
                %416 = vst [vmem:[%s330 + $0x428] sm:$0xff] %v415
                %v417 = vld [vmem:[%s329 + $0xe58] sm:$0xff]
                %418 = vst [vmem:[%s330 + $0x438] sm:$0xff] %v417
                %v419 = vld [vmem:[%s329 + $0xe68] sm:$0xff]
                %420 = vst [vmem:[%s330 + $0x448] sm:$0xff] %v419
                %v421 = vld [vmem:[%s329 + $0xe78] sm:$0xff]
                %422 = vst [vmem:[%s330 + $0x458] sm:$0xff] %v421
                %v423 = vld [vmem:[%s329 + $0xe88] sm:$0xff]
                %424 = vst [vmem:[%s330 + $0x468] sm:$0xff] %v423
                %v425 = vld [vmem:[%s329 + $0xe98] sm:$0xff]
                %426 = vst [vmem:[%s330 + $0x478] sm:$0xff] %v425
                %v427 = vld [vmem:[%s329 + $0x1530] sm:$0xff]
                %428 = vst [vmem:[%s330 + $0x600] sm:$0xff] %v427
                %v429 = vld [vmem:[%s329 + $0x1540] sm:$0xff]
                %430 = vst [vmem:[%s330 + $0x610] sm:$0xff] %v429
                %v431 = vld [vmem:[%s329 + $0x1550] sm:$0xff]
                %432 = vst [vmem:[%s330 + $0x620] sm:$0xff] %v431
                %v433 = vld [vmem:[%s329 + $0x1560] sm:$0xff]
                %434 = vst [vmem:[%s330 + $0x630] sm:$0xff] %v433
                %v435 = vld [vmem:[%s329 + $0x1570] sm:$0xff]
                %436 = vst [vmem:[%s330 + $0x640] sm:$0xff] %v435
                %v437 = vld [vmem:[%s329 + $0x1580] sm:$0xff]
                %438 = vst [vmem:[%s330 + $0x650] sm:$0xff] %v437
                %v439 = vld [vmem:[%s329 + $0x1590] sm:$0xff]
                %440 = vst [vmem:[%s330 + $0x660] sm:$0xff] %v439
                %v441 = vld [vmem:[%s329 + $0x15a0] sm:$0xff]
                %442 = vst [vmem:[%s330 + $0x670] sm:$0xff] %v441
                %v443 = vld [vmem:[%s329 + $0x1538] sm:$0xff]
                %444 = vst [vmem:[%s330 + $0x608] sm:$0xff] %v443
                %v445 = vld [vmem:[%s329 + $0x1548] sm:$0xff]
                %446 = vst [vmem:[%s330 + $0x618] sm:$0xff] %v445
                %v447 = vld [vmem:[%s329 + $0x1558] sm:$0xff]
                %448 = vst [vmem:[%s330 + $0x628] sm:$0xff] %v447
                %v449 = vld [vmem:[%s329 + $0x1568] sm:$0xff]
                %450 = vst [vmem:[%s330 + $0x638] sm:$0xff] %v449
                %v451 = vld [vmem:[%s329 + $0x1578] sm:$0xff]
                %452 = vst [vmem:[%s330 + $0x648] sm:$0xff] %v451
                %v453 = vld [vmem:[%s329 + $0x1588] sm:$0xff]
                %454 = vst [vmem:[%s330 + $0x658] sm:$0xff] %v453
                %v455 = vld [vmem:[%s329 + $0x1598] sm:$0xff]
                %456 = vst [vmem:[%s330 + $0x668] sm:$0xff] %v455
                %v457 = vld [vmem:[%s329 + $0x15a8] sm:$0xff]
                %458 = vst [vmem:[%s330 + $0x678] sm:$0xff] %v457
                %s459 = sadd.s32 1, %s328
                %p460 = scmp.ge.s32.totalorder %s459, %s321
                %s461 = scalar_select %p460, 0, %s459
                %s462 = smul.u32 %s461, 128
                %s463 = smul.u32 %s461, 128
                %s464 = scalar_lea.vmem %s315, %s462
                %s465 = scalar_lea.vmem %s302, %s463 [#allocation4]
              $region61: #{tpu_custom_call.1} parent=55 // loop_footer
                %s325 = sadd.s32 %s323, 1
              $region62: #{tpu_custom_call.1} parent=55 // loop_footer_branch
                %322 = sbr.rel target = $region58
              $region63: #{tpu_custom_call.1} parent=55 // loop_exit
                _
              %s466 = sshrl.u32 %s307, 3
              %s467 = sand.u32 %s307, 7
              %s468 = smul.u32 %s466, 8
              %s469 = smul.u32 16, %s468
              %s470 = scalar_lea.vmem %s315, %s469
              %s471 = smul.u32 16, %s468
              %s472 = scalar_lea.vmem %s302, %s471 [#allocation4]
              // While loop
              $region64: #{tpu_custom_call.1} parent=55 // loop_pre_header
                _
              $region65: #{tpu_custom_call.1} parent=55 // loop_header
                %s474 = sphi 0, %s476
                %p475 = scmp.ge.s32.totalorder %s474, %s467
                %s479 = sphi 0, %s500
                %s480 = sphi %s470, %s503
                %s481 = sphi %s472, %s504
              $region66: #{tpu_custom_call.1} parent=55 // loop_header_branch
                %478 = sbr.rel (%p475) target = $region70
              $region67: #{tpu_custom_call.1} parent=55 // loop_body
                %v482 = vld [vmem:[%s480] sm:$0xff]
                %483 = vst [vmem:[%s481] sm:$0xff] %v482
                %v484 = vld [vmem:[%s480 + $0x8] sm:$0xff]
                %485 = vst [vmem:[%s481 + $0x8] sm:$0xff] %v484
                %v486 = vld [vmem:[%s480 + $0x710] sm:$0xff]
                %487 = vst [vmem:[%s481 + $0x200] sm:$0xff] %v486
                %v488 = vld [vmem:[%s480 + $0x718] sm:$0xff]
                %489 = vst [vmem:[%s481 + $0x208] sm:$0xff] %v488
                %v490 = vld [vmem:[%s480 + $0xe20] sm:$0xff]
                %491 = vst [vmem:[%s481 + $0x400] sm:$0xff] %v490
                %v492 = vld [vmem:[%s480 + $0xe28] sm:$0xff]
                %493 = vst [vmem:[%s481 + $0x408] sm:$0xff] %v492
                %v494 = vld [vmem:[%s480 + $0x1530] sm:$0xff]
                %495 = vst [vmem:[%s481 + $0x600] sm:$0xff] %v494
                %v496 = vld [vmem:[%s480 + $0x1538] sm:$0xff]
                %497 = vst [vmem:[%s481 + $0x608] sm:$0xff] %v496
                %s498 = sadd.s32 1, %s479
                %p499 = scmp.ge.s32.totalorder %s498, %s467
                %s500 = scalar_select %p499, 0, %s498
                %s501 = smul.u32 %s500, 16
                %s502 = smul.u32 %s500, 16
                %s503 = scalar_lea.vmem %s470, %s501
                %s504 = scalar_lea.vmem %s472, %s502 [#allocation4]
              $region68: #{tpu_custom_call.1} parent=55 // loop_footer
                %s476 = sadd.s32 %s474, 1
              $region69: #{tpu_custom_call.1} parent=55 // loop_footer_branch
                %473 = sbr.rel target = $region65
              $region70: #{tpu_custom_call.1} parent=55 // loop_exit
                _
            $region56: #{tpu_custom_call.1} parent=51 // pred_fallthru
              _
            // Predicated region
            $region71: #{tpu_custom_call.1} parent=51 // pred_check
              _
            $region72: #{tpu_custom_call.1} parent=51 // pred_check_branch
              %506 = sbr.rel target = $region74
            $region73: #{tpu_custom_call.1} parent=51 // pred_region
              _
            $region74: #{tpu_custom_call.1} parent=51 // pred_fallthru
              _
          $region52: #{tpu_custom_call.1} parent=47 // pred_fallthru
            _
          %507 = vnop
        $region48: #{tpu_custom_call.1} parent=43 // pred_fallthru
          _
        // Predicated region
        $region75: #{tpu_custom_call.1} parent=43 // pred_check
          %p508 = pneg %p119
        $region76: #{tpu_custom_call.1} parent=43 // pred_check_branch
          %510 = sbr.rel (%p508) target = $region78
        $region77: #{tpu_custom_call.1} parent=43 // pred_region
          %s511 = smul.u32 32, %s25
          %p512 = scmp.lt.s32.totalorder %s511, 127
          %s513 = scalar_select %p512, %s511, 127
          %s514 = smul.addr %s513, 4
          %s515 = smul.addr %s514, 4
          %s516 = scalar_lea.vmem %s3, %s515
          %s517 = smul.u32 32, %s25
        $region78: #{tpu_custom_call.1} parent=43 // pred_fallthru
          _
      $region44: #{tpu_custom_call.1} parent=5 // pred_fallthru
        _
      %p518 = scmp.le.s32.totalorder 1, %s17
      %p519 = scmp.lt.s32.totalorder %s17, 5
      %p520 = pnand %p518, %p519
      %p521 = pneg %p520
      // Predicated region
      $region79: #{tpu_custom_call.1} parent=5 // pred_check
        _
      $region80: #{tpu_custom_call.1} parent=5 // pred_check_branch
        %523 = sbr.rel (%p520) target = $region82
      $region81: #{tpu_custom_call.1} parent=5 // pred_region
        %s524 = ssub.s32 %s17, 1
        %s525 = sand.u32 %s44, 1
        %s526 = sand.u32 %s44, 1
        %s527 = smul.addr %s526, 2048
        %s528 = scalar_lea.vmem [#allocation4], %s527
        // Predicated region
        $region83: #{tpu_custom_call.1} parent=81 // pred_check
          %p529 = pneg %p57
        $region84: #{tpu_custom_call.1} parent=81 // pred_check_branch
          %531 = sbr.rel (%p529) target = $region86
        $region85: #{tpu_custom_call.1} parent=81 // pred_region
          _
        $region86: #{tpu_custom_call.1} parent=81 // pred_fallthru
          _
        %s532 = sand.u32 %s44, 1
        %s533 = sand.u32 %s44, 1
        %s534 = smul.addr %s533, 2048
        %s535 = scalar_lea.vmem [#allocation4], %s534
        %p536 = pneg %p57
        %p537 = pneg %p54
        %p538 = pneg %p78
        %p539 = pneg %p75
        %p540 = pneg %p99
        %p541 = pneg %p96
        %s542 = smul.u32 32, %s27
        %p543 = scmp.lt.s32.totalorder %s542, 127
        %s544 = scalar_select %p543, %s542, 127
        %s545 = smul.addr %s544, 4
        %s546 = smul.addr %s545, 4
        %s547 = scalar_lea.vmem %s3, %s546
        %p548 = pneg %p125
        %p549 = pneg %p122
        %p550 = pneg %p146
        %p551 = pneg %p143
        %p552 = pneg %p167
        %p553 = pneg %p164
        %p554 = pneg %p188
        %p555 = pneg %p185
        %p556 = pneg %p209
        %p557 = pneg %p206
        %p558 = pneg %p230
        %p559 = pneg %p227
        %p560 = pneg %p256
        %p561 = pneg %p253
        %s562 = smul.u32 4, %s26
        %s563 = smul.u32 32, %s27
        %s564 = ssub.s32 113, %s563
        %p565 = scmp.lt.s32.totalorder %s564, 32
        %s566 = scalar_select %p565, %s564, 32
        %s567 = smul.u32 512, %s566
        %s568 = smul.u32 %s567, 2
        %s569 = smul.u32 32, %s27
        %p570 = scmp.lt.s32.totalorder %s569, 127
        %s571 = scalar_select %p570, %s569, 127
        %s572 = smul.addr %s571, 4
        %s573 = smul.addr %s572, 4
        %s574 = scalar_lea.vmem %s3, %s573
        %s575 = smul.u32 32, %s27
        %p577 = scmp.eq.s32.totalorder %s27, 0
        // Predicated region
        $region87: #{tpu_custom_call.1} parent=81 // pred_check
          %p578 = pneg %p577
        $region88: #{tpu_custom_call.1} parent=81 // pred_check_branch
          %580 = sbr.rel (%p578) target = $region90
        $region89: #{tpu_custom_call.1} parent=81 // pred_region
          %581 = vst [vmem:[#allocation2] sm:$0xff] 0.0
          %582 = vst [vmem:[#allocation2 + $0x8] sm:$0xff] 0.0
        $region90: #{tpu_custom_call.1} parent=81 // pred_fallthru
          _
        %v583 = vld [vmem:[%s528] sm:$0xff]
        %v584 = vld [vmem:[%s528 + $0x8] sm:$0xff]
        %v585 = vld [vmem:[%s528 + $0x10] sm:$0xff]
        %v586 = vld [vmem:[%s528 + $0x18] sm:$0xff]
        %v587 = vld [vmem:[%s528 + $0x20] sm:$0xff]
        %v588 = vld [vmem:[%s528 + $0x28] sm:$0xff]
        %v589 = vld [vmem:[%s528 + $0x30] sm:$0xff]
        %v590 = vld [vmem:[%s528 + $0x38] sm:$0xff]
        %v591 = vld [vmem:[%s528 + $0x40] sm:$0xff]
        %v592 = vld [vmem:[%s528 + $0x48] sm:$0xff]
        %v593 = vld [vmem:[%s528 + $0x50] sm:$0xff]
        %v594 = vld [vmem:[%s528 + $0x58] sm:$0xff]
        %v595 = vld [vmem:[%s528 + $0x60] sm:$0xff]
        %v596 = vld [vmem:[%s528 + $0x68] sm:$0xff]
        %v597 = vld [vmem:[%s528 + $0x70] sm:$0xff]
        %v598 = vld [vmem:[%s528 + $0x78] sm:$0xff]
        %v599 = vld [vmem:[%s528 + $0x80] sm:$0xff]
        %v600 = vld [vmem:[%s528 + $0x88] sm:$0xff]
        %v601 = vld [vmem:[%s528 + $0x90] sm:$0xff]
        %v602 = vld [vmem:[%s528 + $0x98] sm:$0xff]
        %v603 = vld [vmem:[%s528 + $0xa0] sm:$0xff]
        %v604 = vld [vmem:[%s528 + $0xa8] sm:$0xff]
        %v605 = vld [vmem:[%s528 + $0xb0] sm:$0xff]
        %v606 = vld [vmem:[%s528 + $0xb8] sm:$0xff]
        %v607 = vld [vmem:[%s528 + $0xc0] sm:$0xff]
        %v608 = vld [vmem:[%s528 + $0xc8] sm:$0xff]
        %v609 = vld [vmem:[%s528 + $0xd0] sm:$0xff]
        %v610 = vld [vmem:[%s528 + $0xd8] sm:$0xff]
        %v611 = vld [vmem:[%s528 + $0xe0] sm:$0xff]
        %v612 = vld [vmem:[%s528 + $0xe8] sm:$0xff]
        %v613 = vld [vmem:[%s528 + $0xf0] sm:$0xff]
        %v614 = vld [vmem:[%s528 + $0xf8] sm:$0xff]
        %v615 = vld [vmem:[%s528 + $0x100] sm:$0xff]
        %v616 = vld [vmem:[%s528 + $0x108] sm:$0xff]
        %v617 = vld [vmem:[%s528 + $0x110] sm:$0xff]
        %v618 = vld [vmem:[%s528 + $0x118] sm:$0xff]
        %v619 = vld [vmem:[%s528 + $0x120] sm:$0xff]
        %v620 = vld [vmem:[%s528 + $0x128] sm:$0xff]
        %v621 = vld [vmem:[%s528 + $0x130] sm:$0xff]
        %v622 = vld [vmem:[%s528 + $0x138] sm:$0xff]
        %v623 = vld [vmem:[%s528 + $0x140] sm:$0xff]
        %v624 = vld [vmem:[%s528 + $0x148] sm:$0xff]
        %v625 = vld [vmem:[%s528 + $0x150] sm:$0xff]
        %v626 = vld [vmem:[%s528 + $0x158] sm:$0xff]
        %v627 = vld [vmem:[%s528 + $0x160] sm:$0xff]
        %v628 = vld [vmem:[%s528 + $0x168] sm:$0xff]
        %v629 = vld [vmem:[%s528 + $0x170] sm:$0xff]
        %v630 = vld [vmem:[%s528 + $0x178] sm:$0xff]
        %v631 = vld [vmem:[%s528 + $0x180] sm:$0xff]
        %v632 = vld [vmem:[%s528 + $0x188] sm:$0xff]
        %v633 = vld [vmem:[%s528 + $0x190] sm:$0xff]
        %v634 = vld [vmem:[%s528 + $0x198] sm:$0xff]
        %v635 = vld [vmem:[%s528 + $0x1a0] sm:$0xff]
        %v636 = vld [vmem:[%s528 + $0x1a8] sm:$0xff]
        %v637 = vld [vmem:[%s528 + $0x1b0] sm:$0xff]
        %v638 = vld [vmem:[%s528 + $0x1b8] sm:$0xff]
        %v639 = vld [vmem:[%s528 + $0x1c0] sm:$0xff]
        %v640 = vld [vmem:[%s528 + $0x1c8] sm:$0xff]
        %v641 = vld [vmem:[%s528 + $0x1d0] sm:$0xff]
        %v642 = vld [vmem:[%s528 + $0x1d8] sm:$0xff]
        %v643 = vld [vmem:[%s528 + $0x1e0] sm:$0xff]
        %v644 = vld [vmem:[%s528 + $0x1e8] sm:$0xff]
        %v645 = vld [vmem:[%s528 + $0x1f0] sm:$0xff]
        %v646 = vld [vmem:[%s528 + $0x1f8] sm:$0xff]
        %v647 = vld [vmem:[%s528 + $0x200] sm:$0xff]
        %v648 = vld [vmem:[%s528 + $0x208] sm:$0xff]
        %v649 = vld [vmem:[%s528 + $0x210] sm:$0xff]
        %v650 = vld [vmem:[%s528 + $0x218] sm:$0xff]
        %v651 = vld [vmem:[%s528 + $0x220] sm:$0xff]
        %v652 = vld [vmem:[%s528 + $0x228] sm:$0xff]
        %v653 = vld [vmem:[%s528 + $0x230] sm:$0xff]
        %v654 = vld [vmem:[%s528 + $0x238] sm:$0xff]
        %v655 = vld [vmem:[%s528 + $0x240] sm:$0xff]
        %v656 = vld [vmem:[%s528 + $0x248] sm:$0xff]
        %v657 = vld [vmem:[%s528 + $0x250] sm:$0xff]
        %v658 = vld [vmem:[%s528 + $0x258] sm:$0xff]
        %v659 = vld [vmem:[%s528 + $0x260] sm:$0xff]
        %v660 = vld [vmem:[%s528 + $0x268] sm:$0xff]
        %v661 = vld [vmem:[%s528 + $0x270] sm:$0xff]
        %v662 = vld [vmem:[%s528 + $0x278] sm:$0xff]
        %v663 = vld [vmem:[%s528 + $0x280] sm:$0xff]
        %v664 = vld [vmem:[%s528 + $0x288] sm:$0xff]
        %v665 = vld [vmem:[%s528 + $0x290] sm:$0xff]
        %v666 = vld [vmem:[%s528 + $0x298] sm:$0xff]
        %v667 = vld [vmem:[%s528 + $0x2a0] sm:$0xff]
        %v668 = vld [vmem:[%s528 + $0x2a8] sm:$0xff]
        %v669 = vld [vmem:[%s528 + $0x2b0] sm:$0xff]
        %v670 = vld [vmem:[%s528 + $0x2b8] sm:$0xff]
        %v671 = vld [vmem:[%s528 + $0x2c0] sm:$0xff]
        %v672 = vld [vmem:[%s528 + $0x2c8] sm:$0xff]
        %v673 = vld [vmem:[%s528 + $0x2d0] sm:$0xff]
        %v674 = vld [vmem:[%s528 + $0x2d8] sm:$0xff]
        %v675 = vld [vmem:[%s528 + $0x2e0] sm:$0xff]
        %v676 = vld [vmem:[%s528 + $0x2e8] sm:$0xff]
        %v677 = vld [vmem:[%s528 + $0x2f0] sm:$0xff]
        %v678 = vld [vmem:[%s528 + $0x2f8] sm:$0xff]
        %v679 = vld [vmem:[%s528 + $0x300] sm:$0xff]
        %v680 = vld [vmem:[%s528 + $0x308] sm:$0xff]
        %v681 = vld [vmem:[%s528 + $0x310] sm:$0xff]
        %v682 = vld [vmem:[%s528 + $0x318] sm:$0xff]
        %v683 = vld [vmem:[%s528 + $0x320] sm:$0xff]
        %v684 = vld [vmem:[%s528 + $0x328] sm:$0xff]
        %v685 = vld [vmem:[%s528 + $0x330] sm:$0xff]
        %v686 = vld [vmem:[%s528 + $0x338] sm:$0xff]
        %v687 = vld [vmem:[%s528 + $0x340] sm:$0xff]
        %v688 = vld [vmem:[%s528 + $0x348] sm:$0xff]
        %v689 = vld [vmem:[%s528 + $0x350] sm:$0xff]
        %v690 = vld [vmem:[%s528 + $0x358] sm:$0xff]
        %v691 = vld [vmem:[%s528 + $0x360] sm:$0xff]
        %v692 = vld [vmem:[%s528 + $0x368] sm:$0xff]
        %v693 = vld [vmem:[%s528 + $0x370] sm:$0xff]
        %v694 = vld [vmem:[%s528 + $0x378] sm:$0xff]
        %v695 = vld [vmem:[%s528 + $0x380] sm:$0xff]
        %v696 = vld [vmem:[%s528 + $0x388] sm:$0xff]
        %v697 = vld [vmem:[%s528 + $0x390] sm:$0xff]
        %v698 = vld [vmem:[%s528 + $0x398] sm:$0xff]
        %v699 = vld [vmem:[%s528 + $0x3a0] sm:$0xff]
        %v700 = vld [vmem:[%s528 + $0x3a8] sm:$0xff]
        %v701 = vld [vmem:[%s528 + $0x3b0] sm:$0xff]
        %v702 = vld [vmem:[%s528 + $0x3b8] sm:$0xff]
        %v703 = vld [vmem:[%s528 + $0x3c0] sm:$0xff]
        %v704 = vld [vmem:[%s528 + $0x3c8] sm:$0xff]
        %v705 = vld [vmem:[%s528 + $0x3d0] sm:$0xff]
        %v706 = vld [vmem:[%s528 + $0x3d8] sm:$0xff]
        %v707 = vld [vmem:[%s528 + $0x3e0] sm:$0xff]
        %v708 = vld [vmem:[%s528 + $0x3e8] sm:$0xff]
        %v709 = vld [vmem:[%s528 + $0x3f0] sm:$0xff]
        %v710 = vld [vmem:[%s528 + $0x3f8] sm:$0xff]
        %v711 = vld [vmem:[%s528 + $0x400] sm:$0xff]
        %v712 = vld [vmem:[%s528 + $0x408] sm:$0xff]
        %v713 = vld [vmem:[%s528 + $0x410] sm:$0xff]
        %v714 = vld [vmem:[%s528 + $0x418] sm:$0xff]
        %v715 = vld [vmem:[%s528 + $0x420] sm:$0xff]
        %v716 = vld [vmem:[%s528 + $0x428] sm:$0xff]
        %v717 = vld [vmem:[%s528 + $0x430] sm:$0xff]
        %v718 = vld [vmem:[%s528 + $0x438] sm:$0xff]
        %v719 = vld [vmem:[%s528 + $0x440] sm:$0xff]
        %v720 = vld [vmem:[%s528 + $0x448] sm:$0xff]
        %v721 = vld [vmem:[%s528 + $0x450] sm:$0xff]
        %v722 = vld [vmem:[%s528 + $0x458] sm:$0xff]
        %v723 = vld [vmem:[%s528 + $0x460] sm:$0xff]
        %v724 = vld [vmem:[%s528 + $0x468] sm:$0xff]
        %v725 = vld [vmem:[%s528 + $0x470] sm:$0xff]
        %v726 = vld [vmem:[%s528 + $0x478] sm:$0xff]
        %v727 = vld [vmem:[%s528 + $0x480] sm:$0xff]
        %v728 = vld [vmem:[%s528 + $0x488] sm:$0xff]
        %v729 = vld [vmem:[%s528 + $0x490] sm:$0xff]
        %v730 = vld [vmem:[%s528 + $0x498] sm:$0xff]
        %v731 = vld [vmem:[%s528 + $0x4a0] sm:$0xff]
        %v732 = vld [vmem:[%s528 + $0x4a8] sm:$0xff]
        %v733 = vld [vmem:[%s528 + $0x4b0] sm:$0xff]
        %v734 = vld [vmem:[%s528 + $0x4b8] sm:$0xff]
        %v735 = vld [vmem:[%s528 + $0x4c0] sm:$0xff]
        %v736 = vld [vmem:[%s528 + $0x4c8] sm:$0xff]
        %v737 = vld [vmem:[%s528 + $0x4d0] sm:$0xff]
        %v738 = vld [vmem:[%s528 + $0x4d8] sm:$0xff]
        %v739 = vld [vmem:[%s528 + $0x4e0] sm:$0xff]
        %v740 = vld [vmem:[%s528 + $0x4e8] sm:$0xff]
        %v741 = vld [vmem:[%s528 + $0x4f0] sm:$0xff]
        %v742 = vld [vmem:[%s528 + $0x4f8] sm:$0xff]
        %v743 = vld [vmem:[%s528 + $0x500] sm:$0xff]
        %v744 = vld [vmem:[%s528 + $0x508] sm:$0xff]
        %v745 = vld [vmem:[%s528 + $0x510] sm:$0xff]
        %v746 = vld [vmem:[%s528 + $0x518] sm:$0xff]
        %v747 = vld [vmem:[%s528 + $0x520] sm:$0xff]
        %v748 = vld [vmem:[%s528 + $0x528] sm:$0xff]
        %v749 = vld [vmem:[%s528 + $0x530] sm:$0xff]
        %v750 = vld [vmem:[%s528 + $0x538] sm:$0xff]
        %v751 = vld [vmem:[%s528 + $0x540] sm:$0xff]
        %v752 = vld [vmem:[%s528 + $0x548] sm:$0xff]
        %v753 = vld [vmem:[%s528 + $0x550] sm:$0xff]
        %v754 = vld [vmem:[%s528 + $0x558] sm:$0xff]
        %v755 = vld [vmem:[%s528 + $0x560] sm:$0xff]
        %v756 = vld [vmem:[%s528 + $0x568] sm:$0xff]
        %v757 = vld [vmem:[%s528 + $0x570] sm:$0xff]
        %v758 = vld [vmem:[%s528 + $0x578] sm:$0xff]
        %v759 = vld [vmem:[%s528 + $0x580] sm:$0xff]
        %v760 = vld [vmem:[%s528 + $0x588] sm:$0xff]
        %v761 = vld [vmem:[%s528 + $0x590] sm:$0xff]
        %v762 = vld [vmem:[%s528 + $0x598] sm:$0xff]
        %v763 = vld [vmem:[%s528 + $0x5a0] sm:$0xff]
        %v764 = vld [vmem:[%s528 + $0x5a8] sm:$0xff]
        %v765 = vld [vmem:[%s528 + $0x5b0] sm:$0xff]
        %v766 = vld [vmem:[%s528 + $0x5b8] sm:$0xff]
        %v767 = vld [vmem:[%s528 + $0x5c0] sm:$0xff]
        %v768 = vld [vmem:[%s528 + $0x5c8] sm:$0xff]
        %v769 = vld [vmem:[%s528 + $0x5d0] sm:$0xff]
        %v770 = vld [vmem:[%s528 + $0x5d8] sm:$0xff]
        %v771 = vld [vmem:[%s528 + $0x5e0] sm:$0xff]
        %v772 = vld [vmem:[%s528 + $0x5e8] sm:$0xff]
        %v773 = vld [vmem:[%s528 + $0x5f0] sm:$0xff]
        %v774 = vld [vmem:[%s528 + $0x5f8] sm:$0xff]
        %v775 = vld [vmem:[%s528 + $0x600] sm:$0xff]
        %v776 = vld [vmem:[%s528 + $0x608] sm:$0xff]
        %v777 = vld [vmem:[%s528 + $0x610] sm:$0xff]
        %v778 = vld [vmem:[%s528 + $0x618] sm:$0xff]
        %v779 = vld [vmem:[%s528 + $0x620] sm:$0xff]
        %v780 = vld [vmem:[%s528 + $0x628] sm:$0xff]
        %v781 = vld [vmem:[%s528 + $0x630] sm:$0xff]
        %v782 = vld [vmem:[%s528 + $0x638] sm:$0xff]
        %v783 = vld [vmem:[%s528 + $0x640] sm:$0xff]
        %v784 = vld [vmem:[%s528 + $0x648] sm:$0xff]
        %v785 = vld [vmem:[%s528 + $0x650] sm:$0xff]
        %v786 = vld [vmem:[%s528 + $0x658] sm:$0xff]
        %v787 = vld [vmem:[%s528 + $0x660] sm:$0xff]
        %v788 = vld [vmem:[%s528 + $0x668] sm:$0xff]
        %v789 = vld [vmem:[%s528 + $0x670] sm:$0xff]
        %v790 = vld [vmem:[%s528 + $0x678] sm:$0xff]
        %v791 = vld [vmem:[%s528 + $0x680] sm:$0xff]
        %v792 = vld [vmem:[%s528 + $0x688] sm:$0xff]
        %v793 = vld [vmem:[%s528 + $0x690] sm:$0xff]
        %v794 = vld [vmem:[%s528 + $0x698] sm:$0xff]
        %v795 = vld [vmem:[%s528 + $0x6a0] sm:$0xff]
        %v796 = vld [vmem:[%s528 + $0x6a8] sm:$0xff]
        %v797 = vld [vmem:[%s528 + $0x6b0] sm:$0xff]
        %v798 = vld [vmem:[%s528 + $0x6b8] sm:$0xff]
        %v799 = vld [vmem:[%s528 + $0x6c0] sm:$0xff]
        %v800 = vld [vmem:[%s528 + $0x6c8] sm:$0xff]
        %v801 = vld [vmem:[%s528 + $0x6d0] sm:$0xff]
        %v802 = vld [vmem:[%s528 + $0x6d8] sm:$0xff]
        %v803 = vld [vmem:[%s528 + $0x6e0] sm:$0xff]
        %v804 = vld [vmem:[%s528 + $0x6e8] sm:$0xff]
        %v805 = vld [vmem:[%s528 + $0x6f0] sm:$0xff]
        %v806 = vld [vmem:[%s528 + $0x6f8] sm:$0xff]
        %v807 = vld [vmem:[%s528 + $0x700] sm:$0xff]
        %v808 = vld [vmem:[%s528 + $0x708] sm:$0xff]
        %v809 = vld [vmem:[%s528 + $0x710] sm:$0xff]
        %v810 = vld [vmem:[%s528 + $0x718] sm:$0xff]
        %v811 = vld [vmem:[%s528 + $0x720] sm:$0xff]
        %v812 = vld [vmem:[%s528 + $0x728] sm:$0xff]
        %v813 = vld [vmem:[%s528 + $0x730] sm:$0xff]
        %v814 = vld [vmem:[%s528 + $0x738] sm:$0xff]
        %v815 = vld [vmem:[%s528 + $0x740] sm:$0xff]
        %v816 = vld [vmem:[%s528 + $0x748] sm:$0xff]
        %v817 = vld [vmem:[%s528 + $0x750] sm:$0xff]
        %v818 = vld [vmem:[%s528 + $0x758] sm:$0xff]
        %v819 = vld [vmem:[%s528 + $0x760] sm:$0xff]
        %v820 = vld [vmem:[%s528 + $0x768] sm:$0xff]
        %v821 = vld [vmem:[%s528 + $0x770] sm:$0xff]
        %v822 = vld [vmem:[%s528 + $0x778] sm:$0xff]
        %v823 = vld [vmem:[%s528 + $0x780] sm:$0xff]
        %v824 = vld [vmem:[%s528 + $0x788] sm:$0xff]
        %v825 = vld [vmem:[%s528 + $0x790] sm:$0xff]
        %v826 = vld [vmem:[%s528 + $0x798] sm:$0xff]
        %v827 = vld [vmem:[%s528 + $0x7a0] sm:$0xff]
        %v828 = vld [vmem:[%s528 + $0x7a8] sm:$0xff]
        %v829 = vld [vmem:[%s528 + $0x7b0] sm:$0xff]
        %v830 = vld [vmem:[%s528 + $0x7b8] sm:$0xff]
        %v831 = vld [vmem:[%s528 + $0x7c0] sm:$0xff]
        %v832 = vld [vmem:[%s528 + $0x7c8] sm:$0xff]
        %v833 = vld [vmem:[%s528 + $0x7d0] sm:$0xff]
        %v834 = vld [vmem:[%s528 + $0x7d8] sm:$0xff]
        %v835 = vld [vmem:[%s528 + $0x7e0] sm:$0xff]
        %v836 = vld [vmem:[%s528 + $0x7e8] sm:$0xff]
        %v837 = vld [vmem:[%s528 + $0x7f0] sm:$0xff]
        %v838 = vld [vmem:[%s528 + $0x7f8] sm:$0xff]
        %v839 = vpack.c.bf16 %v585, %v583
        %v840 = vpack.c.bf16 %v586, %v584
        %v841 = vpack.c.bf16 %v589, %v587
        %v842 = vpack.c.bf16 %v590, %v588
        %v843 = vpack.c.bf16 %v593, %v591
        %v844 = vpack.c.bf16 %v594, %v592
        %v845 = vpack.c.bf16 %v597, %v595
        %v846 = vpack.c.bf16 %v598, %v596
        %v847 = vpack.c.bf16 %v601, %v599
        %v848 = vpack.c.bf16 %v602, %v600
        %v849 = vpack.c.bf16 %v605, %v603
        %v850 = vpack.c.bf16 %v606, %v604
        %v851 = vpack.c.bf16 %v609, %v607
        %v852 = vpack.c.bf16 %v610, %v608
        %v853 = vpack.c.bf16 %v613, %v611
        %v854 = vpack.c.bf16 %v614, %v612
        %v855 = vpack.c.bf16 %v617, %v615
        %v856 = vpack.c.bf16 %v618, %v616
        %v857 = vpack.c.bf16 %v621, %v619
        %v858 = vpack.c.bf16 %v622, %v620
        %v859 = vpack.c.bf16 %v625, %v623
        %v860 = vpack.c.bf16 %v626, %v624
        %v861 = vpack.c.bf16 %v629, %v627
        %v862 = vpack.c.bf16 %v630, %v628
        %v863 = vpack.c.bf16 %v633, %v631
        %v864 = vpack.c.bf16 %v634, %v632
        %v865 = vpack.c.bf16 %v637, %v635
        %v866 = vpack.c.bf16 %v638, %v636
        %v867 = vpack.c.bf16 %v641, %v639
        %v868 = vpack.c.bf16 %v642, %v640
        %v869 = vpack.c.bf16 %v645, %v643
        %v870 = vpack.c.bf16 %v646, %v644
        %v871 = vpack.c.bf16 %v649, %v647
        %v872 = vpack.c.bf16 %v650, %v648
        %v873 = vpack.c.bf16 %v653, %v651
        %v874 = vpack.c.bf16 %v654, %v652
        %v875 = vpack.c.bf16 %v657, %v655
        %v876 = vpack.c.bf16 %v658, %v656
        %v877 = vpack.c.bf16 %v661, %v659
        %v878 = vpack.c.bf16 %v662, %v660
        %v879 = vpack.c.bf16 %v665, %v663
        %v880 = vpack.c.bf16 %v666, %v664
        %v881 = vpack.c.bf16 %v669, %v667
        %v882 = vpack.c.bf16 %v670, %v668
        %v883 = vpack.c.bf16 %v673, %v671
        %v884 = vpack.c.bf16 %v674, %v672
        %v885 = vpack.c.bf16 %v677, %v675
        %v886 = vpack.c.bf16 %v678, %v676
        %v887 = vpack.c.bf16 %v681, %v679
        %v888 = vpack.c.bf16 %v682, %v680
        %v889 = vpack.c.bf16 %v685, %v683
        %v890 = vpack.c.bf16 %v686, %v684
        %v891 = vpack.c.bf16 %v689, %v687
        %v892 = vpack.c.bf16 %v690, %v688
        %v893 = vpack.c.bf16 %v693, %v691
        %v894 = vpack.c.bf16 %v694, %v692
        %v895 = vpack.c.bf16 %v697, %v695
        %v896 = vpack.c.bf16 %v698, %v696
        %v897 = vpack.c.bf16 %v701, %v699
        %v898 = vpack.c.bf16 %v702, %v700
        %v899 = vpack.c.bf16 %v705, %v703
        %v900 = vpack.c.bf16 %v706, %v704
        %v901 = vpack.c.bf16 %v709, %v707
        %v902 = vpack.c.bf16 %v710, %v708
        %v903 = vpack.c.bf16 %v713, %v711
        %v904 = vpack.c.bf16 %v714, %v712
        %v905 = vpack.c.bf16 %v717, %v715
        %v906 = vpack.c.bf16 %v718, %v716
        %v907 = vpack.c.bf16 %v721, %v719
        %v908 = vpack.c.bf16 %v722, %v720
        %v909 = vpack.c.bf16 %v725, %v723
        %v910 = vpack.c.bf16 %v726, %v724
        %v911 = vpack.c.bf16 %v729, %v727
        %v912 = vpack.c.bf16 %v730, %v728
        %v913 = vpack.c.bf16 %v733, %v731
        %v914 = vpack.c.bf16 %v734, %v732
        %v915 = vpack.c.bf16 %v737, %v735
        %v916 = vpack.c.bf16 %v738, %v736
        %v917 = vpack.c.bf16 %v741, %v739
        %v918 = vpack.c.bf16 %v742, %v740
        %v919 = vpack.c.bf16 %v745, %v743
        %v920 = vpack.c.bf16 %v746, %v744
        %v921 = vpack.c.bf16 %v749, %v747
        %v922 = vpack.c.bf16 %v750, %v748
        %v923 = vpack.c.bf16 %v753, %v751
        %v924 = vpack.c.bf16 %v754, %v752
        %v925 = vpack.c.bf16 %v757, %v755
        %v926 = vpack.c.bf16 %v758, %v756
        %v927 = vpack.c.bf16 %v761, %v759
        %v928 = vpack.c.bf16 %v762, %v760
        %v929 = vpack.c.bf16 %v765, %v763
        %v930 = vpack.c.bf16 %v766, %v764
        %v931 = vpack.c.bf16 %v769, %v767
        %v932 = vpack.c.bf16 %v770, %v768
        %v933 = vpack.c.bf16 %v773, %v771
        %v934 = vpack.c.bf16 %v774, %v772
        %v935 = vpack.c.bf16 %v777, %v775
        %v936 = vpack.c.bf16 %v778, %v776
        %v937 = vpack.c.bf16 %v781, %v779
        %v938 = vpack.c.bf16 %v782, %v780
        %v939 = vpack.c.bf16 %v785, %v783
        %v940 = vpack.c.bf16 %v786, %v784
        %v941 = vpack.c.bf16 %v789, %v787
        %v942 = vpack.c.bf16 %v790, %v788
        %v943 = vpack.c.bf16 %v793, %v791
        %v944 = vpack.c.bf16 %v794, %v792
        %v945 = vpack.c.bf16 %v797, %v795
        %v946 = vpack.c.bf16 %v798, %v796
        %v947 = vpack.c.bf16 %v801, %v799
        %v948 = vpack.c.bf16 %v802, %v800
        %v949 = vpack.c.bf16 %v805, %v803
        %v950 = vpack.c.bf16 %v806, %v804
        %v951 = vpack.c.bf16 %v809, %v807
        %v952 = vpack.c.bf16 %v810, %v808
        %v953 = vpack.c.bf16 %v813, %v811
        %v954 = vpack.c.bf16 %v814, %v812
        %v955 = vpack.c.bf16 %v817, %v815
        %v956 = vpack.c.bf16 %v818, %v816
        %v957 = vpack.c.bf16 %v821, %v819
        %v958 = vpack.c.bf16 %v822, %v820
        %v959 = vpack.c.bf16 %v825, %v823
        %v960 = vpack.c.bf16 %v826, %v824
        %v961 = vpack.c.bf16 %v829, %v827
        %v962 = vpack.c.bf16 %v830, %v828
        %v963 = vpack.c.bf16 %v833, %v831
        %v964 = vpack.c.bf16 %v834, %v832
        %v965 = vpack.c.bf16 %v837, %v835
        %v966 = vpack.c.bf16 %v838, %v836
        %v967 = vld [vmem:[%s1] sm:$0x3]
        %v970 = vunpack.c.l.s4 1966171168
        %v971 = vunpack.c.0.s8 %v970
        %v972 = vlaneseq
        %v973 = vshrl.u32 %v972, 7
        %v974 = vsub.s32 %v971, %v973
        %v975 = vrot.slane %v967, %v974
        %v976 = vcombine.high %v975, %v975
        %v978 = vunpack.c.l.s4 1966171168
        %v979 = vunpack.c.0.s8 %v978
        %v980 = vlaneseq
        %v981 = vshrl.u32 %v980, 7
        %v982 = vsub.s32 %v979, %v981
        %v983 = vrot.slane %v975, %v982
        %v985 = vunpack.c.l.s4 1966171168
        %v986 = vunpack.c.0.s8 %v985
        %v987 = vlaneseq
        %v988 = vshrl.u32 %v987, 7
        %v989 = vsub.s32 %v986, %v988
        %v990 = vrot.slane %v976, %v989
        %v992 = vpack.i.b16 %v983, %v983
        %v994 = vlaneseq
        %v995 = vshrl.u32 %v994, 7
        %v996 = vsub.s32 0, %v995
        %v997 = vrot.slane %v992, %v996
        %v999 = vpack.i.b16 %v990, %v990
        %v1001 = vlaneseq
        %v1002 = vshrl.u32 %v1001, 7
        %v1003 = vsub.s32 0, %v1002
        %v1004 = vrot.slane %v999, %v1003
        %v1005 = vmul.bf16 %v839, %v997
        %v1006 = vmul.bf16 %v840, %v1004
        %v1007 = vmul.bf16 %v841, %v997
        %v1008 = vmul.bf16 %v842, %v1004
        %v1009 = vmul.bf16 %v843, %v997
        %v1010 = vmul.bf16 %v844, %v1004
        %v1011 = vmul.bf16 %v845, %v997
        %v1012 = vmul.bf16 %v846, %v1004
        %v1013 = vmul.bf16 %v847, %v997
        %v1014 = vmul.bf16 %v848, %v1004
        %v1015 = vmul.bf16 %v849, %v997
        %v1016 = vmul.bf16 %v850, %v1004
        %v1017 = vmul.bf16 %v851, %v997
        %v1018 = vmul.bf16 %v852, %v1004
        %v1019 = vmul.bf16 %v853, %v997
        %v1020 = vmul.bf16 %v854, %v1004
        %v1021 = vmul.bf16 %v855, %v997
        %v1022 = vmul.bf16 %v856, %v1004
        %v1023 = vmul.bf16 %v857, %v997
        %v1024 = vmul.bf16 %v858, %v1004
        %v1025 = vmul.bf16 %v859, %v997
        %v1026 = vmul.bf16 %v860, %v1004
        %v1027 = vmul.bf16 %v861, %v997
        %v1028 = vmul.bf16 %v862, %v1004
        %v1029 = vmul.bf16 %v863, %v997
        %v1030 = vmul.bf16 %v864, %v1004
        %v1031 = vmul.bf16 %v865, %v997
        %v1032 = vmul.bf16 %v866, %v1004
        %v1033 = vmul.bf16 %v867, %v997
        %v1034 = vmul.bf16 %v868, %v1004
        %v1035 = vmul.bf16 %v869, %v997
        %v1036 = vmul.bf16 %v870, %v1004
        %v1037 = vmul.bf16 %v871, %v997
        %v1038 = vmul.bf16 %v872, %v1004
        %v1039 = vmul.bf16 %v873, %v997
        %v1040 = vmul.bf16 %v874, %v1004
        %v1041 = vmul.bf16 %v875, %v997
        %v1042 = vmul.bf16 %v876, %v1004
        %v1043 = vmul.bf16 %v877, %v997
        %v1044 = vmul.bf16 %v878, %v1004
        %v1045 = vmul.bf16 %v879, %v997
        %v1046 = vmul.bf16 %v880, %v1004
        %v1047 = vmul.bf16 %v881, %v997
        %v1048 = vmul.bf16 %v882, %v1004
        %v1049 = vmul.bf16 %v883, %v997
        %v1050 = vmul.bf16 %v884, %v1004
        %v1051 = vmul.bf16 %v885, %v997
        %v1052 = vmul.bf16 %v886, %v1004
        %v1053 = vmul.bf16 %v887, %v997
        %v1054 = vmul.bf16 %v888, %v1004
        %v1055 = vmul.bf16 %v889, %v997
        %v1056 = vmul.bf16 %v890, %v1004
        %v1057 = vmul.bf16 %v891, %v997
        %v1058 = vmul.bf16 %v892, %v1004
        %v1059 = vmul.bf16 %v893, %v997
        %v1060 = vmul.bf16 %v894, %v1004
        %v1061 = vmul.bf16 %v895, %v997
        %v1062 = vmul.bf16 %v896, %v1004
        %v1063 = vmul.bf16 %v897, %v997
        %v1064 = vmul.bf16 %v898, %v1004
        %v1065 = vmul.bf16 %v899, %v997
        %v1066 = vmul.bf16 %v900, %v1004
        %v1067 = vmul.bf16 %v901, %v997
        %v1068 = vmul.bf16 %v902, %v1004
        %v1069 = vmul.bf16 %v903, %v997
        %v1070 = vmul.bf16 %v904, %v1004
        %v1071 = vmul.bf16 %v905, %v997
        %v1072 = vmul.bf16 %v906, %v1004
        %v1073 = vmul.bf16 %v907, %v997
        %v1074 = vmul.bf16 %v908, %v1004
        %v1075 = vmul.bf16 %v909, %v997
        %v1076 = vmul.bf16 %v910, %v1004
        %v1077 = vmul.bf16 %v911, %v997
        %v1078 = vmul.bf16 %v912, %v1004
        %v1079 = vmul.bf16 %v913, %v997
        %v1080 = vmul.bf16 %v914, %v1004
        %v1081 = vmul.bf16 %v915, %v997
        %v1082 = vmul.bf16 %v916, %v1004
        %v1083 = vmul.bf16 %v917, %v997
        %v1084 = vmul.bf16 %v918, %v1004
        %v1085 = vmul.bf16 %v919, %v997
        %v1086 = vmul.bf16 %v920, %v1004
        %v1087 = vmul.bf16 %v921, %v997
        %v1088 = vmul.bf16 %v922, %v1004
        %v1089 = vmul.bf16 %v923, %v997
        %v1090 = vmul.bf16 %v924, %v1004
        %v1091 = vmul.bf16 %v925, %v997
        %v1092 = vmul.bf16 %v926, %v1004
        %v1093 = vmul.bf16 %v927, %v997
        %v1094 = vmul.bf16 %v928, %v1004
        %v1095 = vmul.bf16 %v929, %v997
        %v1096 = vmul.bf16 %v930, %v1004
        %v1097 = vmul.bf16 %v931, %v997
        %v1098 = vmul.bf16 %v932, %v1004
        %v1099 = vmul.bf16 %v933, %v997
        %v1100 = vmul.bf16 %v934, %v1004
        %v1101 = vmul.bf16 %v935, %v997
        %v1102 = vmul.bf16 %v936, %v1004
        %v1103 = vmul.bf16 %v937, %v997
        %v1104 = vmul.bf16 %v938, %v1004
        %v1105 = vmul.bf16 %v939, %v997
        %v1106 = vmul.bf16 %v940, %v1004
        %v1107 = vmul.bf16 %v941, %v997
        %v1108 = vmul.bf16 %v942, %v1004
        %v1109 = vmul.bf16 %v943, %v997
        %v1110 = vmul.bf16 %v944, %v1004
        %v1111 = vmul.bf16 %v945, %v997
        %v1112 = vmul.bf16 %v946, %v1004
        %v1113 = vmul.bf16 %v947, %v997
        %v1114 = vmul.bf16 %v948, %v1004
        %v1115 = vmul.bf16 %v949, %v997
        %v1116 = vmul.bf16 %v950, %v1004
        %v1117 = vmul.bf16 %v951, %v997
        %v1118 = vmul.bf16 %v952, %v1004
        %v1119 = vmul.bf16 %v953, %v997
        %v1120 = vmul.bf16 %v954, %v1004
        %v1121 = vmul.bf16 %v955, %v997
        %v1122 = vmul.bf16 %v956, %v1004
        %v1123 = vmul.bf16 %v957, %v997
        %v1124 = vmul.bf16 %v958, %v1004
        %v1125 = vmul.bf16 %v959, %v997
        %v1126 = vmul.bf16 %v960, %v1004
        %v1127 = vmul.bf16 %v961, %v997
        %v1128 = vmul.bf16 %v962, %v1004
        %v1129 = vmul.bf16 %v963, %v997
        %v1130 = vmul.bf16 %v964, %v1004
        %v1131 = vmul.bf16 %v965, %v997
        %v1132 = vmul.bf16 %v966, %v1004
        %v1133 = vunpack.c.l.bf16 %v1005
        %v1134 = vunpack.c.l.bf16 %v1006
        %v1135 = vunpack.c.h.bf16 %v1005
        %v1136 = vunpack.c.h.bf16 %v1006
        %v1137 = vunpack.c.l.bf16 %v1007
        %v1138 = vunpack.c.l.bf16 %v1008
        %v1139 = vunpack.c.h.bf16 %v1007
        %v1140 = vunpack.c.h.bf16 %v1008
        %v1141 = vunpack.c.l.bf16 %v1009
        %v1142 = vunpack.c.l.bf16 %v1010
        %v1143 = vunpack.c.h.bf16 %v1009
        %v1144 = vunpack.c.h.bf16 %v1010
        %v1145 = vunpack.c.l.bf16 %v1011
        %v1146 = vunpack.c.l.bf16 %v1012
        %v1147 = vunpack.c.h.bf16 %v1011
        %v1148 = vunpack.c.h.bf16 %v1012
        %v1149 = vunpack.c.l.bf16 %v1013
        %v1150 = vunpack.c.l.bf16 %v1014
        %v1151 = vunpack.c.h.bf16 %v1013
        %v1152 = vunpack.c.h.bf16 %v1014
        %v1153 = vunpack.c.l.bf16 %v1015
        %v1154 = vunpack.c.l.bf16 %v1016
        %v1155 = vunpack.c.h.bf16 %v1015
        %v1156 = vunpack.c.h.bf16 %v1016
        %v1157 = vunpack.c.l.bf16 %v1017
        %v1158 = vunpack.c.l.bf16 %v1018
        %v1159 = vunpack.c.h.bf16 %v1017
        %v1160 = vunpack.c.h.bf16 %v1018
        %v1161 = vunpack.c.l.bf16 %v1019
        %v1162 = vunpack.c.l.bf16 %v1020
        %v1163 = vunpack.c.h.bf16 %v1019
        %v1164 = vunpack.c.h.bf16 %v1020
        %v1165 = vunpack.c.l.bf16 %v1021
        %v1166 = vunpack.c.l.bf16 %v1022
        %v1167 = vunpack.c.h.bf16 %v1021
        %v1168 = vunpack.c.h.bf16 %v1022
        %v1169 = vunpack.c.l.bf16 %v1023
        %v1170 = vunpack.c.l.bf16 %v1024
        %v1171 = vunpack.c.h.bf16 %v1023
        %v1172 = vunpack.c.h.bf16 %v1024
        %v1173 = vunpack.c.l.bf16 %v1025
        %v1174 = vunpack.c.l.bf16 %v1026
        %v1175 = vunpack.c.h.bf16 %v1025
        %v1176 = vunpack.c.h.bf16 %v1026
        %v1177 = vunpack.c.l.bf16 %v1027
        %v1178 = vunpack.c.l.bf16 %v1028
        %v1179 = vunpack.c.h.bf16 %v1027
        %v1180 = vunpack.c.h.bf16 %v1028
        %v1181 = vunpack.c.l.bf16 %v1029
        %v1182 = vunpack.c.l.bf16 %v1030
        %v1183 = vunpack.c.h.bf16 %v1029
        %v1184 = vunpack.c.h.bf16 %v1030
        %v1185 = vunpack.c.l.bf16 %v1031
        %v1186 = vunpack.c.l.bf16 %v1032
        %v1187 = vunpack.c.h.bf16 %v1031
        %v1188 = vunpack.c.h.bf16 %v1032
        %v1189 = vunpack.c.l.bf16 %v1033
        %v1190 = vunpack.c.l.bf16 %v1034
        %v1191 = vunpack.c.h.bf16 %v1033
        %v1192 = vunpack.c.h.bf16 %v1034
        %v1193 = vunpack.c.l.bf16 %v1035
        %v1194 = vunpack.c.l.bf16 %v1036
        %v1195 = vunpack.c.h.bf16 %v1035
        %v1196 = vunpack.c.h.bf16 %v1036
        %v1197 = vunpack.c.l.bf16 %v1037
        %v1198 = vunpack.c.l.bf16 %v1038
        %v1199 = vunpack.c.h.bf16 %v1037
        %v1200 = vunpack.c.h.bf16 %v1038
        %v1201 = vunpack.c.l.bf16 %v1039
        %v1202 = vunpack.c.l.bf16 %v1040
        %v1203 = vunpack.c.h.bf16 %v1039
        %v1204 = vunpack.c.h.bf16 %v1040
        %v1205 = vunpack.c.l.bf16 %v1041
        %v1206 = vunpack.c.l.bf16 %v1042
        %v1207 = vunpack.c.h.bf16 %v1041
        %v1208 = vunpack.c.h.bf16 %v1042
        %v1209 = vunpack.c.l.bf16 %v1043
        %v1210 = vunpack.c.l.bf16 %v1044
        %v1211 = vunpack.c.h.bf16 %v1043
        %v1212 = vunpack.c.h.bf16 %v1044
        %v1213 = vunpack.c.l.bf16 %v1045
        %v1214 = vunpack.c.l.bf16 %v1046
        %v1215 = vunpack.c.h.bf16 %v1045
        %v1216 = vunpack.c.h.bf16 %v1046
        %v1217 = vunpack.c.l.bf16 %v1047
        %v1218 = vunpack.c.l.bf16 %v1048
        %v1219 = vunpack.c.h.bf16 %v1047
        %v1220 = vunpack.c.h.bf16 %v1048
        %v1221 = vunpack.c.l.bf16 %v1049
        %v1222 = vunpack.c.l.bf16 %v1050
        %v1223 = vunpack.c.h.bf16 %v1049
        %v1224 = vunpack.c.h.bf16 %v1050
        %v1225 = vunpack.c.l.bf16 %v1051
        %v1226 = vunpack.c.l.bf16 %v1052
        %v1227 = vunpack.c.h.bf16 %v1051
        %v1228 = vunpack.c.h.bf16 %v1052
        %v1229 = vunpack.c.l.bf16 %v1053
        %v1230 = vunpack.c.l.bf16 %v1054
        %v1231 = vunpack.c.h.bf16 %v1053
        %v1232 = vunpack.c.h.bf16 %v1054
        %v1233 = vunpack.c.l.bf16 %v1055
        %v1234 = vunpack.c.l.bf16 %v1056
        %v1235 = vunpack.c.h.bf16 %v1055
        %v1236 = vunpack.c.h.bf16 %v1056
        %v1237 = vunpack.c.l.bf16 %v1057
        %v1238 = vunpack.c.l.bf16 %v1058
        %v1239 = vunpack.c.h.bf16 %v1057
        %v1240 = vunpack.c.h.bf16 %v1058
        %v1241 = vunpack.c.l.bf16 %v1059
        %v1242 = vunpack.c.l.bf16 %v1060
        %v1243 = vunpack.c.h.bf16 %v1059
        %v1244 = vunpack.c.h.bf16 %v1060
        %v1245 = vunpack.c.l.bf16 %v1061
        %v1246 = vunpack.c.l.bf16 %v1062
        %v1247 = vunpack.c.h.bf16 %v1061
        %v1248 = vunpack.c.h.bf16 %v1062
        %v1249 = vunpack.c.l.bf16 %v1063
        %v1250 = vunpack.c.l.bf16 %v1064
        %v1251 = vunpack.c.h.bf16 %v1063
        %v1252 = vunpack.c.h.bf16 %v1064
        %v1253 = vunpack.c.l.bf16 %v1065
        %v1254 = vunpack.c.l.bf16 %v1066
        %v1255 = vunpack.c.h.bf16 %v1065
        %v1256 = vunpack.c.h.bf16 %v1066
        %v1257 = vunpack.c.l.bf16 %v1067
        %v1258 = vunpack.c.l.bf16 %v1068
        %v1259 = vunpack.c.h.bf16 %v1067
        %v1260 = vunpack.c.h.bf16 %v1068
        %v1261 = vunpack.c.l.bf16 %v1069
        %v1262 = vunpack.c.l.bf16 %v1070
        %v1263 = vunpack.c.h.bf16 %v1069
        %v1264 = vunpack.c.h.bf16 %v1070
        %v1265 = vunpack.c.l.bf16 %v1071
        %v1266 = vunpack.c.l.bf16 %v1072
        %v1267 = vunpack.c.h.bf16 %v1071
        %v1268 = vunpack.c.h.bf16 %v1072
        %v1269 = vunpack.c.l.bf16 %v1073
        %v1270 = vunpack.c.l.bf16 %v1074
        %v1271 = vunpack.c.h.bf16 %v1073
        %v1272 = vunpack.c.h.bf16 %v1074
        %v1273 = vunpack.c.l.bf16 %v1075
        %v1274 = vunpack.c.l.bf16 %v1076
        %v1275 = vunpack.c.h.bf16 %v1075
        %v1276 = vunpack.c.h.bf16 %v1076
        %v1277 = vunpack.c.l.bf16 %v1077
        %v1278 = vunpack.c.l.bf16 %v1078
        %v1279 = vunpack.c.h.bf16 %v1077
        %v1280 = vunpack.c.h.bf16 %v1078
        %v1281 = vunpack.c.l.bf16 %v1079
        %v1282 = vunpack.c.l.bf16 %v1080
        %v1283 = vunpack.c.h.bf16 %v1079
        %v1284 = vunpack.c.h.bf16 %v1080
        %v1285 = vunpack.c.l.bf16 %v1081
        %v1286 = vunpack.c.l.bf16 %v1082
        %v1287 = vunpack.c.h.bf16 %v1081
        %v1288 = vunpack.c.h.bf16 %v1082
        %v1289 = vunpack.c.l.bf16 %v1083
        %v1290 = vunpack.c.l.bf16 %v1084
        %v1291 = vunpack.c.h.bf16 %v1083
        %v1292 = vunpack.c.h.bf16 %v1084
        %v1293 = vunpack.c.l.bf16 %v1085
        %v1294 = vunpack.c.l.bf16 %v1086
        %v1295 = vunpack.c.h.bf16 %v1085
        %v1296 = vunpack.c.h.bf16 %v1086
        %v1297 = vunpack.c.l.bf16 %v1087
        %v1298 = vunpack.c.l.bf16 %v1088
        %v1299 = vunpack.c.h.bf16 %v1087
        %v1300 = vunpack.c.h.bf16 %v1088
        %v1301 = vunpack.c.l.bf16 %v1089
        %v1302 = vunpack.c.l.bf16 %v1090
        %v1303 = vunpack.c.h.bf16 %v1089
        %v1304 = vunpack.c.h.bf16 %v1090
        %v1305 = vunpack.c.l.bf16 %v1091
        %v1306 = vunpack.c.l.bf16 %v1092
        %v1307 = vunpack.c.h.bf16 %v1091
        %v1308 = vunpack.c.h.bf16 %v1092
        %v1309 = vunpack.c.l.bf16 %v1093
        %v1310 = vunpack.c.l.bf16 %v1094
        %v1311 = vunpack.c.h.bf16 %v1093
        %v1312 = vunpack.c.h.bf16 %v1094
        %v1313 = vunpack.c.l.bf16 %v1095
        %v1314 = vunpack.c.l.bf16 %v1096
        %v1315 = vunpack.c.h.bf16 %v1095
        %v1316 = vunpack.c.h.bf16 %v1096
        %v1317 = vunpack.c.l.bf16 %v1097
        %v1318 = vunpack.c.l.bf16 %v1098
        %v1319 = vunpack.c.h.bf16 %v1097
        %v1320 = vunpack.c.h.bf16 %v1098
        %v1321 = vunpack.c.l.bf16 %v1099
        %v1322 = vunpack.c.l.bf16 %v1100
        %v1323 = vunpack.c.h.bf16 %v1099
        %v1324 = vunpack.c.h.bf16 %v1100
        %v1325 = vunpack.c.l.bf16 %v1101
        %v1326 = vunpack.c.l.bf16 %v1102
        %v1327 = vunpack.c.h.bf16 %v1101
        %v1328 = vunpack.c.h.bf16 %v1102
        %v1329 = vunpack.c.l.bf16 %v1103
        %v1330 = vunpack.c.l.bf16 %v1104
        %v1331 = vunpack.c.h.bf16 %v1103
        %v1332 = vunpack.c.h.bf16 %v1104
        %v1333 = vunpack.c.l.bf16 %v1105
        %v1334 = vunpack.c.l.bf16 %v1106
        %v1335 = vunpack.c.h.bf16 %v1105
        %v1336 = vunpack.c.h.bf16 %v1106
        %v1337 = vunpack.c.l.bf16 %v1107
        %v1338 = vunpack.c.l.bf16 %v1108
        %v1339 = vunpack.c.h.bf16 %v1107
        %v1340 = vunpack.c.h.bf16 %v1108
        %v1341 = vunpack.c.l.bf16 %v1109
        %v1342 = vunpack.c.l.bf16 %v1110
        %v1343 = vunpack.c.h.bf16 %v1109
        %v1344 = vunpack.c.h.bf16 %v1110
        %v1345 = vunpack.c.l.bf16 %v1111
        %v1346 = vunpack.c.l.bf16 %v1112
        %v1347 = vunpack.c.h.bf16 %v1111
        %v1348 = vunpack.c.h.bf16 %v1112
        %v1349 = vunpack.c.l.bf16 %v1113
        %v1350 = vunpack.c.l.bf16 %v1114
        %v1351 = vunpack.c.h.bf16 %v1113
        %v1352 = vunpack.c.h.bf16 %v1114
        %v1353 = vunpack.c.l.bf16 %v1115
        %v1354 = vunpack.c.l.bf16 %v1116
        %v1355 = vunpack.c.h.bf16 %v1115
        %v1356 = vunpack.c.h.bf16 %v1116
        %v1357 = vunpack.c.l.bf16 %v1117
        %v1358 = vunpack.c.l.bf16 %v1118
        %v1359 = vunpack.c.h.bf16 %v1117
        %v1360 = vunpack.c.h.bf16 %v1118
        %v1361 = vunpack.c.l.bf16 %v1119
        %v1362 = vunpack.c.l.bf16 %v1120
        %v1363 = vunpack.c.h.bf16 %v1119
        %v1364 = vunpack.c.h.bf16 %v1120
        %v1365 = vunpack.c.l.bf16 %v1121
        %v1366 = vunpack.c.l.bf16 %v1122
        %v1367 = vunpack.c.h.bf16 %v1121
        %v1368 = vunpack.c.h.bf16 %v1122
        %v1369 = vunpack.c.l.bf16 %v1123
        %v1370 = vunpack.c.l.bf16 %v1124
        %v1371 = vunpack.c.h.bf16 %v1123
        %v1372 = vunpack.c.h.bf16 %v1124
        %v1373 = vunpack.c.l.bf16 %v1125
        %v1374 = vunpack.c.l.bf16 %v1126
        %v1375 = vunpack.c.h.bf16 %v1125
        %v1376 = vunpack.c.h.bf16 %v1126
        %v1377 = vunpack.c.l.bf16 %v1127
        %v1378 = vunpack.c.l.bf16 %v1128
        %v1379 = vunpack.c.h.bf16 %v1127
        %v1380 = vunpack.c.h.bf16 %v1128
        %v1381 = vunpack.c.l.bf16 %v1129
        %v1382 = vunpack.c.l.bf16 %v1130
        %v1383 = vunpack.c.h.bf16 %v1129
        %v1384 = vunpack.c.h.bf16 %v1130
        %v1385 = vunpack.c.l.bf16 %v1131
        %v1386 = vunpack.c.l.bf16 %v1132
        %v1387 = vunpack.c.h.bf16 %v1131
        %v1388 = vunpack.c.h.bf16 %v1132
        %vm1389 = vcmask 588800
        %v1390 = vsel %vm1389, %v1134, 0.0
        %v1391 = vadd.f32 %v1133, %v1390
        %1392 = vadd.xlane.f32.xlu0 %v1391
        %v1393 = vpop.xlane.xlu0 %1392
        %v1394 = vsel %vm1389, %v1136, 0.0
        %v1395 = vadd.f32 %v1135, %v1394
        %1396 = vadd.xlane.f32.xlu0 %v1395
        %v1397 = vpop.xlane.xlu0 %1396
        %v1398 = vsel %vm1389, %v1138, 0.0
        %v1399 = vadd.f32 %v1137, %v1398
        %1400 = vadd.xlane.f32.xlu0 %v1399
        %v1401 = vpop.xlane.xlu0 %1400
        %v1402 = vsel %vm1389, %v1140, 0.0
        %v1403 = vadd.f32 %v1139, %v1402
        %1404 = vadd.xlane.f32.xlu0 %v1403
        %v1405 = vpop.xlane.xlu0 %1404
        %v1406 = vsel %vm1389, %v1142, 0.0
        %v1407 = vadd.f32 %v1141, %v1406
        %1408 = vadd.xlane.f32.xlu0 %v1407
        %v1409 = vpop.xlane.xlu0 %1408
        %v1410 = vsel %vm1389, %v1144, 0.0
        %v1411 = vadd.f32 %v1143, %v1410
        %1412 = vadd.xlane.f32.xlu0 %v1411
        %v1413 = vpop.xlane.xlu0 %1412
        %v1414 = vsel %vm1389, %v1146, 0.0
        %v1415 = vadd.f32 %v1145, %v1414
        %1416 = vadd.xlane.f32.xlu0 %v1415
        %v1417 = vpop.xlane.xlu0 %1416
        %v1418 = vsel %vm1389, %v1148, 0.0
        %v1419 = vadd.f32 %v1147, %v1418
        %1420 = vadd.xlane.f32.xlu0 %v1419
        %v1421 = vpop.xlane.xlu0 %1420
        %v1422 = vsel %vm1389, %v1150, 0.0
        %v1423 = vadd.f32 %v1149, %v1422
        %1424 = vadd.xlane.f32.xlu0 %v1423
        %v1425 = vpop.xlane.xlu0 %1424
        %v1426 = vsel %vm1389, %v1152, 0.0
        %v1427 = vadd.f32 %v1151, %v1426
        %1428 = vadd.xlane.f32.xlu0 %v1427
        %v1429 = vpop.xlane.xlu0 %1428
        %v1430 = vsel %vm1389, %v1154, 0.0
        %v1431 = vadd.f32 %v1153, %v1430
        %1432 = vadd.xlane.f32.xlu0 %v1431
        %v1433 = vpop.xlane.xlu0 %1432
        %v1434 = vsel %vm1389, %v1156, 0.0
        %v1435 = vadd.f32 %v1155, %v1434
        %1436 = vadd.xlane.f32.xlu0 %v1435
        %v1437 = vpop.xlane.xlu0 %1436
        %v1438 = vsel %vm1389, %v1158, 0.0
        %v1439 = vadd.f32 %v1157, %v1438
        %1440 = vadd.xlane.f32.xlu0 %v1439
        %v1441 = vpop.xlane.xlu0 %1440
        %v1442 = vsel %vm1389, %v1160, 0.0
        %v1443 = vadd.f32 %v1159, %v1442
        %1444 = vadd.xlane.f32.xlu0 %v1443
        %v1445 = vpop.xlane.xlu0 %1444
        %v1446 = vsel %vm1389, %v1162, 0.0
        %v1447 = vadd.f32 %v1161, %v1446
        %1448 = vadd.xlane.f32.xlu0 %v1447
        %v1449 = vpop.xlane.xlu0 %1448
        %v1450 = vsel %vm1389, %v1164, 0.0
        %v1451 = vadd.f32 %v1163, %v1450
        %1452 = vadd.xlane.f32.xlu0 %v1451
        %v1453 = vpop.xlane.xlu0 %1452
        %v1454 = vsel %vm1389, %v1166, 0.0
        %v1455 = vadd.f32 %v1165, %v1454
        %1456 = vadd.xlane.f32.xlu0 %v1455
        %v1457 = vpop.xlane.xlu0 %1456
        %v1458 = vsel %vm1389, %v1168, 0.0
        %v1459 = vadd.f32 %v1167, %v1458
        %1460 = vadd.xlane.f32.xlu0 %v1459
        %v1461 = vpop.xlane.xlu0 %1460
        %v1462 = vsel %vm1389, %v1170, 0.0
        %v1463 = vadd.f32 %v1169, %v1462
        %1464 = vadd.xlane.f32.xlu0 %v1463
        %v1465 = vpop.xlane.xlu0 %1464
        %v1466 = vsel %vm1389, %v1172, 0.0
        %v1467 = vadd.f32 %v1171, %v1466
        %1468 = vadd.xlane.f32.xlu0 %v1467
        %v1469 = vpop.xlane.xlu0 %1468
        %v1470 = vsel %vm1389, %v1174, 0.0
        %v1471 = vadd.f32 %v1173, %v1470
        %1472 = vadd.xlane.f32.xlu0 %v1471
        %v1473 = vpop.xlane.xlu0 %1472
        %v1474 = vsel %vm1389, %v1176, 0.0
        %v1475 = vadd.f32 %v1175, %v1474
        %1476 = vadd.xlane.f32.xlu0 %v1475
        %v1477 = vpop.xlane.xlu0 %1476
        %v1478 = vsel %vm1389, %v1178, 0.0
        %v1479 = vadd.f32 %v1177, %v1478
        %1480 = vadd.xlane.f32.xlu0 %v1479
        %v1481 = vpop.xlane.xlu0 %1480
        %v1482 = vsel %vm1389, %v1180, 0.0
        %v1483 = vadd.f32 %v1179, %v1482
        %1484 = vadd.xlane.f32.xlu0 %v1483
        %v1485 = vpop.xlane.xlu0 %1484
        %v1486 = vsel %vm1389, %v1182, 0.0
        %v1487 = vadd.f32 %v1181, %v1486
        %1488 = vadd.xlane.f32.xlu0 %v1487
        %v1489 = vpop.xlane.xlu0 %1488
        %v1490 = vsel %vm1389, %v1184, 0.0
        %v1491 = vadd.f32 %v1183, %v1490
        %1492 = vadd.xlane.f32.xlu0 %v1491
        %v1493 = vpop.xlane.xlu0 %1492
        %v1494 = vsel %vm1389, %v1186, 0.0
        %v1495 = vadd.f32 %v1185, %v1494
        %1496 = vadd.xlane.f32.xlu0 %v1495
        %v1497 = vpop.xlane.xlu0 %1496
        %v1498 = vsel %vm1389, %v1188, 0.0
        %v1499 = vadd.f32 %v1187, %v1498
        %1500 = vadd.xlane.f32.xlu0 %v1499
        %v1501 = vpop.xlane.xlu0 %1500
        %v1502 = vsel %vm1389, %v1190, 0.0
        %v1503 = vadd.f32 %v1189, %v1502
        %1504 = vadd.xlane.f32.xlu0 %v1503
        %v1505 = vpop.xlane.xlu0 %1504
        %v1506 = vsel %vm1389, %v1192, 0.0
        %v1507 = vadd.f32 %v1191, %v1506
        %1508 = vadd.xlane.f32.xlu0 %v1507
        %v1509 = vpop.xlane.xlu0 %1508
        %v1510 = vsel %vm1389, %v1194, 0.0
        %v1511 = vadd.f32 %v1193, %v1510
        %1512 = vadd.xlane.f32.xlu0 %v1511
        %v1513 = vpop.xlane.xlu0 %1512
        %v1514 = vsel %vm1389, %v1196, 0.0
        %v1515 = vadd.f32 %v1195, %v1514
        %1516 = vadd.xlane.f32.xlu0 %v1515
        %v1517 = vpop.xlane.xlu0 %1516
        %v1518 = vsel %vm1389, %v1198, 0.0
        %v1519 = vadd.f32 %v1197, %v1518
        %1520 = vadd.xlane.f32.xlu0 %v1519
        %v1521 = vpop.xlane.xlu0 %1520
        %v1522 = vsel %vm1389, %v1200, 0.0
        %v1523 = vadd.f32 %v1199, %v1522
        %1524 = vadd.xlane.f32.xlu0 %v1523
        %v1525 = vpop.xlane.xlu0 %1524
        %v1526 = vsel %vm1389, %v1202, 0.0
        %v1527 = vadd.f32 %v1201, %v1526
        %1528 = vadd.xlane.f32.xlu0 %v1527
        %v1529 = vpop.xlane.xlu0 %1528
        %v1530 = vsel %vm1389, %v1204, 0.0
        %v1531 = vadd.f32 %v1203, %v1530
        %1532 = vadd.xlane.f32.xlu0 %v1531
        %v1533 = vpop.xlane.xlu0 %1532
        %v1534 = vsel %vm1389, %v1206, 0.0
        %v1535 = vadd.f32 %v1205, %v1534
        %1536 = vadd.xlane.f32.xlu0 %v1535
        %v1537 = vpop.xlane.xlu0 %1536
        %v1538 = vsel %vm1389, %v1208, 0.0
        %v1539 = vadd.f32 %v1207, %v1538
        %1540 = vadd.xlane.f32.xlu0 %v1539
        %v1541 = vpop.xlane.xlu0 %1540
        %v1542 = vsel %vm1389, %v1210, 0.0
        %v1543 = vadd.f32 %v1209, %v1542
        %1544 = vadd.xlane.f32.xlu0 %v1543
        %v1545 = vpop.xlane.xlu0 %1544
        %v1546 = vsel %vm1389, %v1212, 0.0
        %v1547 = vadd.f32 %v1211, %v1546
        %1548 = vadd.xlane.f32.xlu0 %v1547
        %v1549 = vpop.xlane.xlu0 %1548
        %v1550 = vsel %vm1389, %v1214, 0.0
        %v1551 = vadd.f32 %v1213, %v1550
        %1552 = vadd.xlane.f32.xlu0 %v1551
        %v1553 = vpop.xlane.xlu0 %1552
        %v1554 = vsel %vm1389, %v1216, 0.0
        %v1555 = vadd.f32 %v1215, %v1554
        %1556 = vadd.xlane.f32.xlu0 %v1555
        %v1557 = vpop.xlane.xlu0 %1556
        %v1558 = vsel %vm1389, %v1218, 0.0
        %v1559 = vadd.f32 %v1217, %v1558
        %1560 = vadd.xlane.f32.xlu0 %v1559
        %v1561 = vpop.xlane.xlu0 %1560
        %v1562 = vsel %vm1389, %v1220, 0.0
        %v1563 = vadd.f32 %v1219, %v1562
        %1564 = vadd.xlane.f32.xlu0 %v1563
        %v1565 = vpop.xlane.xlu0 %1564
        %v1566 = vsel %vm1389, %v1222, 0.0
        %v1567 = vadd.f32 %v1221, %v1566
        %1568 = vadd.xlane.f32.xlu0 %v1567
        %v1569 = vpop.xlane.xlu0 %1568
        %v1570 = vsel %vm1389, %v1224, 0.0
        %v1571 = vadd.f32 %v1223, %v1570
        %1572 = vadd.xlane.f32.xlu0 %v1571
        %v1573 = vpop.xlane.xlu0 %1572
        %v1574 = vsel %vm1389, %v1226, 0.0
        %v1575 = vadd.f32 %v1225, %v1574
        %1576 = vadd.xlane.f32.xlu0 %v1575
        %v1577 = vpop.xlane.xlu0 %1576
        %v1578 = vsel %vm1389, %v1228, 0.0
        %v1579 = vadd.f32 %v1227, %v1578
        %1580 = vadd.xlane.f32.xlu0 %v1579
        %v1581 = vpop.xlane.xlu0 %1580
        %v1582 = vsel %vm1389, %v1230, 0.0
        %v1583 = vadd.f32 %v1229, %v1582
        %1584 = vadd.xlane.f32.xlu0 %v1583
        %v1585 = vpop.xlane.xlu0 %1584
        %v1586 = vsel %vm1389, %v1232, 0.0
        %v1587 = vadd.f32 %v1231, %v1586
        %1588 = vadd.xlane.f32.xlu0 %v1587
        %v1589 = vpop.xlane.xlu0 %1588
        %v1590 = vsel %vm1389, %v1234, 0.0
        %v1591 = vadd.f32 %v1233, %v1590
        %1592 = vadd.xlane.f32.xlu0 %v1591
        %v1593 = vpop.xlane.xlu0 %1592
        %v1594 = vsel %vm1389, %v1236, 0.0
        %v1595 = vadd.f32 %v1235, %v1594
        %1596 = vadd.xlane.f32.xlu0 %v1595
        %v1597 = vpop.xlane.xlu0 %1596
        %v1598 = vsel %vm1389, %v1238, 0.0
        %v1599 = vadd.f32 %v1237, %v1598
        %1600 = vadd.xlane.f32.xlu0 %v1599
        %v1601 = vpop.xlane.xlu0 %1600
        %v1602 = vsel %vm1389, %v1240, 0.0
        %v1603 = vadd.f32 %v1239, %v1602
        %1604 = vadd.xlane.f32.xlu0 %v1603
        %v1605 = vpop.xlane.xlu0 %1604
        %v1606 = vsel %vm1389, %v1242, 0.0
        %v1607 = vadd.f32 %v1241, %v1606
        %1608 = vadd.xlane.f32.xlu0 %v1607
        %v1609 = vpop.xlane.xlu0 %1608
        %v1610 = vsel %vm1389, %v1244, 0.0
        %v1611 = vadd.f32 %v1243, %v1610
        %1612 = vadd.xlane.f32.xlu0 %v1611
        %v1613 = vpop.xlane.xlu0 %1612
        %v1614 = vsel %vm1389, %v1246, 0.0
        %v1615 = vadd.f32 %v1245, %v1614
        %1616 = vadd.xlane.f32.xlu0 %v1615
        %v1617 = vpop.xlane.xlu0 %1616
        %v1618 = vsel %vm1389, %v1248, 0.0
        %v1619 = vadd.f32 %v1247, %v1618
        %1620 = vadd.xlane.f32.xlu0 %v1619
        %v1621 = vpop.xlane.xlu0 %1620
        %v1622 = vsel %vm1389, %v1250, 0.0
        %v1623 = vadd.f32 %v1249, %v1622
        %1624 = vadd.xlane.f32.xlu0 %v1623
        %v1625 = vpop.xlane.xlu0 %1624
        %v1626 = vsel %vm1389, %v1252, 0.0
        %v1627 = vadd.f32 %v1251, %v1626
        %1628 = vadd.xlane.f32.xlu0 %v1627
        %v1629 = vpop.xlane.xlu0 %1628
        %v1630 = vsel %vm1389, %v1254, 0.0
        %v1631 = vadd.f32 %v1253, %v1630
        %1632 = vadd.xlane.f32.xlu0 %v1631
        %v1633 = vpop.xlane.xlu0 %1632
        %v1634 = vsel %vm1389, %v1256, 0.0
        %v1635 = vadd.f32 %v1255, %v1634
        %1636 = vadd.xlane.f32.xlu0 %v1635
        %v1637 = vpop.xlane.xlu0 %1636
        %v1638 = vsel %vm1389, %v1258, 0.0
        %v1639 = vadd.f32 %v1257, %v1638
        %1640 = vadd.xlane.f32.xlu0 %v1639
        %v1641 = vpop.xlane.xlu0 %1640
        %v1642 = vsel %vm1389, %v1260, 0.0
        %v1643 = vadd.f32 %v1259, %v1642
        %1644 = vadd.xlane.f32.xlu0 %v1643
        %v1645 = vpop.xlane.xlu0 %1644
        %v1646 = vsel %vm1389, %v1262, 0.0
        %v1647 = vadd.f32 %v1261, %v1646
        %1648 = vadd.xlane.f32.xlu0 %v1647
        %v1649 = vpop.xlane.xlu0 %1648
        %v1650 = vsel %vm1389, %v1264, 0.0
        %v1651 = vadd.f32 %v1263, %v1650
        %1652 = vadd.xlane.f32.xlu0 %v1651
        %v1653 = vpop.xlane.xlu0 %1652
        %v1654 = vsel %vm1389, %v1266, 0.0
        %v1655 = vadd.f32 %v1265, %v1654
        %1656 = vadd.xlane.f32.xlu0 %v1655
        %v1657 = vpop.xlane.xlu0 %1656
        %v1658 = vsel %vm1389, %v1268, 0.0
        %v1659 = vadd.f32 %v1267, %v1658
        %1660 = vadd.xlane.f32.xlu0 %v1659
        %v1661 = vpop.xlane.xlu0 %1660
        %v1662 = vsel %vm1389, %v1270, 0.0
        %v1663 = vadd.f32 %v1269, %v1662
        %1664 = vadd.xlane.f32.xlu0 %v1663
        %v1665 = vpop.xlane.xlu0 %1664
        %v1666 = vsel %vm1389, %v1272, 0.0
        %v1667 = vadd.f32 %v1271, %v1666
        %1668 = vadd.xlane.f32.xlu0 %v1667
        %v1669 = vpop.xlane.xlu0 %1668
        %v1670 = vsel %vm1389, %v1274, 0.0
        %v1671 = vadd.f32 %v1273, %v1670
        %1672 = vadd.xlane.f32.xlu0 %v1671
        %v1673 = vpop.xlane.xlu0 %1672
        %v1674 = vsel %vm1389, %v1276, 0.0
        %v1675 = vadd.f32 %v1275, %v1674
        %1676 = vadd.xlane.f32.xlu0 %v1675
        %v1677 = vpop.xlane.xlu0 %1676
        %v1678 = vsel %vm1389, %v1278, 0.0
        %v1679 = vadd.f32 %v1277, %v1678
        %1680 = vadd.xlane.f32.xlu0 %v1679
        %v1681 = vpop.xlane.xlu0 %1680
        %v1682 = vsel %vm1389, %v1280, 0.0
        %v1683 = vadd.f32 %v1279, %v1682
        %1684 = vadd.xlane.f32.xlu0 %v1683
        %v1685 = vpop.xlane.xlu0 %1684
        %v1686 = vsel %vm1389, %v1282, 0.0
        %v1687 = vadd.f32 %v1281, %v1686
        %1688 = vadd.xlane.f32.xlu0 %v1687
        %v1689 = vpop.xlane.xlu0 %1688
        %v1690 = vsel %vm1389, %v1284, 0.0
        %v1691 = vadd.f32 %v1283, %v1690
        %1692 = vadd.xlane.f32.xlu0 %v1691
        %v1693 = vpop.xlane.xlu0 %1692
        %v1694 = vsel %vm1389, %v1286, 0.0
        %v1695 = vadd.f32 %v1285, %v1694
        %1696 = vadd.xlane.f32.xlu0 %v1695
        %v1697 = vpop.xlane.xlu0 %1696
        %v1698 = vsel %vm1389, %v1288, 0.0
        %v1699 = vadd.f32 %v1287, %v1698
        %1700 = vadd.xlane.f32.xlu0 %v1699
        %v1701 = vpop.xlane.xlu0 %1700
        %v1702 = vsel %vm1389, %v1290, 0.0
        %v1703 = vadd.f32 %v1289, %v1702
        %1704 = vadd.xlane.f32.xlu0 %v1703
        %v1705 = vpop.xlane.xlu0 %1704
        %v1706 = vsel %vm1389, %v1292, 0.0
        %v1707 = vadd.f32 %v1291, %v1706
        %1708 = vadd.xlane.f32.xlu0 %v1707
        %v1709 = vpop.xlane.xlu0 %1708
        %v1710 = vsel %vm1389, %v1294, 0.0
        %v1711 = vadd.f32 %v1293, %v1710
        %1712 = vadd.xlane.f32.xlu0 %v1711
        %v1713 = vpop.xlane.xlu0 %1712
        %v1714 = vsel %vm1389, %v1296, 0.0
        %v1715 = vadd.f32 %v1295, %v1714
        %1716 = vadd.xlane.f32.xlu0 %v1715
        %v1717 = vpop.xlane.xlu0 %1716
        %v1718 = vsel %vm1389, %v1298, 0.0
        %v1719 = vadd.f32 %v1297, %v1718
        %1720 = vadd.xlane.f32.xlu0 %v1719
        %v1721 = vpop.xlane.xlu0 %1720
        %v1722 = vsel %vm1389, %v1300, 0.0
        %v1723 = vadd.f32 %v1299, %v1722
        %1724 = vadd.xlane.f32.xlu0 %v1723
        %v1725 = vpop.xlane.xlu0 %1724
        %v1726 = vsel %vm1389, %v1302, 0.0
        %v1727 = vadd.f32 %v1301, %v1726
        %1728 = vadd.xlane.f32.xlu0 %v1727
        %v1729 = vpop.xlane.xlu0 %1728
        %v1730 = vsel %vm1389, %v1304, 0.0
        %v1731 = vadd.f32 %v1303, %v1730
        %1732 = vadd.xlane.f32.xlu0 %v1731
        %v1733 = vpop.xlane.xlu0 %1732
        %v1734 = vsel %vm1389, %v1306, 0.0
        %v1735 = vadd.f32 %v1305, %v1734
        %1736 = vadd.xlane.f32.xlu0 %v1735
        %v1737 = vpop.xlane.xlu0 %1736
        %v1738 = vsel %vm1389, %v1308, 0.0
        %v1739 = vadd.f32 %v1307, %v1738
        %1740 = vadd.xlane.f32.xlu0 %v1739
        %v1741 = vpop.xlane.xlu0 %1740
        %v1742 = vsel %vm1389, %v1310, 0.0
        %v1743 = vadd.f32 %v1309, %v1742
        %1744 = vadd.xlane.f32.xlu0 %v1743
        %v1745 = vpop.xlane.xlu0 %1744
        %v1746 = vsel %vm1389, %v1312, 0.0
        %v1747 = vadd.f32 %v1311, %v1746
        %1748 = vadd.xlane.f32.xlu0 %v1747
        %v1749 = vpop.xlane.xlu0 %1748
        %v1750 = vsel %vm1389, %v1314, 0.0
        %v1751 = vadd.f32 %v1313, %v1750
        %1752 = vadd.xlane.f32.xlu0 %v1751
        %v1753 = vpop.xlane.xlu0 %1752
        %v1754 = vsel %vm1389, %v1316, 0.0
        %v1755 = vadd.f32 %v1315, %v1754
        %1756 = vadd.xlane.f32.xlu0 %v1755
        %v1757 = vpop.xlane.xlu0 %1756
        %v1758 = vsel %vm1389, %v1318, 0.0
        %v1759 = vadd.f32 %v1317, %v1758
        %1760 = vadd.xlane.f32.xlu0 %v1759
        %v1761 = vpop.xlane.xlu0 %1760
        %v1762 = vsel %vm1389, %v1320, 0.0
        %v1763 = vadd.f32 %v1319, %v1762
        %1764 = vadd.xlane.f32.xlu0 %v1763
        %v1765 = vpop.xlane.xlu0 %1764
        %v1766 = vsel %vm1389, %v1322, 0.0
        %v1767 = vadd.f32 %v1321, %v1766
        %1768 = vadd.xlane.f32.xlu0 %v1767
        %v1769 = vpop.xlane.xlu0 %1768
        %v1770 = vsel %vm1389, %v1324, 0.0
        %v1771 = vadd.f32 %v1323, %v1770
        %1772 = vadd.xlane.f32.xlu0 %v1771
        %v1773 = vpop.xlane.xlu0 %1772
        %v1774 = vsel %vm1389, %v1326, 0.0
        %v1775 = vadd.f32 %v1325, %v1774
        %1776 = vadd.xlane.f32.xlu0 %v1775
        %v1777 = vpop.xlane.xlu0 %1776
        %v1778 = vsel %vm1389, %v1328, 0.0
        %v1779 = vadd.f32 %v1327, %v1778
        %1780 = vadd.xlane.f32.xlu0 %v1779
        %v1781 = vpop.xlane.xlu0 %1780
        %v1782 = vsel %vm1389, %v1330, 0.0
        %v1783 = vadd.f32 %v1329, %v1782
        %1784 = vadd.xlane.f32.xlu0 %v1783
        %v1785 = vpop.xlane.xlu0 %1784
        %v1786 = vsel %vm1389, %v1332, 0.0
        %v1787 = vadd.f32 %v1331, %v1786
        %1788 = vadd.xlane.f32.xlu0 %v1787
        %v1789 = vpop.xlane.xlu0 %1788
        %v1790 = vsel %vm1389, %v1334, 0.0
        %v1791 = vadd.f32 %v1333, %v1790
        %1792 = vadd.xlane.f32.xlu0 %v1791
        %v1793 = vpop.xlane.xlu0 %1792
        %v1794 = vsel %vm1389, %v1336, 0.0
        %v1795 = vadd.f32 %v1335, %v1794
        %1796 = vadd.xlane.f32.xlu0 %v1795
        %v1797 = vpop.xlane.xlu0 %1796
        %v1798 = vsel %vm1389, %v1338, 0.0
        %v1799 = vadd.f32 %v1337, %v1798
        %1800 = vadd.xlane.f32.xlu0 %v1799
        %v1801 = vpop.xlane.xlu0 %1800
        %v1802 = vsel %vm1389, %v1340, 0.0
        %v1803 = vadd.f32 %v1339, %v1802
        %1804 = vadd.xlane.f32.xlu0 %v1803
        %v1805 = vpop.xlane.xlu0 %1804
        %v1806 = vsel %vm1389, %v1342, 0.0
        %v1807 = vadd.f32 %v1341, %v1806
        %1808 = vadd.xlane.f32.xlu0 %v1807
        %v1809 = vpop.xlane.xlu0 %1808
        %v1810 = vsel %vm1389, %v1344, 0.0
        %v1811 = vadd.f32 %v1343, %v1810
        %1812 = vadd.xlane.f32.xlu0 %v1811
        %v1813 = vpop.xlane.xlu0 %1812
        %v1814 = vsel %vm1389, %v1346, 0.0
        %v1815 = vadd.f32 %v1345, %v1814
        %1816 = vadd.xlane.f32.xlu0 %v1815
        %v1817 = vpop.xlane.xlu0 %1816
        %v1818 = vsel %vm1389, %v1348, 0.0
        %v1819 = vadd.f32 %v1347, %v1818
        %1820 = vadd.xlane.f32.xlu0 %v1819
        %v1821 = vpop.xlane.xlu0 %1820
        %v1822 = vsel %vm1389, %v1350, 0.0
        %v1823 = vadd.f32 %v1349, %v1822
        %1824 = vadd.xlane.f32.xlu0 %v1823
        %v1825 = vpop.xlane.xlu0 %1824
        %v1826 = vsel %vm1389, %v1352, 0.0
        %v1827 = vadd.f32 %v1351, %v1826
        %1828 = vadd.xlane.f32.xlu0 %v1827
        %v1829 = vpop.xlane.xlu0 %1828
        %v1830 = vsel %vm1389, %v1354, 0.0
        %v1831 = vadd.f32 %v1353, %v1830
        %1832 = vadd.xlane.f32.xlu0 %v1831
        %v1833 = vpop.xlane.xlu0 %1832
        %v1834 = vsel %vm1389, %v1356, 0.0
        %v1835 = vadd.f32 %v1355, %v1834
        %1836 = vadd.xlane.f32.xlu0 %v1835
        %v1837 = vpop.xlane.xlu0 %1836
        %v1838 = vsel %vm1389, %v1358, 0.0
        %v1839 = vadd.f32 %v1357, %v1838
        %1840 = vadd.xlane.f32.xlu0 %v1839
        %v1841 = vpop.xlane.xlu0 %1840
        %v1842 = vsel %vm1389, %v1360, 0.0
        %v1843 = vadd.f32 %v1359, %v1842
        %1844 = vadd.xlane.f32.xlu0 %v1843
        %v1845 = vpop.xlane.xlu0 %1844
        %v1846 = vsel %vm1389, %v1362, 0.0
        %v1847 = vadd.f32 %v1361, %v1846
        %1848 = vadd.xlane.f32.xlu0 %v1847
        %v1849 = vpop.xlane.xlu0 %1848
        %v1850 = vsel %vm1389, %v1364, 0.0
        %v1851 = vadd.f32 %v1363, %v1850
        %1852 = vadd.xlane.f32.xlu0 %v1851
        %v1853 = vpop.xlane.xlu0 %1852
        %v1854 = vsel %vm1389, %v1366, 0.0
        %v1855 = vadd.f32 %v1365, %v1854
        %1856 = vadd.xlane.f32.xlu0 %v1855
        %v1857 = vpop.xlane.xlu0 %1856
        %v1858 = vsel %vm1389, %v1368, 0.0
        %v1859 = vadd.f32 %v1367, %v1858
        %1860 = vadd.xlane.f32.xlu0 %v1859
        %v1861 = vpop.xlane.xlu0 %1860
        %v1862 = vsel %vm1389, %v1370, 0.0
        %v1863 = vadd.f32 %v1369, %v1862
        %1864 = vadd.xlane.f32.xlu0 %v1863
        %v1865 = vpop.xlane.xlu0 %1864
        %v1866 = vsel %vm1389, %v1372, 0.0
        %v1867 = vadd.f32 %v1371, %v1866
        %1868 = vadd.xlane.f32.xlu0 %v1867
        %v1869 = vpop.xlane.xlu0 %1868
        %v1870 = vsel %vm1389, %v1374, 0.0
        %v1871 = vadd.f32 %v1373, %v1870
        %1872 = vadd.xlane.f32.xlu0 %v1871
        %v1873 = vpop.xlane.xlu0 %1872
        %v1874 = vsel %vm1389, %v1376, 0.0
        %v1875 = vadd.f32 %v1375, %v1874
        %1876 = vadd.xlane.f32.xlu0 %v1875
        %v1877 = vpop.xlane.xlu0 %1876
        %v1878 = vsel %vm1389, %v1378, 0.0
        %v1879 = vadd.f32 %v1377, %v1878
        %1880 = vadd.xlane.f32.xlu0 %v1879
        %v1881 = vpop.xlane.xlu0 %1880
        %v1882 = vsel %vm1389, %v1380, 0.0
        %v1883 = vadd.f32 %v1379, %v1882
        %1884 = vadd.xlane.f32.xlu0 %v1883
        %v1885 = vpop.xlane.xlu0 %1884
        %v1886 = vsel %vm1389, %v1382, 0.0
        %v1887 = vadd.f32 %v1381, %v1886
        %1888 = vadd.xlane.f32.xlu0 %v1887
        %v1889 = vpop.xlane.xlu0 %1888
        %v1890 = vsel %vm1389, %v1384, 0.0
        %v1891 = vadd.f32 %v1383, %v1890
        %1892 = vadd.xlane.f32.xlu0 %v1891
        %v1893 = vpop.xlane.xlu0 %1892
        %v1894 = vsel %vm1389, %v1386, 0.0
        %v1895 = vadd.f32 %v1385, %v1894
        %1896 = vadd.xlane.f32.xlu0 %v1895
        %v1897 = vpop.xlane.xlu0 %1896
        %v1898 = vsel %vm1389, %v1388, 0.0
        %v1899 = vadd.f32 %v1387, %v1898
        %1900 = vadd.xlane.f32.xlu0 %v1899
        %v1901 = vpop.xlane.xlu0 %1900
        %s1902 = sld [smem:[#allocation3]]
        %v1903 = vstv %s1902
        %v1904 = vadd.f32 %v1393, %v1903
        %v1905 = vadd.f32 %v1397, %v1903
        %v1906 = vadd.f32 %v1401, %v1903
        %v1907 = vadd.f32 %v1405, %v1903
        %v1908 = vadd.f32 %v1409, %v1903
        %v1909 = vadd.f32 %v1413, %v1903
        %v1910 = vadd.f32 %v1417, %v1903
        %v1911 = vadd.f32 %v1421, %v1903
        %v1912 = vadd.f32 %v1425, %v1903
        %v1913 = vadd.f32 %v1429, %v1903
        %v1914 = vadd.f32 %v1433, %v1903
        %v1915 = vadd.f32 %v1437, %v1903
        %v1916 = vadd.f32 %v1441, %v1903
        %v1917 = vadd.f32 %v1445, %v1903
        %v1918 = vadd.f32 %v1449, %v1903
        %v1919 = vadd.f32 %v1453, %v1903
        %v1920 = vadd.f32 %v1457, %v1903
        %v1921 = vadd.f32 %v1461, %v1903
        %v1922 = vadd.f32 %v1465, %v1903
        %v1923 = vadd.f32 %v1469, %v1903
        %v1924 = vadd.f32 %v1473, %v1903
        %v1925 = vadd.f32 %v1477, %v1903
        %v1926 = vadd.f32 %v1481, %v1903
        %v1927 = vadd.f32 %v1485, %v1903
        %v1928 = vadd.f32 %v1489, %v1903
        %v1929 = vadd.f32 %v1493, %v1903
        %v1930 = vadd.f32 %v1497, %v1903
        %v1931 = vadd.f32 %v1501, %v1903
        %v1932 = vadd.f32 %v1505, %v1903
        %v1933 = vadd.f32 %v1509, %v1903
        %v1934 = vadd.f32 %v1513, %v1903
        %v1935 = vadd.f32 %v1517, %v1903
        %v1936 = vadd.f32 %v1521, %v1903
        %v1937 = vadd.f32 %v1525, %v1903
        %v1938 = vadd.f32 %v1529, %v1903
        %v1939 = vadd.f32 %v1533, %v1903
        %v1940 = vadd.f32 %v1537, %v1903
        %v1941 = vadd.f32 %v1541, %v1903
        %v1942 = vadd.f32 %v1545, %v1903
        %v1943 = vadd.f32 %v1549, %v1903
        %v1944 = vadd.f32 %v1553, %v1903
        %v1945 = vadd.f32 %v1557, %v1903
        %v1946 = vadd.f32 %v1561, %v1903
        %v1947 = vadd.f32 %v1565, %v1903
        %v1948 = vadd.f32 %v1569, %v1903
        %v1949 = vadd.f32 %v1573, %v1903
        %v1950 = vadd.f32 %v1577, %v1903
        %v1951 = vadd.f32 %v1581, %v1903
        %v1952 = vadd.f32 %v1585, %v1903
        %v1953 = vadd.f32 %v1589, %v1903
        %v1954 = vadd.f32 %v1593, %v1903
        %v1955 = vadd.f32 %v1597, %v1903
        %v1956 = vadd.f32 %v1601, %v1903
        %v1957 = vadd.f32 %v1605, %v1903
        %v1958 = vadd.f32 %v1609, %v1903
        %v1959 = vadd.f32 %v1613, %v1903
        %v1960 = vadd.f32 %v1617, %v1903
        %v1961 = vadd.f32 %v1621, %v1903
        %v1962 = vadd.f32 %v1625, %v1903
        %v1963 = vadd.f32 %v1629, %v1903
        %v1964 = vadd.f32 %v1633, %v1903
        %v1965 = vadd.f32 %v1637, %v1903
        %v1966 = vadd.f32 %v1641, %v1903
        %v1967 = vadd.f32 %v1645, %v1903
        %v1968 = vadd.f32 %v1649, %v1903
        %v1969 = vadd.f32 %v1653, %v1903
        %v1970 = vadd.f32 %v1657, %v1903
        %v1971 = vadd.f32 %v1661, %v1903
        %v1972 = vadd.f32 %v1665, %v1903
        %v1973 = vadd.f32 %v1669, %v1903
        %v1974 = vadd.f32 %v1673, %v1903
        %v1975 = vadd.f32 %v1677, %v1903
        %v1976 = vadd.f32 %v1681, %v1903
        %v1977 = vadd.f32 %v1685, %v1903
        %v1978 = vadd.f32 %v1689, %v1903
        %v1979 = vadd.f32 %v1693, %v1903
        %v1980 = vadd.f32 %v1697, %v1903
        %v1981 = vadd.f32 %v1701, %v1903
        %v1982 = vadd.f32 %v1705, %v1903
        %v1983 = vadd.f32 %v1709, %v1903
        %v1984 = vadd.f32 %v1713, %v1903
        %v1985 = vadd.f32 %v1717, %v1903
        %v1986 = vadd.f32 %v1721, %v1903
        %v1987 = vadd.f32 %v1725, %v1903
        %v1988 = vadd.f32 %v1729, %v1903
        %v1989 = vadd.f32 %v1733, %v1903
        %v1990 = vadd.f32 %v1737, %v1903
        %v1991 = vadd.f32 %v1741, %v1903
        %v1992 = vadd.f32 %v1745, %v1903
        %v1993 = vadd.f32 %v1749, %v1903
        %v1994 = vadd.f32 %v1753, %v1903
        %v1995 = vadd.f32 %v1757, %v1903
        %v1996 = vadd.f32 %v1761, %v1903
        %v1997 = vadd.f32 %v1765, %v1903
        %v1998 = vadd.f32 %v1769, %v1903
        %v1999 = vadd.f32 %v1773, %v1903
        %v2000 = vadd.f32 %v1777, %v1903
        %v2001 = vadd.f32 %v1781, %v1903
        %v2002 = vadd.f32 %v1785, %v1903
        %v2003 = vadd.f32 %v1789, %v1903
        %v2004 = vadd.f32 %v1793, %v1903
        %v2005 = vadd.f32 %v1797, %v1903
        %v2006 = vadd.f32 %v1801, %v1903
        %v2007 = vadd.f32 %v1805, %v1903
        %v2008 = vadd.f32 %v1809, %v1903
        %v2009 = vadd.f32 %v1813, %v1903
        %v2010 = vadd.f32 %v1817, %v1903
        %v2011 = vadd.f32 %v1821, %v1903
        %v2012 = vadd.f32 %v1825, %v1903
        %v2013 = vadd.f32 %v1829, %v1903
        %v2014 = vadd.f32 %v1833, %v1903
        %v2015 = vadd.f32 %v1837, %v1903
        %v2016 = vadd.f32 %v1841, %v1903
        %v2017 = vadd.f32 %v1845, %v1903
        %v2018 = vadd.f32 %v1849, %v1903
        %v2019 = vadd.f32 %v1853, %v1903
        %v2020 = vadd.f32 %v1857, %v1903
        %v2021 = vadd.f32 %v1861, %v1903
        %v2022 = vadd.f32 %v1865, %v1903
        %v2023 = vadd.f32 %v1869, %v1903
        %v2024 = vadd.f32 %v1873, %v1903
        %v2025 = vadd.f32 %v1877, %v1903
        %v2026 = vadd.f32 %v1881, %v1903
        %v2027 = vadd.f32 %v1885, %v1903
        %v2028 = vadd.f32 %v1889, %v1903
        %v2029 = vadd.f32 %v1893, %v1903
        %v2030 = vadd.f32 %v1897, %v1903
        %v2031 = vadd.f32 %v1901, %v1903
        %s2032 = smul.u32 %s27, 256
        %v2033 = vlaneseq
        %v2034 = vand.u32 %v2033, 127
        %v2035 = vadd.s32 %v2034, 128
        %v2036 = vstv %s2032
        %v2037 = vadd.s32 %v2036, %v2034
        %v2038 = vadd.s32 %v2036, %v2035
        %vm2039 = vcmp.lt.s32.totalorder %v2037, 900
        %vm2040 = vcmp.lt.s32.totalorder %v2038, 900
        %v2041 = vmax.f32 %v1904, 0.0
        %v2042 = vmax.f32 %v1905, 0.0
        %v2043 = vmax.f32 %v1906, 0.0
        %v2044 = vmax.f32 %v1907, 0.0
        %v2045 = vmax.f32 %v1908, 0.0
        %v2046 = vmax.f32 %v1909, 0.0
        %v2047 = vmax.f32 %v1910, 0.0
        %v2048 = vmax.f32 %v1911, 0.0
        %v2049 = vmax.f32 %v1912, 0.0
        %v2050 = vmax.f32 %v1913, 0.0
        %v2051 = vmax.f32 %v1914, 0.0
        %v2052 = vmax.f32 %v1915, 0.0
        %v2053 = vmax.f32 %v1916, 0.0
        %v2054 = vmax.f32 %v1917, 0.0
        %v2055 = vmax.f32 %v1918, 0.0
        %v2056 = vmax.f32 %v1919, 0.0
        %v2057 = vmax.f32 %v1920, 0.0
        %v2058 = vmax.f32 %v1921, 0.0
        %v2059 = vmax.f32 %v1922, 0.0
        %v2060 = vmax.f32 %v1923, 0.0
        %v2061 = vmax.f32 %v1924, 0.0
        %v2062 = vmax.f32 %v1925, 0.0
        %v2063 = vmax.f32 %v1926, 0.0
        %v2064 = vmax.f32 %v1927, 0.0
        %v2065 = vmax.f32 %v1928, 0.0
        %v2066 = vmax.f32 %v1929, 0.0
        %v2067 = vmax.f32 %v1930, 0.0
        %v2068 = vmax.f32 %v1931, 0.0
        %v2069 = vmax.f32 %v1932, 0.0
        %v2070 = vmax.f32 %v1933, 0.0
        %v2071 = vmax.f32 %v1934, 0.0
        %v2072 = vmax.f32 %v1935, 0.0
        %v2073 = vmax.f32 %v1936, 0.0
        %v2074 = vmax.f32 %v1937, 0.0
        %v2075 = vmax.f32 %v1938, 0.0
        %v2076 = vmax.f32 %v1939, 0.0
        %v2077 = vmax.f32 %v1940, 0.0
        %v2078 = vmax.f32 %v1941, 0.0
        %v2079 = vmax.f32 %v1942, 0.0
        %v2080 = vmax.f32 %v1943, 0.0
        %v2081 = vmax.f32 %v1944, 0.0
        %v2082 = vmax.f32 %v1945, 0.0
        %v2083 = vmax.f32 %v1946, 0.0
        %v2084 = vmax.f32 %v1947, 0.0
        %v2085 = vmax.f32 %v1948, 0.0
        %v2086 = vmax.f32 %v1949, 0.0
        %v2087 = vmax.f32 %v1950, 0.0
        %v2088 = vmax.f32 %v1951, 0.0
        %v2089 = vmax.f32 %v1952, 0.0
        %v2090 = vmax.f32 %v1953, 0.0
        %v2091 = vmax.f32 %v1954, 0.0
        %v2092 = vmax.f32 %v1955, 0.0
        %v2093 = vmax.f32 %v1956, 0.0
        %v2094 = vmax.f32 %v1957, 0.0
        %v2095 = vmax.f32 %v1958, 0.0
        %v2096 = vmax.f32 %v1959, 0.0
        %v2097 = vmax.f32 %v1960, 0.0
        %v2098 = vmax.f32 %v1961, 0.0
        %v2099 = vmax.f32 %v1962, 0.0
        %v2100 = vmax.f32 %v1963, 0.0
        %v2101 = vmax.f32 %v1964, 0.0
        %v2102 = vmax.f32 %v1965, 0.0
        %v2103 = vmax.f32 %v1966, 0.0
        %v2104 = vmax.f32 %v1967, 0.0
        %v2105 = vmax.f32 %v1968, 0.0
        %v2106 = vmax.f32 %v1969, 0.0
        %v2107 = vmax.f32 %v1970, 0.0
        %v2108 = vmax.f32 %v1971, 0.0
        %v2109 = vmax.f32 %v1972, 0.0
        %v2110 = vmax.f32 %v1973, 0.0
        %v2111 = vmax.f32 %v1974, 0.0
        %v2112 = vmax.f32 %v1975, 0.0
        %v2113 = vmax.f32 %v1976, 0.0
        %v2114 = vmax.f32 %v1977, 0.0
        %v2115 = vmax.f32 %v1978, 0.0
        %v2116 = vmax.f32 %v1979, 0.0
        %v2117 = vmax.f32 %v1980, 0.0
        %v2118 = vmax.f32 %v1981, 0.0
        %v2119 = vmax.f32 %v1982, 0.0
        %v2120 = vmax.f32 %v1983, 0.0
        %v2121 = vmax.f32 %v1984, 0.0
        %v2122 = vmax.f32 %v1985, 0.0
        %v2123 = vmax.f32 %v1986, 0.0
        %v2124 = vmax.f32 %v1987, 0.0
        %v2125 = vmax.f32 %v1988, 0.0
        %v2126 = vmax.f32 %v1989, 0.0
        %v2127 = vmax.f32 %v1990, 0.0
        %v2128 = vmax.f32 %v1991, 0.0
        %v2129 = vmax.f32 %v1992, 0.0
        %v2130 = vmax.f32 %v1993, 0.0
        %v2131 = vmax.f32 %v1994, 0.0
        %v2132 = vmax.f32 %v1995, 0.0
        %v2133 = vmax.f32 %v1996, 0.0
        %v2134 = vmax.f32 %v1997, 0.0
        %v2135 = vmax.f32 %v1998, 0.0
        %v2136 = vmax.f32 %v1999, 0.0
        %v2137 = vmax.f32 %v2000, 0.0
        %v2138 = vmax.f32 %v2001, 0.0
        %v2139 = vmax.f32 %v2002, 0.0
        %v2140 = vmax.f32 %v2003, 0.0
        %v2141 = vmax.f32 %v2004, 0.0
        %v2142 = vmax.f32 %v2005, 0.0
        %v2143 = vmax.f32 %v2006, 0.0
        %v2144 = vmax.f32 %v2007, 0.0
        %v2145 = vmax.f32 %v2008, 0.0
        %v2146 = vmax.f32 %v2009, 0.0
        %v2147 = vmax.f32 %v2010, 0.0
        %v2148 = vmax.f32 %v2011, 0.0
        %v2149 = vmax.f32 %v2012, 0.0
        %v2150 = vmax.f32 %v2013, 0.0
        %v2151 = vmax.f32 %v2014, 0.0
        %v2152 = vmax.f32 %v2015, 0.0
        %v2153 = vmax.f32 %v2016, 0.0
        %v2154 = vmax.f32 %v2017, 0.0
        %v2155 = vmax.f32 %v2018, 0.0
        %v2156 = vmax.f32 %v2019, 0.0
        %v2157 = vmax.f32 %v2020, 0.0
        %v2158 = vmax.f32 %v2021, 0.0
        %v2159 = vmax.f32 %v2022, 0.0
        %v2160 = vmax.f32 %v2023, 0.0
        %v2161 = vmax.f32 %v2024, 0.0
        %v2162 = vmax.f32 %v2025, 0.0
        %v2163 = vmax.f32 %v2026, 0.0
        %v2164 = vmax.f32 %v2027, 0.0
        %v2165 = vmax.f32 %v2028, 0.0
        %v2166 = vmax.f32 %v2029, 0.0
        %v2167 = vmax.f32 %v2030, 0.0
        %v2168 = vmax.f32 %v2031, 0.0
        %v2169 = vsel %vm2039, 1, 0
        %v2170 = vsel %vm2040, 1, 0
        %vm2171 = vcmp.eq.s32.totalorder %v2169, 1
        %vm2172 = vcmp.eq.s32.totalorder %v2170, 1
        %v2301 = vlaneseq
        %v2302 = vshrl.u32 %v2301, 7
        %v2303 = vsub.s32 %v2034, %v2302
        %v2304 = vrot.slane %v2041, %v2303
        %v2305 = vadd.s32 %v2034, 4294967288
        %v2306 = vlaneseq
        %v2307 = vshrl.u32 %v2306, 7
        %v2308 = vsub.s32 %v2305, %v2307
        %v2309 = vrot.slane %v2042, %v2308
        %vm2310 = vcmask 130112
        %v2311 = vsel %vm2310, %v2309, %v2304
        %v2312 = vadd.s32 %v2034, 4294967280
        %v2313 = vlaneseq
        %v2314 = vshrl.u32 %v2313, 7
        %v2315 = vsub.s32 %v2312, %v2314
        %v2316 = vrot.slane %v2043, %v2315
        %vm2317 = vcmask 195712
        %v2318 = vsel %vm2317, %v2316, %v2311
        %v2319 = vadd.s32 %v2034, 4294967272
        %v2320 = vlaneseq
        %v2321 = vshrl.u32 %v2320, 7
        %v2322 = vsub.s32 %v2319, %v2321
        %v2323 = vrot.slane %v2044, %v2322
        %vm2324 = vcmask 261312
        %v2325 = vsel %vm2324, %v2323, %v2318
        %v2326 = vadd.s32 %v2034, 4294967264
        %v2327 = vlaneseq
        %v2328 = vshrl.u32 %v2327, 7
        %v2329 = vsub.s32 %v2326, %v2328
        %v2330 = vrot.slane %v2045, %v2329
        %vm2331 = vcmask 326912
        %v2332 = vsel %vm2331, %v2330, %v2325
        %v2333 = vadd.s32 %v2034, 4294967256
        %v2334 = vlaneseq
        %v2335 = vshrl.u32 %v2334, 7
        %v2336 = vsub.s32 %v2333, %v2335
        %v2337 = vrot.slane %v2046, %v2336
        %vm2338 = vcmask 392512
        %v2339 = vsel %vm2338, %v2337, %v2332
        %v2340 = vadd.s32 %v2034, 4294967248
        %v2341 = vlaneseq
        %v2342 = vshrl.u32 %v2341, 7
        %v2343 = vsub.s32 %v2340, %v2342
        %v2344 = vrot.slane %v2047, %v2343
        %vm2345 = vcmask 458112
        %v2346 = vsel %vm2345, %v2344, %v2339
        %v2347 = vadd.s32 %v2034, 4294967240
        %v2348 = vlaneseq
        %v2349 = vshrl.u32 %v2348, 7
        %v2350 = vsub.s32 %v2347, %v2349
        %v2351 = vrot.slane %v2048, %v2350
        %vm2352 = vcmask 523712
        %v2353 = vsel %vm2352, %v2351, %v2346
        %v2354 = vadd.s32 %v2034, 4294967232
        %v2355 = vlaneseq
        %v2356 = vshrl.u32 %v2355, 7
        %v2357 = vsub.s32 %v2354, %v2356
        %v2358 = vrot.slane %v2049, %v2357
        %vm2359 = vcmask 589312
        %v2360 = vsel %vm2359, %v2358, %v2353
        %v2361 = vadd.s32 %v2034, 4294967224
        %v2362 = vlaneseq
        %v2363 = vshrl.u32 %v2362, 7
        %v2364 = vsub.s32 %v2361, %v2363
        %v2365 = vrot.slane %v2050, %v2364
        %vm2366 = vcmask 654912
        %v2367 = vsel %vm2366, %v2365, %v2360
        %v2368 = vadd.s32 %v2034, 4294967216
        %v2369 = vlaneseq
        %v2370 = vshrl.u32 %v2369, 7
        %v2371 = vsub.s32 %v2368, %v2370
        %v2372 = vrot.slane %v2051, %v2371
        %vm2373 = vcmask 720512
        %v2374 = vsel %vm2373, %v2372, %v2367
        %v2375 = vadd.s32 %v2034, 4294967208
        %v2376 = vlaneseq
        %v2377 = vshrl.u32 %v2376, 7
        %v2378 = vsub.s32 %v2375, %v2377
        %v2379 = vrot.slane %v2052, %v2378
        %vm2380 = vcmask 786112
        %v2381 = vsel %vm2380, %v2379, %v2374
        %v2382 = vadd.s32 %v2034, 4294967200
        %v2383 = vlaneseq
        %v2384 = vshrl.u32 %v2383, 7
        %v2385 = vsub.s32 %v2382, %v2384
        %v2386 = vrot.slane %v2053, %v2385
        %vm2387 = vcmask 851712
        %v2388 = vsel %vm2387, %v2386, %v2381
        %v2389 = vadd.s32 %v2034, 4294967192
        %v2390 = vlaneseq
        %v2391 = vshrl.u32 %v2390, 7
        %v2392 = vsub.s32 %v2389, %v2391
        %v2393 = vrot.slane %v2054, %v2392
        %vm2394 = vcmask 917312
        %v2395 = vsel %vm2394, %v2393, %v2388
        %v2396 = vadd.s32 %v2034, 4294967184
        %v2397 = vlaneseq
        %v2398 = vshrl.u32 %v2397, 7
        %v2399 = vsub.s32 %v2396, %v2398
        %v2400 = vrot.slane %v2055, %v2399
        %vm2401 = vcmask 982912
        %v2402 = vsel %vm2401, %v2400, %v2395
        %v2403 = vadd.s32 %v2034, 4294967176
        %v2404 = vlaneseq
        %v2405 = vshrl.u32 %v2404, 7
        %v2406 = vsub.s32 %v2403, %v2405
        %v2407 = vrot.slane %v2056, %v2406
        %vm2408 = vcmask 1048512
        %v2409 = vsel %vm2408, %v2407, %v2402
        %v2410 = vlaneseq
        %v2411 = vshrl.u32 %v2410, 7
        %v2412 = vsub.s32 %v2034, %v2411
        %v2413 = vrot.slane %v2057, %v2412
        %v2414 = vlaneseq
        %v2415 = vshrl.u32 %v2414, 7
        %v2416 = vsub.s32 %v2305, %v2415
        %v2417 = vrot.slane %v2058, %v2416
        %v2418 = vsel %vm2310, %v2417, %v2413
        %v2419 = vlaneseq
        %v2420 = vshrl.u32 %v2419, 7
        %v2421 = vsub.s32 %v2312, %v2420
        %v2422 = vrot.slane %v2059, %v2421
        %v2423 = vsel %vm2317, %v2422, %v2418
        %v2424 = vlaneseq
        %v2425 = vshrl.u32 %v2424, 7
        %v2426 = vsub.s32 %v2319, %v2425
        %v2427 = vrot.slane %v2060, %v2426
        %v2428 = vsel %vm2324, %v2427, %v2423
        %v2429 = vlaneseq
        %v2430 = vshrl.u32 %v2429, 7
        %v2431 = vsub.s32 %v2326, %v2430
        %v2432 = vrot.slane %v2061, %v2431
        %v2433 = vsel %vm2331, %v2432, %v2428
        %v2434 = vlaneseq
        %v2435 = vshrl.u32 %v2434, 7
        %v2436 = vsub.s32 %v2333, %v2435
        %v2437 = vrot.slane %v2062, %v2436
        %v2438 = vsel %vm2338, %v2437, %v2433
        %v2439 = vlaneseq
        %v2440 = vshrl.u32 %v2439, 7
        %v2441 = vsub.s32 %v2340, %v2440
        %v2442 = vrot.slane %v2063, %v2441
        %v2443 = vsel %vm2345, %v2442, %v2438
        %v2444 = vlaneseq
        %v2445 = vshrl.u32 %v2444, 7
        %v2446 = vsub.s32 %v2347, %v2445
        %v2447 = vrot.slane %v2064, %v2446
        %v2448 = vsel %vm2352, %v2447, %v2443
        %v2449 = vlaneseq
        %v2450 = vshrl.u32 %v2449, 7
        %v2451 = vsub.s32 %v2354, %v2450
        %v2452 = vrot.slane %v2065, %v2451
        %v2453 = vsel %vm2359, %v2452, %v2448
        %v2454 = vlaneseq
        %v2455 = vshrl.u32 %v2454, 7
        %v2456 = vsub.s32 %v2361, %v2455
        %v2457 = vrot.slane %v2066, %v2456
        %v2458 = vsel %vm2366, %v2457, %v2453
        %v2459 = vlaneseq
        %v2460 = vshrl.u32 %v2459, 7
        %v2461 = vsub.s32 %v2368, %v2460
        %v2462 = vrot.slane %v2067, %v2461
        %v2463 = vsel %vm2373, %v2462, %v2458
        %v2464 = vlaneseq
        %v2465 = vshrl.u32 %v2464, 7
        %v2466 = vsub.s32 %v2375, %v2465
        %v2467 = vrot.slane %v2068, %v2466
        %v2468 = vsel %vm2380, %v2467, %v2463
        %v2469 = vlaneseq
        %v2470 = vshrl.u32 %v2469, 7
        %v2471 = vsub.s32 %v2382, %v2470
        %v2472 = vrot.slane %v2069, %v2471
        %v2473 = vsel %vm2387, %v2472, %v2468
        %v2474 = vlaneseq
        %v2475 = vshrl.u32 %v2474, 7
        %v2476 = vsub.s32 %v2389, %v2475
        %v2477 = vrot.slane %v2070, %v2476
        %v2478 = vsel %vm2394, %v2477, %v2473
        %v2479 = vlaneseq
        %v2480 = vshrl.u32 %v2479, 7
        %v2481 = vsub.s32 %v2396, %v2480
        %v2482 = vrot.slane %v2071, %v2481
        %v2483 = vsel %vm2401, %v2482, %v2478
        %v2484 = vlaneseq
        %v2485 = vshrl.u32 %v2484, 7
        %v2486 = vsub.s32 %v2403, %v2485
        %v2487 = vrot.slane %v2072, %v2486
        %v2488 = vsel %vm2408, %v2487, %v2483
        %v2489 = vlaneseq
        %v2490 = vshrl.u32 %v2489, 7
        %v2491 = vsub.s32 %v2034, %v2490
        %v2492 = vrot.slane %v2073, %v2491
        %v2493 = vlaneseq
        %v2494 = vshrl.u32 %v2493, 7
        %v2495 = vsub.s32 %v2305, %v2494
        %v2496 = vrot.slane %v2074, %v2495
        %v2497 = vsel %vm2310, %v2496, %v2492
        %v2498 = vlaneseq
        %v2499 = vshrl.u32 %v2498, 7
        %v2500 = vsub.s32 %v2312, %v2499
        %v2501 = vrot.slane %v2075, %v2500
        %v2502 = vsel %vm2317, %v2501, %v2497
        %v2503 = vlaneseq
        %v2504 = vshrl.u32 %v2503, 7
        %v2505 = vsub.s32 %v2319, %v2504
        %v2506 = vrot.slane %v2076, %v2505
        %v2507 = vsel %vm2324, %v2506, %v2502
        %v2508 = vlaneseq
        %v2509 = vshrl.u32 %v2508, 7
        %v2510 = vsub.s32 %v2326, %v2509
        %v2511 = vrot.slane %v2077, %v2510
        %v2512 = vsel %vm2331, %v2511, %v2507
        %v2513 = vlaneseq
        %v2514 = vshrl.u32 %v2513, 7
        %v2515 = vsub.s32 %v2333, %v2514
        %v2516 = vrot.slane %v2078, %v2515
        %v2517 = vsel %vm2338, %v2516, %v2512
        %v2518 = vlaneseq
        %v2519 = vshrl.u32 %v2518, 7
        %v2520 = vsub.s32 %v2340, %v2519
        %v2521 = vrot.slane %v2079, %v2520
        %v2522 = vsel %vm2345, %v2521, %v2517
        %v2523 = vlaneseq
        %v2524 = vshrl.u32 %v2523, 7
        %v2525 = vsub.s32 %v2347, %v2524
        %v2526 = vrot.slane %v2080, %v2525
        %v2527 = vsel %vm2352, %v2526, %v2522
        %v2528 = vlaneseq
        %v2529 = vshrl.u32 %v2528, 7
        %v2530 = vsub.s32 %v2354, %v2529
        %v2531 = vrot.slane %v2081, %v2530
        %v2532 = vsel %vm2359, %v2531, %v2527
        %v2533 = vlaneseq
        %v2534 = vshrl.u32 %v2533, 7
        %v2535 = vsub.s32 %v2361, %v2534
        %v2536 = vrot.slane %v2082, %v2535
        %v2537 = vsel %vm2366, %v2536, %v2532
        %v2538 = vlaneseq
        %v2539 = vshrl.u32 %v2538, 7
        %v2540 = vsub.s32 %v2368, %v2539
        %v2541 = vrot.slane %v2083, %v2540
        %v2542 = vsel %vm2373, %v2541, %v2537
        %v2543 = vlaneseq
        %v2544 = vshrl.u32 %v2543, 7
        %v2545 = vsub.s32 %v2375, %v2544
        %v2546 = vrot.slane %v2084, %v2545
        %v2547 = vsel %vm2380, %v2546, %v2542
        %v2548 = vlaneseq
        %v2549 = vshrl.u32 %v2548, 7
        %v2550 = vsub.s32 %v2382, %v2549
        %v2551 = vrot.slane %v2085, %v2550
        %v2552 = vsel %vm2387, %v2551, %v2547
        %v2553 = vlaneseq
        %v2554 = vshrl.u32 %v2553, 7
        %v2555 = vsub.s32 %v2389, %v2554
        %v2556 = vrot.slane %v2086, %v2555
        %v2557 = vsel %vm2394, %v2556, %v2552
        %v2558 = vlaneseq
        %v2559 = vshrl.u32 %v2558, 7
        %v2560 = vsub.s32 %v2396, %v2559
        %v2561 = vrot.slane %v2087, %v2560
        %v2562 = vsel %vm2401, %v2561, %v2557
        %v2563 = vlaneseq
        %v2564 = vshrl.u32 %v2563, 7
        %v2565 = vsub.s32 %v2403, %v2564
        %v2566 = vrot.slane %v2088, %v2565
        %v2567 = vsel %vm2408, %v2566, %v2562
        %v2568 = vlaneseq
        %v2569 = vshrl.u32 %v2568, 7
        %v2570 = vsub.s32 %v2034, %v2569
        %v2571 = vrot.slane %v2089, %v2570
        %v2572 = vlaneseq
        %v2573 = vshrl.u32 %v2572, 7
        %v2574 = vsub.s32 %v2305, %v2573
        %v2575 = vrot.slane %v2090, %v2574
        %v2576 = vsel %vm2310, %v2575, %v2571
        %v2577 = vlaneseq
        %v2578 = vshrl.u32 %v2577, 7
        %v2579 = vsub.s32 %v2312, %v2578
        %v2580 = vrot.slane %v2091, %v2579
        %v2581 = vsel %vm2317, %v2580, %v2576
        %v2582 = vlaneseq
        %v2583 = vshrl.u32 %v2582, 7
        %v2584 = vsub.s32 %v2319, %v2583
        %v2585 = vrot.slane %v2092, %v2584
        %v2586 = vsel %vm2324, %v2585, %v2581
        %v2587 = vlaneseq
        %v2588 = vshrl.u32 %v2587, 7
        %v2589 = vsub.s32 %v2326, %v2588
        %v2590 = vrot.slane %v2093, %v2589
        %v2591 = vsel %vm2331, %v2590, %v2586
        %v2592 = vlaneseq
        %v2593 = vshrl.u32 %v2592, 7
        %v2594 = vsub.s32 %v2333, %v2593
        %v2595 = vrot.slane %v2094, %v2594
        %v2596 = vsel %vm2338, %v2595, %v2591
        %v2597 = vlaneseq
        %v2598 = vshrl.u32 %v2597, 7
        %v2599 = vsub.s32 %v2340, %v2598
        %v2600 = vrot.slane %v2095, %v2599
        %v2601 = vsel %vm2345, %v2600, %v2596
        %v2602 = vlaneseq
        %v2603 = vshrl.u32 %v2602, 7
        %v2604 = vsub.s32 %v2347, %v2603
        %v2605 = vrot.slane %v2096, %v2604
        %v2606 = vsel %vm2352, %v2605, %v2601
        %v2607 = vlaneseq
        %v2608 = vshrl.u32 %v2607, 7
        %v2609 = vsub.s32 %v2354, %v2608
        %v2610 = vrot.slane %v2097, %v2609
        %v2611 = vsel %vm2359, %v2610, %v2606
        %v2612 = vlaneseq
        %v2613 = vshrl.u32 %v2612, 7
        %v2614 = vsub.s32 %v2361, %v2613
        %v2615 = vrot.slane %v2098, %v2614
        %v2616 = vsel %vm2366, %v2615, %v2611
        %v2617 = vlaneseq
        %v2618 = vshrl.u32 %v2617, 7
        %v2619 = vsub.s32 %v2368, %v2618
        %v2620 = vrot.slane %v2099, %v2619
        %v2621 = vsel %vm2373, %v2620, %v2616
        %v2622 = vlaneseq
        %v2623 = vshrl.u32 %v2622, 7
        %v2624 = vsub.s32 %v2375, %v2623
        %v2625 = vrot.slane %v2100, %v2624
        %v2626 = vsel %vm2380, %v2625, %v2621
        %v2627 = vlaneseq
        %v2628 = vshrl.u32 %v2627, 7
        %v2629 = vsub.s32 %v2382, %v2628
        %v2630 = vrot.slane %v2101, %v2629
        %v2631 = vsel %vm2387, %v2630, %v2626
        %v2632 = vlaneseq
        %v2633 = vshrl.u32 %v2632, 7
        %v2634 = vsub.s32 %v2389, %v2633
        %v2635 = vrot.slane %v2102, %v2634
        %v2636 = vsel %vm2394, %v2635, %v2631
        %v2637 = vlaneseq
        %v2638 = vshrl.u32 %v2637, 7
        %v2639 = vsub.s32 %v2396, %v2638
        %v2640 = vrot.slane %v2103, %v2639
        %v2641 = vsel %vm2401, %v2640, %v2636
        %v2642 = vlaneseq
        %v2643 = vshrl.u32 %v2642, 7
        %v2644 = vsub.s32 %v2403, %v2643
        %v2645 = vrot.slane %v2104, %v2644
        %v2646 = vsel %vm2408, %v2645, %v2641
        %v2647 = vlaneseq
        %v2648 = vshrl.u32 %v2647, 7
        %v2649 = vsub.s32 %v2034, %v2648
        %v2650 = vrot.slane %v2105, %v2649
        %v2651 = vlaneseq
        %v2652 = vshrl.u32 %v2651, 7
        %v2653 = vsub.s32 %v2305, %v2652
        %v2654 = vrot.slane %v2106, %v2653
        %v2655 = vsel %vm2310, %v2654, %v2650
        %v2656 = vlaneseq
        %v2657 = vshrl.u32 %v2656, 7
        %v2658 = vsub.s32 %v2312, %v2657
        %v2659 = vrot.slane %v2107, %v2658
        %v2660 = vsel %vm2317, %v2659, %v2655
        %v2661 = vlaneseq
        %v2662 = vshrl.u32 %v2661, 7
        %v2663 = vsub.s32 %v2319, %v2662
        %v2664 = vrot.slane %v2108, %v2663
        %v2665 = vsel %vm2324, %v2664, %v2660
        %v2666 = vlaneseq
        %v2667 = vshrl.u32 %v2666, 7
        %v2668 = vsub.s32 %v2326, %v2667
        %v2669 = vrot.slane %v2109, %v2668
        %v2670 = vsel %vm2331, %v2669, %v2665
        %v2671 = vlaneseq
        %v2672 = vshrl.u32 %v2671, 7
        %v2673 = vsub.s32 %v2333, %v2672
        %v2674 = vrot.slane %v2110, %v2673
        %v2675 = vsel %vm2338, %v2674, %v2670
        %v2676 = vlaneseq
        %v2677 = vshrl.u32 %v2676, 7
        %v2678 = vsub.s32 %v2340, %v2677
        %v2679 = vrot.slane %v2111, %v2678
        %v2680 = vsel %vm2345, %v2679, %v2675
        %v2681 = vlaneseq
        %v2682 = vshrl.u32 %v2681, 7
        %v2683 = vsub.s32 %v2347, %v2682
        %v2684 = vrot.slane %v2112, %v2683
        %v2685 = vsel %vm2352, %v2684, %v2680
        %v2686 = vlaneseq
        %v2687 = vshrl.u32 %v2686, 7
        %v2688 = vsub.s32 %v2354, %v2687
        %v2689 = vrot.slane %v2113, %v2688
        %v2690 = vsel %vm2359, %v2689, %v2685
        %v2691 = vlaneseq
        %v2692 = vshrl.u32 %v2691, 7
        %v2693 = vsub.s32 %v2361, %v2692
        %v2694 = vrot.slane %v2114, %v2693
        %v2695 = vsel %vm2366, %v2694, %v2690
        %v2696 = vlaneseq
        %v2697 = vshrl.u32 %v2696, 7
        %v2698 = vsub.s32 %v2368, %v2697
        %v2699 = vrot.slane %v2115, %v2698
        %v2700 = vsel %vm2373, %v2699, %v2695
        %v2701 = vlaneseq
        %v2702 = vshrl.u32 %v2701, 7
        %v2703 = vsub.s32 %v2375, %v2702
        %v2704 = vrot.slane %v2116, %v2703
        %v2705 = vsel %vm2380, %v2704, %v2700
        %v2706 = vlaneseq
        %v2707 = vshrl.u32 %v2706, 7
        %v2708 = vsub.s32 %v2382, %v2707
        %v2709 = vrot.slane %v2117, %v2708
        %v2710 = vsel %vm2387, %v2709, %v2705
        %v2711 = vlaneseq
        %v2712 = vshrl.u32 %v2711, 7
        %v2713 = vsub.s32 %v2389, %v2712
        %v2714 = vrot.slane %v2118, %v2713
        %v2715 = vsel %vm2394, %v2714, %v2710
        %v2716 = vlaneseq
        %v2717 = vshrl.u32 %v2716, 7
        %v2718 = vsub.s32 %v2396, %v2717
        %v2719 = vrot.slane %v2119, %v2718
        %v2720 = vsel %vm2401, %v2719, %v2715
        %v2721 = vlaneseq
        %v2722 = vshrl.u32 %v2721, 7
        %v2723 = vsub.s32 %v2403, %v2722
        %v2724 = vrot.slane %v2120, %v2723
        %v2725 = vsel %vm2408, %v2724, %v2720
        %v2726 = vlaneseq
        %v2727 = vshrl.u32 %v2726, 7
        %v2728 = vsub.s32 %v2034, %v2727
        %v2729 = vrot.slane %v2121, %v2728
        %v2730 = vlaneseq
        %v2731 = vshrl.u32 %v2730, 7
        %v2732 = vsub.s32 %v2305, %v2731
        %v2733 = vrot.slane %v2122, %v2732
        %v2734 = vsel %vm2310, %v2733, %v2729
        %v2735 = vlaneseq
        %v2736 = vshrl.u32 %v2735, 7
        %v2737 = vsub.s32 %v2312, %v2736
        %v2738 = vrot.slane %v2123, %v2737
        %v2739 = vsel %vm2317, %v2738, %v2734
        %v2740 = vlaneseq
        %v2741 = vshrl.u32 %v2740, 7
        %v2742 = vsub.s32 %v2319, %v2741
        %v2743 = vrot.slane %v2124, %v2742
        %v2744 = vsel %vm2324, %v2743, %v2739
        %v2745 = vlaneseq
        %v2746 = vshrl.u32 %v2745, 7
        %v2747 = vsub.s32 %v2326, %v2746
        %v2748 = vrot.slane %v2125, %v2747
        %v2749 = vsel %vm2331, %v2748, %v2744
        %v2750 = vlaneseq
        %v2751 = vshrl.u32 %v2750, 7
        %v2752 = vsub.s32 %v2333, %v2751
        %v2753 = vrot.slane %v2126, %v2752
        %v2754 = vsel %vm2338, %v2753, %v2749
        %v2755 = vlaneseq
        %v2756 = vshrl.u32 %v2755, 7
        %v2757 = vsub.s32 %v2340, %v2756
        %v2758 = vrot.slane %v2127, %v2757
        %v2759 = vsel %vm2345, %v2758, %v2754
        %v2760 = vlaneseq
        %v2761 = vshrl.u32 %v2760, 7
        %v2762 = vsub.s32 %v2347, %v2761
        %v2763 = vrot.slane %v2128, %v2762
        %v2764 = vsel %vm2352, %v2763, %v2759
        %v2765 = vlaneseq
        %v2766 = vshrl.u32 %v2765, 7
        %v2767 = vsub.s32 %v2354, %v2766
        %v2768 = vrot.slane %v2129, %v2767
        %v2769 = vsel %vm2359, %v2768, %v2764
        %v2770 = vlaneseq
        %v2771 = vshrl.u32 %v2770, 7
        %v2772 = vsub.s32 %v2361, %v2771
        %v2773 = vrot.slane %v2130, %v2772
        %v2774 = vsel %vm2366, %v2773, %v2769
        %v2775 = vlaneseq
        %v2776 = vshrl.u32 %v2775, 7
        %v2777 = vsub.s32 %v2368, %v2776
        %v2778 = vrot.slane %v2131, %v2777
        %v2779 = vsel %vm2373, %v2778, %v2774
        %v2780 = vlaneseq
        %v2781 = vshrl.u32 %v2780, 7
        %v2782 = vsub.s32 %v2375, %v2781
        %v2783 = vrot.slane %v2132, %v2782
        %v2784 = vsel %vm2380, %v2783, %v2779
        %v2785 = vlaneseq
        %v2786 = vshrl.u32 %v2785, 7
        %v2787 = vsub.s32 %v2382, %v2786
        %v2788 = vrot.slane %v2133, %v2787
        %v2789 = vsel %vm2387, %v2788, %v2784
        %v2790 = vlaneseq
        %v2791 = vshrl.u32 %v2790, 7
        %v2792 = vsub.s32 %v2389, %v2791
        %v2793 = vrot.slane %v2134, %v2792
        %v2794 = vsel %vm2394, %v2793, %v2789
        %v2795 = vlaneseq
        %v2796 = vshrl.u32 %v2795, 7
        %v2797 = vsub.s32 %v2396, %v2796
        %v2798 = vrot.slane %v2135, %v2797
        %v2799 = vsel %vm2401, %v2798, %v2794
        %v2800 = vlaneseq
        %v2801 = vshrl.u32 %v2800, 7
        %v2802 = vsub.s32 %v2403, %v2801
        %v2803 = vrot.slane %v2136, %v2802
        %v2804 = vsel %vm2408, %v2803, %v2799
        %v2805 = vlaneseq
        %v2806 = vshrl.u32 %v2805, 7
        %v2807 = vsub.s32 %v2034, %v2806
        %v2808 = vrot.slane %v2137, %v2807
        %v2809 = vlaneseq
        %v2810 = vshrl.u32 %v2809, 7
        %v2811 = vsub.s32 %v2305, %v2810
        %v2812 = vrot.slane %v2138, %v2811
        %v2813 = vsel %vm2310, %v2812, %v2808
        %v2814 = vlaneseq
        %v2815 = vshrl.u32 %v2814, 7
        %v2816 = vsub.s32 %v2312, %v2815
        %v2817 = vrot.slane %v2139, %v2816
        %v2818 = vsel %vm2317, %v2817, %v2813
        %v2819 = vlaneseq
        %v2820 = vshrl.u32 %v2819, 7
        %v2821 = vsub.s32 %v2319, %v2820
        %v2822 = vrot.slane %v2140, %v2821
        %v2823 = vsel %vm2324, %v2822, %v2818
        %v2824 = vlaneseq
        %v2825 = vshrl.u32 %v2824, 7
        %v2826 = vsub.s32 %v2326, %v2825
        %v2827 = vrot.slane %v2141, %v2826
        %v2828 = vsel %vm2331, %v2827, %v2823
        %v2829 = vlaneseq
        %v2830 = vshrl.u32 %v2829, 7
        %v2831 = vsub.s32 %v2333, %v2830
        %v2832 = vrot.slane %v2142, %v2831
        %v2833 = vsel %vm2338, %v2832, %v2828
        %v2834 = vlaneseq
        %v2835 = vshrl.u32 %v2834, 7
        %v2836 = vsub.s32 %v2340, %v2835
        %v2837 = vrot.slane %v2143, %v2836
        %v2838 = vsel %vm2345, %v2837, %v2833
        %v2839 = vlaneseq
        %v2840 = vshrl.u32 %v2839, 7
        %v2841 = vsub.s32 %v2347, %v2840
        %v2842 = vrot.slane %v2144, %v2841
        %v2843 = vsel %vm2352, %v2842, %v2838
        %v2844 = vlaneseq
        %v2845 = vshrl.u32 %v2844, 7
        %v2846 = vsub.s32 %v2354, %v2845
        %v2847 = vrot.slane %v2145, %v2846
        %v2848 = vsel %vm2359, %v2847, %v2843
        %v2849 = vlaneseq
        %v2850 = vshrl.u32 %v2849, 7
        %v2851 = vsub.s32 %v2361, %v2850
        %v2852 = vrot.slane %v2146, %v2851
        %v2853 = vsel %vm2366, %v2852, %v2848
        %v2854 = vlaneseq
        %v2855 = vshrl.u32 %v2854, 7
        %v2856 = vsub.s32 %v2368, %v2855
        %v2857 = vrot.slane %v2147, %v2856
        %v2858 = vsel %vm2373, %v2857, %v2853
        %v2859 = vlaneseq
        %v2860 = vshrl.u32 %v2859, 7
        %v2861 = vsub.s32 %v2375, %v2860
        %v2862 = vrot.slane %v2148, %v2861
        %v2863 = vsel %vm2380, %v2862, %v2858
        %v2864 = vlaneseq
        %v2865 = vshrl.u32 %v2864, 7
        %v2866 = vsub.s32 %v2382, %v2865
        %v2867 = vrot.slane %v2149, %v2866
        %v2868 = vsel %vm2387, %v2867, %v2863
        %v2869 = vlaneseq
        %v2870 = vshrl.u32 %v2869, 7
        %v2871 = vsub.s32 %v2389, %v2870
        %v2872 = vrot.slane %v2150, %v2871
        %v2873 = vsel %vm2394, %v2872, %v2868
        %v2874 = vlaneseq
        %v2875 = vshrl.u32 %v2874, 7
        %v2876 = vsub.s32 %v2396, %v2875
        %v2877 = vrot.slane %v2151, %v2876
        %v2878 = vsel %vm2401, %v2877, %v2873
        %v2879 = vlaneseq
        %v2880 = vshrl.u32 %v2879, 7
        %v2881 = vsub.s32 %v2403, %v2880
        %v2882 = vrot.slane %v2152, %v2881
        %v2883 = vsel %vm2408, %v2882, %v2878
        %v2884 = vlaneseq
        %v2885 = vshrl.u32 %v2884, 7
        %v2886 = vsub.s32 %v2034, %v2885
        %v2887 = vrot.slane %v2153, %v2886
        %v2888 = vlaneseq
        %v2889 = vshrl.u32 %v2888, 7
        %v2890 = vsub.s32 %v2305, %v2889
        %v2891 = vrot.slane %v2154, %v2890
        %v2892 = vsel %vm2310, %v2891, %v2887
        %v2893 = vlaneseq
        %v2894 = vshrl.u32 %v2893, 7
        %v2895 = vsub.s32 %v2312, %v2894
        %v2896 = vrot.slane %v2155, %v2895
        %v2897 = vsel %vm2317, %v2896, %v2892
        %v2898 = vlaneseq
        %v2899 = vshrl.u32 %v2898, 7
        %v2900 = vsub.s32 %v2319, %v2899
        %v2901 = vrot.slane %v2156, %v2900
        %v2902 = vsel %vm2324, %v2901, %v2897
        %v2903 = vlaneseq
        %v2904 = vshrl.u32 %v2903, 7
        %v2905 = vsub.s32 %v2326, %v2904
        %v2906 = vrot.slane %v2157, %v2905
        %v2907 = vsel %vm2331, %v2906, %v2902
        %v2908 = vlaneseq
        %v2909 = vshrl.u32 %v2908, 7
        %v2910 = vsub.s32 %v2333, %v2909
        %v2911 = vrot.slane %v2158, %v2910
        %v2912 = vsel %vm2338, %v2911, %v2907
        %v2913 = vlaneseq
        %v2914 = vshrl.u32 %v2913, 7
        %v2915 = vsub.s32 %v2340, %v2914
        %v2916 = vrot.slane %v2159, %v2915
        %v2917 = vsel %vm2345, %v2916, %v2912
        %v2918 = vlaneseq
        %v2919 = vshrl.u32 %v2918, 7
        %v2920 = vsub.s32 %v2347, %v2919
        %v2921 = vrot.slane %v2160, %v2920
        %v2922 = vsel %vm2352, %v2921, %v2917
        %v2923 = vlaneseq
        %v2924 = vshrl.u32 %v2923, 7
        %v2925 = vsub.s32 %v2354, %v2924
        %v2926 = vrot.slane %v2161, %v2925
        %v2927 = vsel %vm2359, %v2926, %v2922
        %v2928 = vlaneseq
        %v2929 = vshrl.u32 %v2928, 7
        %v2930 = vsub.s32 %v2361, %v2929
        %v2931 = vrot.slane %v2162, %v2930
        %v2932 = vsel %vm2366, %v2931, %v2927
        %v2933 = vlaneseq
        %v2934 = vshrl.u32 %v2933, 7
        %v2935 = vsub.s32 %v2368, %v2934
        %v2936 = vrot.slane %v2163, %v2935
        %v2937 = vsel %vm2373, %v2936, %v2932
        %v2938 = vlaneseq
        %v2939 = vshrl.u32 %v2938, 7
        %v2940 = vsub.s32 %v2375, %v2939
        %v2941 = vrot.slane %v2164, %v2940
        %v2942 = vsel %vm2380, %v2941, %v2937
        %v2943 = vlaneseq
        %v2944 = vshrl.u32 %v2943, 7
        %v2945 = vsub.s32 %v2382, %v2944
        %v2946 = vrot.slane %v2165, %v2945
        %v2947 = vsel %vm2387, %v2946, %v2942
        %v2948 = vlaneseq
        %v2949 = vshrl.u32 %v2948, 7
        %v2950 = vsub.s32 %v2389, %v2949
        %v2951 = vrot.slane %v2166, %v2950
        %v2952 = vsel %vm2394, %v2951, %v2947
        %v2953 = vlaneseq
        %v2954 = vshrl.u32 %v2953, 7
        %v2955 = vsub.s32 %v2396, %v2954
        %v2956 = vrot.slane %v2167, %v2955
        %v2957 = vsel %vm2401, %v2956, %v2952
        %v2958 = vlaneseq
        %v2959 = vshrl.u32 %v2958, 7
        %v2960 = vsub.s32 %v2403, %v2959
        %v2961 = vrot.slane %v2168, %v2960
        %v2962 = vsel %vm2408, %v2961, %v2957
        %vm2963 = vcmask 1041409
        %v2964 = vsel %vm2963, %v2567, %v2409
        %vm2965 = vcmask 1042434
        %v2966 = vsel %vm2965, %v2725, %v2964
        %vm2967 = vcmask 1043459
        %v2968 = vsel %vm2967, %v2883, %v2966
        %v2969 = vsel %vm2963, %v2646, %v2488
        %v2970 = vsel %vm2965, %v2804, %v2969
        %v2971 = vsel %vm2967, %v2962, %v2970
        %v2974 = vsel %vm2171, %v2968, 0.0
        %v2975 = vsel %vm2172, %v2971, 0.0
        %v2976 = vpack.c.bf16 %v2974, %v2974
        %v2977 = vpack.c.bf16 %v2975, %v2975
        %v2978 = vld [vmem:[#allocation2] sm:$0xff]
        %v2979 = vld [vmem:[#allocation2 + $0x8] sm:$0xff]
        %v2980 = vld [vmem:[%s574] sm:$0xff]
        %v2981 = vld [vmem:[%s574 + $0x8] sm:$0xff]
        %v2982 = vld [vmem:[%s574 + $0x10] sm:$0xff]
        %v2983 = vld [vmem:[%s574 + $0x18] sm:$0xff]
        %v2984 = vld [vmem:[%s574 + $0x20] sm:$0xff]
        %v2985 = vld [vmem:[%s574 + $0x28] sm:$0xff]
        %v2986 = vld [vmem:[%s574 + $0x30] sm:$0xff]
        %v2987 = vld [vmem:[%s574 + $0x38] sm:$0xff]
        %v2988 = vld [vmem:[%s574 + $0x40] sm:$0xff]
        %v2989 = vld [vmem:[%s574 + $0x48] sm:$0xff]
        %v2990 = vld [vmem:[%s574 + $0x50] sm:$0xff]
        %v2991 = vld [vmem:[%s574 + $0x58] sm:$0xff]
        %v2992 = vld [vmem:[%s574 + $0x60] sm:$0xff]
        %v2993 = vld [vmem:[%s574 + $0x68] sm:$0xff]
        %v2994 = vld [vmem:[%s574 + $0x70] sm:$0xff]
        %v2995 = vld [vmem:[%s574 + $0x78] sm:$0xff]
        %v2996 = vld [vmem:[%s574 + $0x80] sm:$0xff]
        %v2997 = vld [vmem:[%s574 + $0x88] sm:$0xff]
        %v2998 = vld [vmem:[%s574 + $0x90] sm:$0xff]
        %v2999 = vld [vmem:[%s574 + $0x98] sm:$0xff]
        %v3000 = vld [vmem:[%s574 + $0xa0] sm:$0xff]
        %v3001 = vld [vmem:[%s574 + $0xa8] sm:$0xff]
        %v3002 = vld [vmem:[%s574 + $0xb0] sm:$0xff]
        %v3003 = vld [vmem:[%s574 + $0xb8] sm:$0xff]
        %v3004 = vld [vmem:[%s574 + $0xc0] sm:$0xff]
        %v3005 = vld [vmem:[%s574 + $0xc8] sm:$0xff]
        %v3006 = vld [vmem:[%s574 + $0xd0] sm:$0xff]
        %v3007 = vld [vmem:[%s574 + $0xd8] sm:$0xff]
        %v3008 = vld [vmem:[%s574 + $0xe0] sm:$0xff]
        %v3009 = vld [vmem:[%s574 + $0xe8] sm:$0xff]
        %v3010 = vld [vmem:[%s574 + $0xf0] sm:$0xff]
        %v3011 = vld [vmem:[%s574 + $0xf8] sm:$0xff]
        %v3012 = vld [vmem:[%s574 + $0x100] sm:$0xff]
        %v3013 = vld [vmem:[%s574 + $0x108] sm:$0xff]
        %v3014 = vld [vmem:[%s574 + $0x110] sm:$0xff]
        %v3015 = vld [vmem:[%s574 + $0x118] sm:$0xff]
        %v3016 = vld [vmem:[%s574 + $0x120] sm:$0xff]
        %v3017 = vld [vmem:[%s574 + $0x128] sm:$0xff]
        %v3018 = vld [vmem:[%s574 + $0x130] sm:$0xff]
        %v3019 = vld [vmem:[%s574 + $0x138] sm:$0xff]
        %v3020 = vld [vmem:[%s574 + $0x140] sm:$0xff]
        %v3021 = vld [vmem:[%s574 + $0x148] sm:$0xff]
        %v3022 = vld [vmem:[%s574 + $0x150] sm:$0xff]
        %v3023 = vld [vmem:[%s574 + $0x158] sm:$0xff]
        %v3024 = vld [vmem:[%s574 + $0x160] sm:$0xff]
        %v3025 = vld [vmem:[%s574 + $0x168] sm:$0xff]
        %v3026 = vld [vmem:[%s574 + $0x170] sm:$0xff]
        %v3027 = vld [vmem:[%s574 + $0x178] sm:$0xff]
        %v3028 = vld [vmem:[%s574 + $0x180] sm:$0xff]
        %v3029 = vld [vmem:[%s574 + $0x188] sm:$0xff]
        %v3030 = vld [vmem:[%s574 + $0x190] sm:$0xff]
        %v3031 = vld [vmem:[%s574 + $0x198] sm:$0xff]
        %v3032 = vld [vmem:[%s574 + $0x1a0] sm:$0xff]
        %v3033 = vld [vmem:[%s574 + $0x1a8] sm:$0xff]
        %v3034 = vld [vmem:[%s574 + $0x1b0] sm:$0xff]
        %v3035 = vld [vmem:[%s574 + $0x1b8] sm:$0xff]
        %v3036 = vld [vmem:[%s574 + $0x1c0] sm:$0xff]
        %v3037 = vld [vmem:[%s574 + $0x1c8] sm:$0xff]
        %v3038 = vld [vmem:[%s574 + $0x1d0] sm:$0xff]
        %v3039 = vld [vmem:[%s574 + $0x1d8] sm:$0xff]
        %v3040 = vld [vmem:[%s574 + $0x1e0] sm:$0xff]
        %v3041 = vld [vmem:[%s574 + $0x1e8] sm:$0xff]
        %v3042 = vld [vmem:[%s574 + $0x1f0] sm:$0xff]
        %v3043 = vld [vmem:[%s574 + $0x1f8] sm:$0xff]
        %v3108 = vunpack.c.l.b16 %v2980
        %v3109 = vunpack.c.h.b16 %v2980
        %v3110 = vunpack.c.l.b16 %v2981
        %v3111 = vunpack.c.h.b16 %v2981
        %v3112 = vunpack.c.l.b16 %v2982
        %v3113 = vunpack.c.h.b16 %v2982
        %v3114 = vunpack.c.l.b16 %v2983
        %v3115 = vunpack.c.h.b16 %v2983
        %v3116 = vunpack.c.l.b16 %v2984
        %v3117 = vunpack.c.h.b16 %v2984
        %v3118 = vunpack.c.l.b16 %v2985
        %v3119 = vunpack.c.h.b16 %v2985
        %v3120 = vunpack.c.l.b16 %v2986
        %v3121 = vunpack.c.h.b16 %v2986
        %v3122 = vunpack.c.l.b16 %v2987
        %v3123 = vunpack.c.h.b16 %v2987
        %v3124 = vunpack.c.l.b16 %v2988
        %v3125 = vunpack.c.h.b16 %v2988
        %v3126 = vunpack.c.l.b16 %v2989
        %v3127 = vunpack.c.h.b16 %v2989
        %v3128 = vunpack.c.l.b16 %v2990
        %v3129 = vunpack.c.h.b16 %v2990
        %v3130 = vunpack.c.l.b16 %v2991
        %v3131 = vunpack.c.h.b16 %v2991
        %v3132 = vunpack.c.l.b16 %v2992
        %v3133 = vunpack.c.h.b16 %v2992
        %v3134 = vunpack.c.l.b16 %v2993
        %v3135 = vunpack.c.h.b16 %v2993
        %v3136 = vunpack.c.l.b16 %v2994
        %v3137 = vunpack.c.h.b16 %v2994
        %v3138 = vunpack.c.l.b16 %v2995
        %v3139 = vunpack.c.h.b16 %v2995
        %v3140 = vunpack.c.l.b16 %v2996
        %v3141 = vunpack.c.h.b16 %v2996
        %v3142 = vunpack.c.l.b16 %v2997
        %v3143 = vunpack.c.h.b16 %v2997
        %v3144 = vunpack.c.l.b16 %v2998
        %v3145 = vunpack.c.h.b16 %v2998
        %v3146 = vunpack.c.l.b16 %v2999
        %v3147 = vunpack.c.h.b16 %v2999
        %v3148 = vunpack.c.l.b16 %v3000
        %v3149 = vunpack.c.h.b16 %v3000
        %v3150 = vunpack.c.l.b16 %v3001
        %v3151 = vunpack.c.h.b16 %v3001
        %v3152 = vunpack.c.l.b16 %v3002
        %v3153 = vunpack.c.h.b16 %v3002
        %v3154 = vunpack.c.l.b16 %v3003
        %v3155 = vunpack.c.h.b16 %v3003
        %v3156 = vunpack.c.l.b16 %v3004
        %v3157 = vunpack.c.h.b16 %v3004
        %v3158 = vunpack.c.l.b16 %v3005
        %v3159 = vunpack.c.h.b16 %v3005
        %v3160 = vunpack.c.l.b16 %v3006
        %v3161 = vunpack.c.h.b16 %v3006
        %v3162 = vunpack.c.l.b16 %v3007
        %v3163 = vunpack.c.h.b16 %v3007
        %v3164 = vunpack.c.l.b16 %v3008
        %v3165 = vunpack.c.h.b16 %v3008
        %v3166 = vunpack.c.l.b16 %v3009
        %v3167 = vunpack.c.h.b16 %v3009
        %v3168 = vunpack.c.l.b16 %v3010
        %v3169 = vunpack.c.h.b16 %v3010
        %v3170 = vunpack.c.l.b16 %v3011
        %v3171 = vunpack.c.h.b16 %v3011
        %v3172 = vunpack.c.l.b16 %v3012
        %v3173 = vunpack.c.h.b16 %v3012
        %v3174 = vunpack.c.l.b16 %v3013
        %v3175 = vunpack.c.h.b16 %v3013
        %v3176 = vunpack.c.l.b16 %v3014
        %v3177 = vunpack.c.h.b16 %v3014
        %v3178 = vunpack.c.l.b16 %v3015
        %v3179 = vunpack.c.h.b16 %v3015
        %v3180 = vunpack.c.l.b16 %v3016
        %v3181 = vunpack.c.h.b16 %v3016
        %v3182 = vunpack.c.l.b16 %v3017
        %v3183 = vunpack.c.h.b16 %v3017
        %v3184 = vunpack.c.l.b16 %v3018
        %v3185 = vunpack.c.h.b16 %v3018
        %v3186 = vunpack.c.l.b16 %v3019
        %v3187 = vunpack.c.h.b16 %v3019
        %v3188 = vunpack.c.l.b16 %v3020
        %v3189 = vunpack.c.h.b16 %v3020
        %v3190 = vunpack.c.l.b16 %v3021
        %v3191 = vunpack.c.h.b16 %v3021
        %v3192 = vunpack.c.l.b16 %v3022
        %v3193 = vunpack.c.h.b16 %v3022
        %v3194 = vunpack.c.l.b16 %v3023
        %v3195 = vunpack.c.h.b16 %v3023
        %v3196 = vunpack.c.l.b16 %v3024
        %v3197 = vunpack.c.h.b16 %v3024
        %v3198 = vunpack.c.l.b16 %v3025
        %v3199 = vunpack.c.h.b16 %v3025
        %v3200 = vunpack.c.l.b16 %v3026
        %v3201 = vunpack.c.h.b16 %v3026
        %v3202 = vunpack.c.l.b16 %v3027
        %v3203 = vunpack.c.h.b16 %v3027
        %v3204 = vunpack.c.l.b16 %v3028
        %v3205 = vunpack.c.h.b16 %v3028
        %v3206 = vunpack.c.l.b16 %v3029
        %v3207 = vunpack.c.h.b16 %v3029
        %v3208 = vunpack.c.l.b16 %v3030
        %v3209 = vunpack.c.h.b16 %v3030
        %v3210 = vunpack.c.l.b16 %v3031
        %v3211 = vunpack.c.h.b16 %v3031
        %v3212 = vunpack.c.l.b16 %v3032
        %v3213 = vunpack.c.h.b16 %v3032
        %v3214 = vunpack.c.l.b16 %v3033
        %v3215 = vunpack.c.h.b16 %v3033
        %v3216 = vunpack.c.l.b16 %v3034
        %v3217 = vunpack.c.h.b16 %v3034
        %v3218 = vunpack.c.l.b16 %v3035
        %v3219 = vunpack.c.h.b16 %v3035
        %v3220 = vunpack.c.l.b16 %v3036
        %v3221 = vunpack.c.h.b16 %v3036
        %v3222 = vunpack.c.l.b16 %v3037
        %v3223 = vunpack.c.h.b16 %v3037
        %v3224 = vunpack.c.l.b16 %v3038
        %v3225 = vunpack.c.h.b16 %v3038
        %v3226 = vunpack.c.l.b16 %v3039
        %v3227 = vunpack.c.h.b16 %v3039
        %v3228 = vunpack.c.l.b16 %v3040
        %v3229 = vunpack.c.h.b16 %v3040
        %v3230 = vunpack.c.l.b16 %v3041
        %v3231 = vunpack.c.h.b16 %v3041
        %v3232 = vunpack.c.l.b16 %v3042
        %v3233 = vunpack.c.h.b16 %v3042
        %v3234 = vunpack.c.l.b16 %v3043
        %v3235 = vunpack.c.h.b16 %v3043
        %v3236 = vpack.c.b16 %v3112, %v3108
        %v3237 = vpack.c.b16 %v3113, %v3109
        %v3238 = vpack.c.b16 %v3114, %v3110
        %v3239 = vpack.c.b16 %v3115, %v3111
        %v3240 = vpack.c.b16 %v3120, %v3116
        %v3241 = vpack.c.b16 %v3121, %v3117
        %v3242 = vpack.c.b16 %v3122, %v3118
        %v3243 = vpack.c.b16 %v3123, %v3119
        %v3244 = vpack.c.b16 %v3128, %v3124
        %v3245 = vpack.c.b16 %v3129, %v3125
        %v3246 = vpack.c.b16 %v3130, %v3126
        %v3247 = vpack.c.b16 %v3131, %v3127
        %v3248 = vpack.c.b16 %v3136, %v3132
        %v3249 = vpack.c.b16 %v3137, %v3133
        %v3250 = vpack.c.b16 %v3138, %v3134
        %v3251 = vpack.c.b16 %v3139, %v3135
        %v3252 = vpack.c.b16 %v3144, %v3140
        %v3253 = vpack.c.b16 %v3145, %v3141
        %v3254 = vpack.c.b16 %v3146, %v3142
        %v3255 = vpack.c.b16 %v3147, %v3143
        %v3256 = vpack.c.b16 %v3152, %v3148
        %v3257 = vpack.c.b16 %v3153, %v3149
        %v3258 = vpack.c.b16 %v3154, %v3150
        %v3259 = vpack.c.b16 %v3155, %v3151
        %v3260 = vpack.c.b16 %v3160, %v3156
        %v3261 = vpack.c.b16 %v3161, %v3157
        %v3262 = vpack.c.b16 %v3162, %v3158
        %v3263 = vpack.c.b16 %v3163, %v3159
        %v3264 = vpack.c.b16 %v3168, %v3164
        %v3265 = vpack.c.b16 %v3169, %v3165
        %v3266 = vpack.c.b16 %v3170, %v3166
        %v3267 = vpack.c.b16 %v3171, %v3167
        %v3268 = vpack.c.b16 %v3176, %v3172
        %v3269 = vpack.c.b16 %v3177, %v3173
        %v3270 = vpack.c.b16 %v3178, %v3174
        %v3271 = vpack.c.b16 %v3179, %v3175
        %v3272 = vpack.c.b16 %v3184, %v3180
        %v3273 = vpack.c.b16 %v3185, %v3181
        %v3274 = vpack.c.b16 %v3186, %v3182
        %v3275 = vpack.c.b16 %v3187, %v3183
        %v3276 = vpack.c.b16 %v3192, %v3188
        %v3277 = vpack.c.b16 %v3193, %v3189
        %v3278 = vpack.c.b16 %v3194, %v3190
        %v3279 = vpack.c.b16 %v3195, %v3191
        %v3280 = vpack.c.b16 %v3200, %v3196
        %v3281 = vpack.c.b16 %v3201, %v3197
        %v3282 = vpack.c.b16 %v3202, %v3198
        %v3283 = vpack.c.b16 %v3203, %v3199
        %v3284 = vpack.c.b16 %v3208, %v3204
        %v3285 = vpack.c.b16 %v3209, %v3205
        %v3286 = vpack.c.b16 %v3210, %v3206
        %v3287 = vpack.c.b16 %v3211, %v3207
        %v3288 = vpack.c.b16 %v3216, %v3212
        %v3289 = vpack.c.b16 %v3217, %v3213
        %v3290 = vpack.c.b16 %v3218, %v3214
        %v3291 = vpack.c.b16 %v3219, %v3215
        %v3292 = vpack.c.b16 %v3224, %v3220
        %v3293 = vpack.c.b16 %v3225, %v3221
        %v3294 = vpack.c.b16 %v3226, %v3222
        %v3295 = vpack.c.b16 %v3227, %v3223
        %v3296 = vpack.c.b16 %v3232, %v3228
        %v3297 = vpack.c.b16 %v3233, %v3229
        %v3298 = vpack.c.b16 %v3234, %v3230
        %v3299 = vpack.c.b16 %v3235, %v3231
        %3364 = vmatprep.subr.bf16.mxu0 %v3237
        %3365 = vmatpush1.bf16.msra.mxu0 %v3236
        %3366 = vmatprep.subr.bf16.mxu0 %v3241
        %3367 = vmatpush1.bf16.msra.mxu0 %v3240
        %3368 = vmatprep.subr.bf16.mxu0 %v3245
        %3369 = vmatpush1.bf16.msra.mxu0 %v3244
        %3370 = vmatprep.subr.bf16.mxu0 %v3249
        %3371 = vmatpush1.bf16.msra.mxu0 %v3248
        %3372 = vmatprep.subr.bf16.mxu0 %v3253
        %3373 = vmatpush1.bf16.msra.mxu0 %v3252
        %3374 = vmatprep.subr.bf16.mxu0 %v3257
        %3375 = vmatpush1.bf16.msra.mxu0 %v3256
        %3376 = vmatprep.subr.bf16.mxu0 %v3261
        %3377 = vmatpush1.bf16.msra.mxu0 %v3260
        %3378 = vmatprep.subr.bf16.mxu0 %v3265
        %3379 = vmatpush1.bf16.msra.mxu0 %v3264
        %3380 = vmatprep.subr.bf16.mxu0 %v3269
        %3381 = vmatpush1.bf16.msra.mxu0 %v3268
        %3382 = vmatprep.subr.bf16.mxu0 %v3273
        %3383 = vmatpush1.bf16.msra.mxu0 %v3272
        %3384 = vmatprep.subr.bf16.mxu0 %v3277
        %3385 = vmatpush1.bf16.msra.mxu0 %v3276
        %3386 = vmatprep.subr.bf16.mxu0 %v3281
        %3387 = vmatpush1.bf16.msra.mxu0 %v3280
        %3388 = vmatprep.subr.bf16.mxu0 %v3285
        %3389 = vmatpush1.bf16.msra.mxu0 %v3284
        %3390 = vmatprep.subr.bf16.mxu0 %v3289
        %3391 = vmatpush1.bf16.msra.mxu0 %v3288
        %3392 = vmatprep.subr.bf16.mxu0 %v3293
        %3393 = vmatpush1.bf16.msra.mxu0 %v3292
        %3394 = vmatprep.subr.bf16.mxu0 %v3297
        %3395 = vmatpush1.bf16.msra.mxu0 %v3296
        %3396 = vmatprep.mubr.bf16.mxu0 %v2977
        %3397 = vmatmul.mubr.bf16.gmra.mrb[0].mxu0 %v2976
        %v3398 = vpop.f32.mrb[0].mxu0
        %v3399 = vadd.f32 0.0, %v3398
        %v3400 = vpop.f32.mrb[0].mxu0
        %v3401 = vadd.f32 0.0, %v3400
        %v3402 = vpop.f32.mrb[0].mxu0
        %v3403 = vpop.f32.mrb[0].mxu0
        %3404 = vdwg.mxu0
        %3405 = vmatprep.subr.bf16.mxu0 %v3239
        %3406 = vmatpush1.bf16.msra.mxu0 %v3238
        %3407 = vmatprep.subr.bf16.mxu0 %v3243
        %3408 = vmatpush1.bf16.msra.mxu0 %v3242
        %3409 = vmatprep.subr.bf16.mxu0 %v3247
        %3410 = vmatpush1.bf16.msra.mxu0 %v3246
        %3411 = vmatprep.subr.bf16.mxu0 %v3251
        %3412 = vmatpush1.bf16.msra.mxu0 %v3250
        %3413 = vmatprep.subr.bf16.mxu0 %v3255
        %3414 = vmatpush1.bf16.msra.mxu0 %v3254
        %3415 = vmatprep.subr.bf16.mxu0 %v3259
        %3416 = vmatpush1.bf16.msra.mxu0 %v3258
        %3417 = vmatprep.subr.bf16.mxu0 %v3263
        %3418 = vmatpush1.bf16.msra.mxu0 %v3262
        %3419 = vmatprep.subr.bf16.mxu0 %v3267
        %3420 = vmatpush1.bf16.msra.mxu0 %v3266
        %3421 = vmatprep.subr.bf16.mxu0 %v3271
        %3422 = vmatpush1.bf16.msra.mxu0 %v3270
        %3423 = vmatprep.subr.bf16.mxu0 %v3275
        %3424 = vmatpush1.bf16.msra.mxu0 %v3274
        %3425 = vmatprep.subr.bf16.mxu0 %v3279
        %3426 = vmatpush1.bf16.msra.mxu0 %v3278
        %3427 = vmatprep.subr.bf16.mxu0 %v3283
        %3428 = vmatpush1.bf16.msra.mxu0 %v3282
        %3429 = vmatprep.subr.bf16.mxu0 %v3287
        %3430 = vmatpush1.bf16.msra.mxu0 %v3286
        %3431 = vmatprep.subr.bf16.mxu0 %v3291
        %3432 = vmatpush1.bf16.msra.mxu0 %v3290
        %3433 = vmatprep.subr.bf16.mxu0 %v3295
        %3434 = vmatpush1.bf16.msra.mxu0 %v3294
        %3435 = vmatprep.subr.bf16.mxu0 %v3299
        %3436 = vmatpush1.bf16.msra.mxu0 %v3298
        %3437 = vmatprep.mubr.bf16.mxu0 %v2977
        %3438 = vmatmul.mubr.bf16.gmra.mrb[0].mxu0 %v2976
        %v3439 = vpop.f32.mrb[0].mxu0
        %v3440 = vadd.f32 0.0, %v3439
        %v3441 = vpop.f32.mrb[0].mxu0
        %v3442 = vadd.f32 0.0, %v3441
        %v3443 = vpop.f32.mrb[0].mxu0
        %v3444 = vpop.f32.mrb[0].mxu0
        %3445 = vdwg.mxu0
        %v3450 = vcombine.low %v3399, %v3401
        %v3451 = vcombine.low %v3440, %v3442
        %v3454 = vadd.f32 %v2978, %v3450
        %v3455 = vadd.f32 %v2979, %v3451
        %3456 = vst [vmem:[#allocation2] sm:$0xff] %v3454
        %3457 = vst [vmem:[#allocation2 + $0x8] sm:$0xff] %v3455
        %p3458 = scmp.eq.s32.totalorder %s27, 3
        // Predicated region
        $region91: #{tpu_custom_call.1} parent=81 // pred_check
          %p3459 = pneg %p3458
        $region92: #{tpu_custom_call.1} parent=81 // pred_check_branch
          %3461 = sbr.rel (%p3459) target = $region94
        $region93: #{tpu_custom_call.1} parent=81 // pred_region
          %v3462 = vld [vmem:[#allocation2] sm:$0xff]
          %v3463 = vld [vmem:[#allocation2 + $0x8] sm:$0xff]
          %v3464 = vld [vmem:[%s4] sm:$0xf]
          %v3466 = vlaneseq
          %v3467 = vshrl.u32 %v3466, 7
          %v3468 = vsub.s32 0, %v3467
          %v3469 = vrot.slane %v3464, %v3468
          %v3470 = vlaneseq
          %v3471 = vshrl.u32 %v3470, 7
          %v3472 = vsub.s32 1, %v3471
          %v3473 = vrot.slane %v3464, %v3472
          %v3474 = vlaneseq
          %v3475 = vshrl.u32 %v3474, 7
          %v3476 = vsub.s32 2, %v3475
          %v3477 = vrot.slane %v3464, %v3476
          %v3478 = vlaneseq
          %v3479 = vshrl.u32 %v3478, 7
          %v3480 = vsub.s32 3, %v3479
          %v3481 = vrot.slane %v3464, %v3480
          %v3482 = vcombine.low %v3469, %v3473
          %v3483 = vcombine.low %v3477, %v3481
          %v3486 = vadd.f32 %v3462, %v3482
          %v3487 = vadd.f32 %v3463, %v3483
          %v3488 = vmax.f32 %v3486, 0.0
          %v3489 = vmax.f32 %v3487, 0.0
          %v3492 = vcombine.high %v3488, %v3488
          %v3493 = vcombine.high %v3489, %v3489
          %v3496 = vpack.c.bf16 %v3488, %v3488
          %v3497 = vpack.c.bf16 %v3492, %v3492
          %v3498 = vpack.c.bf16 %v3489, %v3489
          %v3499 = vpack.c.bf16 %v3493, %v3493
          %v3500 = vld [vmem:[%s5] sm:$0xf]
          %v3501 = vld [vmem:[%s5 + $0x4] sm:$0xf]
          %v3502 = vld [vmem:[%s5 + $0x8] sm:$0xf]
          %v3503 = vld [vmem:[%s5 + $0xc] sm:$0xf]
          %v3504 = vld [vmem:[%s5 + $0x10] sm:$0xf]
          %v3505 = vld [vmem:[%s5 + $0x14] sm:$0xf]
          %v3506 = vld [vmem:[%s5 + $0x18] sm:$0xf]
          %v3507 = vld [vmem:[%s5 + $0x1c] sm:$0xf]
          %v3508 = vld [vmem:[%s5 + $0x20] sm:$0xf]
          %v3509 = vld [vmem:[%s5 + $0x24] sm:$0xf]
          %v3510 = vld [vmem:[%s5 + $0x28] sm:$0xf]
          %v3511 = vld [vmem:[%s5 + $0x2c] sm:$0xf]
          %v3512 = vld [vmem:[%s5 + $0x30] sm:$0xf]
          %v3513 = vld [vmem:[%s5 + $0x34] sm:$0xf]
          %v3514 = vld [vmem:[%s5 + $0x38] sm:$0xf]
          %v3515 = vld [vmem:[%s5 + $0x3c] sm:$0xf]
          %v3516 = vld [vmem:[%s5 + $0x40] sm:$0xf]
          %v3517 = vld [vmem:[%s5 + $0x44] sm:$0xf]
          %v3518 = vld [vmem:[%s5 + $0x48] sm:$0xf]
          %v3519 = vld [vmem:[%s5 + $0x4c] sm:$0xf]
          %v3520 = vld [vmem:[%s5 + $0x50] sm:$0xf]
          %v3521 = vld [vmem:[%s5 + $0x54] sm:$0xf]
          %v3522 = vld [vmem:[%s5 + $0x58] sm:$0xf]
          %v3523 = vld [vmem:[%s5 + $0x5c] sm:$0xf]
          %v3524 = vld [vmem:[%s5 + $0x60] sm:$0xf]
          %v3525 = vld [vmem:[%s5 + $0x64] sm:$0xf]
          %v3526 = vld [vmem:[%s5 + $0x68] sm:$0xf]
          %v3527 = vld [vmem:[%s5 + $0x6c] sm:$0xf]
          %v3528 = vld [vmem:[%s5 + $0x70] sm:$0xf]
          %v3529 = vld [vmem:[%s5 + $0x74] sm:$0xf]
          %v3530 = vld [vmem:[%s5 + $0x78] sm:$0xf]
          %v3531 = vld [vmem:[%s5 + $0x7c] sm:$0xf]
          %v3532 = vld [vmem:[%s5 + $0x80] sm:$0xf]
          %v3533 = vld [vmem:[%s5 + $0x84] sm:$0xf]
          %v3534 = vld [vmem:[%s5 + $0x88] sm:$0xf]
          %v3535 = vld [vmem:[%s5 + $0x8c] sm:$0xf]
          %v3536 = vld [vmem:[%s5 + $0x90] sm:$0xf]
          %v3537 = vld [vmem:[%s5 + $0x94] sm:$0xf]
          %v3538 = vld [vmem:[%s5 + $0x98] sm:$0xf]
          %v3539 = vld [vmem:[%s5 + $0x9c] sm:$0xf]
          %v3540 = vld [vmem:[%s5 + $0xa0] sm:$0xf]
          %v3541 = vld [vmem:[%s5 + $0xa4] sm:$0xf]
          %v3542 = vld [vmem:[%s5 + $0xa8] sm:$0xf]
          %v3543 = vld [vmem:[%s5 + $0xac] sm:$0xf]
          %v3544 = vld [vmem:[%s5 + $0xb0] sm:$0xf]
          %v3545 = vld [vmem:[%s5 + $0xb4] sm:$0xf]
          %v3546 = vld [vmem:[%s5 + $0xb8] sm:$0xf]
          %v3547 = vld [vmem:[%s5 + $0xbc] sm:$0xf]
          %v3548 = vld [vmem:[%s5 + $0xc0] sm:$0xf]
          %v3549 = vld [vmem:[%s5 + $0xc4] sm:$0xf]
          %v3550 = vld [vmem:[%s5 + $0xc8] sm:$0xf]
          %v3551 = vld [vmem:[%s5 + $0xcc] sm:$0xf]
          %v3552 = vld [vmem:[%s5 + $0xd0] sm:$0xf]
          %v3553 = vld [vmem:[%s5 + $0xd4] sm:$0xf]
          %v3554 = vld [vmem:[%s5 + $0xd8] sm:$0xf]
          %v3555 = vld [vmem:[%s5 + $0xdc] sm:$0xf]
          %v3556 = vld [vmem:[%s5 + $0xe0] sm:$0xf]
          %v3557 = vld [vmem:[%s5 + $0xe4] sm:$0xf]
          %v3558 = vld [vmem:[%s5 + $0xe8] sm:$0xf]
          %v3559 = vld [vmem:[%s5 + $0xec] sm:$0xf]
          %v3560 = vld [vmem:[%s5 + $0xf0] sm:$0xf]
          %v3561 = vld [vmem:[%s5 + $0xf4] sm:$0xf]
          %v3562 = vld [vmem:[%s5 + $0xf8] sm:$0xf]
          %v3563 = vld [vmem:[%s5 + $0xfc] sm:$0xf]
          %v3564 = vld [vmem:[%s6] sm:$0x1]
          %v3566 = vlaneseq
          %v3567 = vshrl.u32 %v3566, 7
          %v3568 = vsub.s32 0, %v3567
          %v3569 = vrot.slane %v3564, %v3568
          %v3635 = vunpack.c.l.b16 %v3500
          %v3636 = vunpack.c.l.b16 %v3501
          %v3637 = vunpack.c.l.b16 %v3502
          %v3638 = vunpack.c.l.b16 %v3503
          %v3639 = vunpack.c.l.b16 %v3504
          %v3640 = vunpack.c.l.b16 %v3505
          %v3641 = vunpack.c.l.b16 %v3506
          %v3642 = vunpack.c.l.b16 %v3507
          %v3643 = vunpack.c.l.b16 %v3508
          %v3644 = vunpack.c.l.b16 %v3509
          %v3645 = vunpack.c.l.b16 %v3510
          %v3646 = vunpack.c.l.b16 %v3511
          %v3647 = vunpack.c.l.b16 %v3512
          %v3648 = vunpack.c.l.b16 %v3513
          %v3649 = vunpack.c.l.b16 %v3514
          %v3650 = vunpack.c.l.b16 %v3515
          %v3651 = vunpack.c.l.b16 %v3516
          %v3652 = vunpack.c.l.b16 %v3517
          %v3653 = vunpack.c.l.b16 %v3518
          %v3654 = vunpack.c.l.b16 %v3519
          %v3655 = vunpack.c.l.b16 %v3520
          %v3656 = vunpack.c.l.b16 %v3521
          %v3657 = vunpack.c.l.b16 %v3522
          %v3658 = vunpack.c.l.b16 %v3523
          %v3659 = vunpack.c.l.b16 %v3524
          %v3660 = vunpack.c.l.b16 %v3525
          %v3661 = vunpack.c.l.b16 %v3526
          %v3662 = vunpack.c.l.b16 %v3527
          %v3663 = vunpack.c.l.b16 %v3528
          %v3664 = vunpack.c.l.b16 %v3529
          %v3665 = vunpack.c.l.b16 %v3530
          %v3666 = vunpack.c.l.b16 %v3531
          %v3667 = vunpack.c.l.b16 %v3532
          %v3668 = vunpack.c.l.b16 %v3533
          %v3669 = vunpack.c.l.b16 %v3534
          %v3670 = vunpack.c.l.b16 %v3535
          %v3671 = vunpack.c.l.b16 %v3536
          %v3672 = vunpack.c.l.b16 %v3537
          %v3673 = vunpack.c.l.b16 %v3538
          %v3674 = vunpack.c.l.b16 %v3539
          %v3675 = vunpack.c.l.b16 %v3540
          %v3676 = vunpack.c.l.b16 %v3541
          %v3677 = vunpack.c.l.b16 %v3542
          %v3678 = vunpack.c.l.b16 %v3543
          %v3679 = vunpack.c.l.b16 %v3544
          %v3680 = vunpack.c.l.b16 %v3545
          %v3681 = vunpack.c.l.b16 %v3546
          %v3682 = vunpack.c.l.b16 %v3547
          %v3683 = vunpack.c.l.b16 %v3548
          %v3684 = vunpack.c.l.b16 %v3549
          %v3685 = vunpack.c.l.b16 %v3550
          %v3686 = vunpack.c.l.b16 %v3551
          %v3687 = vunpack.c.l.b16 %v3552
          %v3688 = vunpack.c.l.b16 %v3553
          %v3689 = vunpack.c.l.b16 %v3554
          %v3690 = vunpack.c.l.b16 %v3555
          %v3691 = vunpack.c.l.b16 %v3556
          %v3692 = vunpack.c.l.b16 %v3557
          %v3693 = vunpack.c.l.b16 %v3558
          %v3694 = vunpack.c.l.b16 %v3559
          %v3695 = vunpack.c.l.b16 %v3560
          %v3696 = vunpack.c.l.b16 %v3561
          %v3697 = vunpack.c.l.b16 %v3562
          %v3698 = vunpack.c.l.b16 %v3563
          %v3699 = vpack.c.b16 %v3636, %v3635
          %v3700 = vpack.c.b16 %v3638, %v3637
          %v3701 = vpack.c.b16 %v3640, %v3639
          %v3702 = vpack.c.b16 %v3642, %v3641
          %v3703 = vpack.c.b16 %v3644, %v3643
          %v3704 = vpack.c.b16 %v3646, %v3645
          %v3705 = vpack.c.b16 %v3648, %v3647
          %v3706 = vpack.c.b16 %v3650, %v3649
          %v3707 = vpack.c.b16 %v3652, %v3651
          %v3708 = vpack.c.b16 %v3654, %v3653
          %v3709 = vpack.c.b16 %v3656, %v3655
          %v3710 = vpack.c.b16 %v3658, %v3657
          %v3711 = vpack.c.b16 %v3660, %v3659
          %v3712 = vpack.c.b16 %v3662, %v3661
          %v3713 = vpack.c.b16 %v3664, %v3663
          %v3714 = vpack.c.b16 %v3666, %v3665
          %v3715 = vpack.c.b16 %v3668, %v3667
          %v3716 = vpack.c.b16 %v3670, %v3669
          %v3717 = vpack.c.b16 %v3672, %v3671
          %v3718 = vpack.c.b16 %v3674, %v3673
          %v3719 = vpack.c.b16 %v3676, %v3675
          %v3720 = vpack.c.b16 %v3678, %v3677
          %v3721 = vpack.c.b16 %v3680, %v3679
          %v3722 = vpack.c.b16 %v3682, %v3681
          %v3723 = vpack.c.b16 %v3684, %v3683
          %v3724 = vpack.c.b16 %v3686, %v3685
          %v3725 = vpack.c.b16 %v3688, %v3687
          %v3726 = vpack.c.b16 %v3690, %v3689
          %v3727 = vpack.c.b16 %v3692, %v3691
          %v3728 = vpack.c.b16 %v3694, %v3693
          %v3729 = vpack.c.b16 %v3696, %v3695
          %v3730 = vpack.c.b16 %v3698, %v3697
          %3763 = vmatprep.subr.bf16.mxu0 0
          %3764 = vmatpush1.bf16.msra.mxu0 %v3699
          %3765 = vmatprep.subr.bf16.mxu0 0
          %3766 = vmatpush1.bf16.msra.mxu0 %v3700
          %3767 = vmatprep.subr.bf16.mxu0 0
          %3768 = vmatpush1.bf16.msra.mxu0 %v3701
          %3769 = vmatprep.subr.bf16.mxu0 0
          %3770 = vmatpush1.bf16.msra.mxu0 %v3702
          %3771 = vmatprep.subr.bf16.mxu0 0
          %3772 = vmatpush1.bf16.msra.mxu0 %v3703
          %3773 = vmatprep.subr.bf16.mxu0 0
          %3774 = vmatpush1.bf16.msra.mxu0 %v3704
          %3775 = vmatprep.subr.bf16.mxu0 0
          %3776 = vmatpush1.bf16.msra.mxu0 %v3705
          %3777 = vmatprep.subr.bf16.mxu0 0
          %3778 = vmatpush1.bf16.msra.mxu0 %v3706
          %3779 = vmatprep.subr.bf16.mxu0 0
          %3780 = vmatpush1.bf16.msra.mxu0 %v3707
          %3781 = vmatprep.subr.bf16.mxu0 0
          %3782 = vmatpush1.bf16.msra.mxu0 %v3708
          %3783 = vmatprep.subr.bf16.mxu0 0
          %3784 = vmatpush1.bf16.msra.mxu0 %v3709
          %3785 = vmatprep.subr.bf16.mxu0 0
          %3786 = vmatpush1.bf16.msra.mxu0 %v3710
          %3787 = vmatprep.subr.bf16.mxu0 0
          %3788 = vmatpush1.bf16.msra.mxu0 %v3711
          %3789 = vmatprep.subr.bf16.mxu0 0
          %3790 = vmatpush1.bf16.msra.mxu0 %v3712
          %3791 = vmatprep.subr.bf16.mxu0 0
          %3792 = vmatpush1.bf16.msra.mxu0 %v3713
          %3793 = vmatprep.subr.bf16.mxu0 0
          %3794 = vmatpush1.bf16.msra.mxu0 %v3714
          %3795 = vmatprep.mubr.bf16.mxu0 %v3497
          %3796 = vmatmul.mubr.bf16.gmra.mrb[0].mxu0 %v3496
          %v3797 = vpop.f32.mrb[0].mxu0
          %v3798 = vadd.f32 %v3569, %v3797
          %v3799 = vpop.f32.mrb[0].mxu0
          %v3800 = vpop.f32.mrb[0].mxu0
          %v3801 = vpop.f32.mrb[0].mxu0
          %3802 = vdwg.mxu0
          %3803 = vmatprep.subr.bf16.mxu0 0
          %3804 = vmatpush1.bf16.msra.mxu0 %v3715
          %3805 = vmatprep.subr.bf16.mxu0 0
          %3806 = vmatpush1.bf16.msra.mxu0 %v3716
          %3807 = vmatprep.subr.bf16.mxu0 0
          %3808 = vmatpush1.bf16.msra.mxu0 %v3717
          %3809 = vmatprep.subr.bf16.mxu0 0
          %3810 = vmatpush1.bf16.msra.mxu0 %v3718
          %3811 = vmatprep.subr.bf16.mxu0 0
          %3812 = vmatpush1.bf16.msra.mxu0 %v3719
          %3813 = vmatprep.subr.bf16.mxu0 0
          %3814 = vmatpush1.bf16.msra.mxu0 %v3720
          %3815 = vmatprep.subr.bf16.mxu0 0
          %3816 = vmatpush1.bf16.msra.mxu0 %v3721
          %3817 = vmatprep.subr.bf16.mxu0 0
          %3818 = vmatpush1.bf16.msra.mxu0 %v3722
          %3819 = vmatprep.subr.bf16.mxu0 0
          %3820 = vmatpush1.bf16.msra.mxu0 %v3723
          %3821 = vmatprep.subr.bf16.mxu0 0
          %3822 = vmatpush1.bf16.msra.mxu0 %v3724
          %3823 = vmatprep.subr.bf16.mxu0 0
          %3824 = vmatpush1.bf16.msra.mxu0 %v3725
          %3825 = vmatprep.subr.bf16.mxu0 0
          %3826 = vmatpush1.bf16.msra.mxu0 %v3726
          %3827 = vmatprep.subr.bf16.mxu0 0
          %3828 = vmatpush1.bf16.msra.mxu0 %v3727
          %3829 = vmatprep.subr.bf16.mxu0 0
          %3830 = vmatpush1.bf16.msra.mxu0 %v3728
          %3831 = vmatprep.subr.bf16.mxu0 0
          %3832 = vmatpush1.bf16.msra.mxu0 %v3729
          %3833 = vmatprep.subr.bf16.mxu0 0
          %3834 = vmatpush1.bf16.msra.mxu0 %v3730
          %3835 = vmatprep.mubr.bf16.mxu0 %v3499
          %3836 = vmatmul.mubr.bf16.gmra.mrb[0].mxu0 %v3498
          %v3837 = vpop.f32.mrb[0].mxu0
          %v3838 = vadd.f32 %v3798, %v3837
          %v3839 = vpop.f32.mrb[0].mxu0
          %v3840 = vpop.f32.mrb[0].mxu0
          %v3841 = vpop.f32.mrb[0].mxu0
          %3842 = vdwg.mxu0
          %v3843 = vmax.f32 %v3838, 0.0
          %v3844 = vpack.c.bf16 %v3843, %v3843
          %v3845 = vld [vmem:[%s7] sm:$0xf]
          %v3846 = vld [vmem:[%s7 + $0x4] sm:$0xf]
          %v3847 = vld [vmem:[%s7 + $0x8] sm:$0xf]
          %v3848 = vld [vmem:[%s7 + $0xc] sm:$0xf]
          %v3849 = vld [vmem:[%s7 + $0x10] sm:$0xf]
          %v3850 = vld [vmem:[%s7 + $0x14] sm:$0xf]
          %v3851 = vld [vmem:[%s7 + $0x18] sm:$0xf]
          %v3852 = vld [vmem:[%s7 + $0x1c] sm:$0xf]
          %v3853 = vld [vmem:[%s7 + $0x20] sm:$0xf]
          %v3854 = vld [vmem:[%s7 + $0x24] sm:$0xf]
          %v3855 = vld [vmem:[%s7 + $0x28] sm:$0xf]
          %v3856 = vld [vmem:[%s7 + $0x2c] sm:$0xf]
          %v3857 = vld [vmem:[%s7 + $0x30] sm:$0xf]
          %v3858 = vld [vmem:[%s7 + $0x34] sm:$0xf]
          %v3859 = vld [vmem:[%s7 + $0x38] sm:$0xf]
          %v3860 = vld [vmem:[%s7 + $0x3c] sm:$0xf]
          %v3861 = vld [vmem:[%s8] sm:$0x1]
          %v3863 = vlaneseq
          %v3864 = vshrl.u32 %v3863, 7
          %v3865 = vsub.s32 0, %v3864
          %v3866 = vrot.slane %v3861, %v3865
          %v3884 = vunpack.c.l.b16 %v3845
          %v3885 = vunpack.c.l.b16 %v3846
          %v3886 = vunpack.c.l.b16 %v3847
          %v3887 = vunpack.c.l.b16 %v3848
          %v3888 = vunpack.c.l.b16 %v3849
          %v3889 = vunpack.c.l.b16 %v3850
          %v3890 = vunpack.c.l.b16 %v3851
          %v3891 = vunpack.c.l.b16 %v3852
          %v3892 = vunpack.c.l.b16 %v3853
          %v3893 = vunpack.c.l.b16 %v3854
          %v3894 = vunpack.c.l.b16 %v3855
          %v3895 = vunpack.c.l.b16 %v3856
          %v3896 = vunpack.c.l.b16 %v3857
          %v3897 = vunpack.c.l.b16 %v3858
          %v3898 = vunpack.c.l.b16 %v3859
          %v3899 = vunpack.c.l.b16 %v3860
          %v3900 = vpack.c.b16 %v3885, %v3884
          %v3901 = vpack.c.b16 %v3887, %v3886
          %v3902 = vpack.c.b16 %v3889, %v3888
          %v3903 = vpack.c.b16 %v3891, %v3890
          %v3904 = vpack.c.b16 %v3893, %v3892
          %v3905 = vpack.c.b16 %v3895, %v3894
          %v3906 = vpack.c.b16 %v3897, %v3896
          %v3907 = vpack.c.b16 %v3899, %v3898
          %3916 = vmatprep.subr.bf16.mxu0 0
          %3917 = vmatpush1.bf16.msra.mxu0 %v3900
          %3918 = vmatprep.subr.bf16.mxu0 0
          %3919 = vmatpush1.bf16.msra.mxu0 %v3901
          %3920 = vmatprep.subr.bf16.mxu0 0
          %3921 = vmatpush1.bf16.msra.mxu0 %v3902
          %3922 = vmatprep.subr.bf16.mxu0 0
          %3923 = vmatpush1.bf16.msra.mxu0 %v3903
          %3924 = vmatprep.subr.bf16.mxu0 0
          %3925 = vmatpush1.bf16.msra.mxu0 %v3904
          %3926 = vmatprep.subr.bf16.mxu0 0
          %3927 = vmatpush1.bf16.msra.mxu0 %v3905
          %3928 = vmatprep.subr.bf16.mxu0 0
          %3929 = vmatpush1.bf16.msra.mxu0 %v3906
          %3930 = vmatprep.subr.bf16.mxu0 0
          %3931 = vmatpush1.bf16.msra.mxu0 %v3907
          %3932 = vmatprep.subr.bf16.mxu0 0
          %3933 = vmatpush1.bf16.msra.mxu0 0
          %3934 = vmatprep.subr.bf16.mxu0 0
          %3935 = vmatpush1.bf16.msra.mxu0 0
          %3936 = vmatprep.subr.bf16.mxu0 0
          %3937 = vmatpush1.bf16.msra.mxu0 0
          %3938 = vmatprep.subr.bf16.mxu0 0
          %3939 = vmatpush1.bf16.msra.mxu0 0
          %3940 = vmatprep.subr.bf16.mxu0 0
          %3941 = vmatpush1.bf16.msra.mxu0 0
          %3942 = vmatprep.subr.bf16.mxu0 0
          %3943 = vmatpush1.bf16.msra.mxu0 0
          %3944 = vmatprep.subr.bf16.mxu0 0
          %3945 = vmatpush1.bf16.msra.mxu0 0
          %3946 = vmatprep.subr.bf16.mxu0 0
          %3947 = vmatpush1.bf16.msra.mxu0 0
          %3948 = vmatprep.mubr.bf16.mxu0 0
          %3949 = vmatmul.mubr.bf16.gmra.mrb[0].mxu0 %v3844
          %v3950 = vpop.f32.mrb[0].mxu0
          %v3951 = vadd.f32 %v3866, %v3950
          %v3952 = vpop.f32.mrb[0].mxu0
          %v3953 = vpop.f32.mrb[0].mxu0
          %v3954 = vpop.f32.mrb[0].mxu0
          %3955 = vdwg.mxu0
          %3956 = vst [vmem:[#allocation5] sm:$0xf] %v3951
        $region94: #{tpu_custom_call.1} parent=81 // pred_fallthru
          _
        // Predicated region
        $region95: #{tpu_custom_call.1} parent=81 // pred_check
          %p3957 = pneg %p253
        $region96: #{tpu_custom_call.1} parent=81 // pred_check_branch
          %3959 = sbr.rel (%p3957) target = $region98
        $region97: #{tpu_custom_call.1} parent=81 // pred_region
          %s3961 = ssub.s32 64, 64
          %3962 = vsyncadd [#allocation6], %s3961
          %s3963 = smul.addr %s26, 64
          %s3964 = scalar_lea.hbm %s9, %s3963
          %s3966 = sshll.u32 [#allocation5], 4
          %s3967 = int_to_ptr.vmem [resolvable:$true] %s3966
          %3969 = dma.vmem_to_hbm [thread:$0]  %s3967, 64, %s3964, [#allocation6]
        $region98: #{tpu_custom_call.1} parent=81 // pred_fallthru
          _
        // Predicated region
        $region99: #{tpu_custom_call.1} parent=81 // pred_check
          %p3970 = pneg %p253
        $region100: #{tpu_custom_call.1} parent=81 // pred_check_branch
          %3972 = sbr.rel (%p3970) target = $region102
        $region101: #{tpu_custom_call.1} parent=81 // pred_region
          %3973 = dma.done [#allocation6], 64
        $region102: #{tpu_custom_call.1} parent=81 // pred_fallthru
          _
      $region82: #{tpu_custom_call.1} parent=5 // pred_fallthru
        _
      %p3974 = scmp.le.s32.totalorder 2, %s17
      // Predicated region
      $region103: #{tpu_custom_call.1} parent=5 // pred_check
        %p3975 = pneg %p3974
      $region104: #{tpu_custom_call.1} parent=5 // pred_check_branch
        %3977 = sbr.rel (%p3975) target = $region106
      $region105: #{tpu_custom_call.1} parent=5 // pred_region
        %s3978 = ssub.s32 %s17, 2
      $region106: #{tpu_custom_call.1} parent=5 // pred_fallthru
        _
    $region6: #{tpu_custom_call.1} parent=1 // loop_footer
      %s21 = sadd.s32 1, %s17
    $region7: #{tpu_custom_call.1} parent=1 // loop_footer_branch
      %16 = sbr.rel target = $region3
    $region8: #{tpu_custom_call.1} parent=1 // loop_exit
      _
    %3979 = vsyncpa [#allocation6], 1
    %s3980 = scalar_lea.sflag [#allocation6], 1
    %3981 = vsyncpa %s3980, 1

</llo_original>
